<compile_context>
chip_gen: v5e
topology: v5e:2x2
jax: 0.10.0
libtpu: 0.0.40
codegen_flags: <defaults>
</compile_context>

<pallas_src>
import jax
import jax.numpy as jnp
from jax.experimental import pallas as pl
from jax.experimental.pallas import tpu as pltpu

# ---- static sizes implied by the module -------------------------------------
H_IN = W_IN = 28              # 5x5 valid conv + 2x2/2 pool -> 12x12 requires 28x28 input
K = 5
H_P = W_P = 12                # pooled spatial
C_OUT = 32
ROW_TAPS = K * W_IN           # 140 : one row-patch = 5 stacked 28-pixel input rows
N_CONV_COLS = 2 * W_P * C_OUT # 768 : conv matmul columns = (col-parity, pooled-col, channel)
N_POOL_COLS = W_P * C_OUT     # 384 : pooled columns       = (pooled-col, channel)
FEAT = H_P * W_P * C_OUT      # 4608
HID = 32
N_CLS = 2

TB_CONV_MAX = 128             # images per conv grid step  (review: raise TB; ~15 MiB VMEM)
TB_MLP_MAX = 256              # images per MLP grid step   (review: decouple & enlarge)


def _round_up(n, m):
    return ((n + m - 1) // m) * m


def _pick_conv_tb(B):
    if B <= 16:
        return _round_up(B, 8)
    # keep >=2 grid steps when the batch allows it so v7x's two TensorCores both get work
    return min(TB_CONV_MAX, _round_up(pl.cdiv(B, 2), 8))


def _pick_mlp_tb(tb_conv, grid_conv):
    k = 1
    for d in range(grid_conv, 0, -1):
        if grid_conv % d == 0 and d * tb_conv <= TB_MLP_MAX:
            k = d
            break
    return k * tb_conv


# ---------------------------- Pallas kernels ---------------------------------
def conv_pool_kernel(rpe_ref, rpo_ref, w_ref, b_ref, o_ref):
    # rpe_ref/rpo_ref: (TB*12, 140) bf16 row-patches for even / odd conv-output rows
    # w_ref          : (140, 768)   bf16 banded conv weights, cols = (parity, j', c)
    # b_ref          : (1, 384)     f32 conv bias tiled over pooled columns
    # o_ref          : (TB*12, 384) bf16 pooled+ReLU activations, cols = (j', c)
    ce = jnp.dot(rpe_ref[...], w_ref[...], preferred_element_type=jnp.float32)
    co = jnp.dot(rpo_ref[...], w_ref[...], preferred_element_type=jnp.float32)
    # 2x2/2 max pool: column halves are the two j-parities, ce/co are the two i-parities.
    m = jnp.maximum(jnp.maximum(ce[:, :N_POOL_COLS], ce[:, N_POOL_COLS:]),
                    jnp.maximum(co[:, :N_POOL_COLS], co[:, N_POOL_COLS:]))
    o_ref[...] = jnp.maximum(m + b_ref[...], 0.0).astype(o_ref.dtype)


def mlp_kernel(f_ref, w1_ref, b1_ref, w2_ref, b2_ref, o_ref):
    # f_ref: (TBm, 4608) bf16, w1_ref: (4608, 32) bf16, w2_ref: (32, 2) f32, o_ref: (TBm, 2) f32
    h = jnp.dot(f_ref[...], w1_ref[...],
                preferred_element_type=jnp.float32) + b1_ref[...]
    h = jnp.maximum(h, 0.0)
    logits = jnp.dot(h, w2_ref[...],
                     preferred_element_type=jnp.float32) + b2_ref[...]
    o_ref[...] = jax.nn.sigmoid(logits)


# ------------------------------ wrapper --------------------------------------
def infix_classifier(x, cw_toep, cb_pool, w1m, b1m, w2m, b2m):
    """x: (B, 1, 28, 28) float32 (NCHW, PyTorch convention)."""
    B = x.shape[0]
    tb_c = _pick_conv_tb(B)
    Bp = _round_up(B, tb_c)
    grid_c = Bp // tb_c
    tb_m = _pick_mlp_tb(tb_c, grid_c)
    grid_m = Bp // tb_m

    xs = x[:, 0].astype(jnp.bfloat16)                              # (B, 28, 28) bf16
    if Bp != B:
        xs = jnp.pad(xs, ((0, Bp - B), (0, 0), (0, 0)))

    # Row-patches (the only wrapper-built intermediate, ~6.6 KiB/image total):
    #   rp_a[b*12 + i', di*28 + p] = x[b, 2*i' + a + di, p]   (a = conv-output-row parity)
    def row_patches(parity):
        slabs = [xs[:, parity + di:parity + di + 2 * H_P:2, :] for di in range(K)]
        return jnp.stack(slabs, axis=2).reshape(Bp * H_P, ROW_TAPS)

    rpe = row_patches(0)
    rpo = row_patches(1)

    cost1 = pl.CostEstimate(
        flops=2 * 2 * (Bp * H_P) * ROW_TAPS * N_CONV_COLS,
        transcendentals=0,
        bytes_accessed=(2 * Bp * H_P * ROW_TAPS * 2 + ROW_TAPS * N_CONV_COLS * 2
                        + N_POOL_COLS * 4 + Bp * H_P * N_POOL_COLS * 2))

    pooled = pl.pallas_call(
        conv_pool_kernel,
        out_shape=jax.ShapeDtypeStruct((Bp * H_P, N_POOL_COLS), jnp.bfloat16),
        grid=(grid_c,),
        in_specs=[
            pl.BlockSpec((tb_c * H_P, ROW_TAPS), lambda i: (i, 0)),
            pl.BlockSpec((tb_c * H_P, ROW_TAPS), lambda i: (i, 0)),
            pl.BlockSpec((ROW_TAPS, N_CONV_COLS), lambda i: (0, 0)),   # VMEM-resident
            pl.BlockSpec((1, N_POOL_COLS), lambda i: (0, 0)),
        ],
        out_specs=pl.BlockSpec((tb_c * H_P, N_POOL_COLS), lambda i: (i, 0)),
        compiler_params=pltpu.CompilerParams(
            dimension_semantics=("parallel",),
            vmem_limit_bytes=48 * 1024 * 1024),
        cost_estimate=cost1,
    )(rpe, rpo, cw_toep, cb_pool)

    # Contiguous (Bp*12, 384) -> (Bp, 4608) is a free metadata reshape; feature order is
    # (i', j', c), matching the permuted fc1 weights.
    feat = pooled.reshape(Bp, FEAT)

    cost2 = pl.CostEstimate(
        flops=2 * Bp * FEAT * HID + 2 * Bp * HID * N_CLS,
        transcendentals=Bp * N_CLS,
        bytes_accessed=(Bp * FEAT * 2 + FEAT * HID * 2 + HID * 4
                        + HID * N_CLS * 4 + N_CLS * 4 + Bp * N_CLS * 4))

    out = pl.pallas_call(
        mlp_kernel,
        out_shape=jax.ShapeDtypeStruct((Bp, N_CLS), jnp.float32),
        grid=(grid_m,),
        in_specs=[
            pl.BlockSpec((tb_m, FEAT), lambda i: (i, 0)),
            pl.BlockSpec((FEAT, HID), lambda i: (0, 0)),   # VMEM-resident
            pl.BlockSpec((1, HID), lambda i: (0, 0)),
            pl.BlockSpec((HID, N_CLS), lambda i: (0, 0)),
            pl.BlockSpec((1, N_CLS), lambda i: (0, 0)),
        ],
        out_specs=pl.BlockSpec((tb_m, N_CLS), lambda i: (i, 0)),
        compiler_params=pltpu.CompilerParams(
            dimension_semantics=("parallel",),
            vmem_limit_bytes=32 * 1024 * 1024),
        cost_estimate=cost2,
    )(feat, w1m, b1m, w2m, b2m)
    return out[:B]


# -------------------------- parameters (deterministic) ------------------------
def init_torch_style_params(key):
    """Mimic PyTorch default init shapes: uniform(-1/sqrt(fan_in), 1/sqrt(fan_in))."""
    ks = jax.random.split(key, 6)

    def u(k, shape, fan_in):
        bound = 1.0 / (fan_in ** 0.5)
        return jax.random.uniform(k, shape, jnp.float32, -bound, bound)

    conv_w = u(ks[0], (C_OUT, 1, K, K), 1 * K * K)   # (32, 1, 5, 5)
    conv_b = u(ks[1], (C_OUT,), 1 * K * K)
    fc1_w = u(ks[2], (HID, FEAT), FEAT)              # (32, 4608)
    fc1_b = u(ks[3], (HID,), FEAT)
    fc2_w = u(ks[4], (N_CLS, HID), HID)              # (2, 32)
    fc2_b = u(ks[5], (N_CLS,), HID)
    return conv_w, conv_b, fc1_w, fc1_b, fc2_w, fc2_b


def to_kernel_params(conv_w, conv_b, fc1_w, fc1_b, fc2_w, fc2_b):
    # Banded ("Toeplitz") conv weight:
    #   T[di*28 + p, a*384 + j'*32 + c] = conv_w[c, 0, di, p - (2*j' + a)]  if 0 <= dj < 5
    p = jnp.arange(W_IN)
    a = jnp.arange(2)
    jp = jnp.arange(W_P)
    dj = p[:, None, None] - (2 * jp[None, None, :] + a[None, :, None])      # (28, 2, 12)
    valid = (dj >= 0) & (dj < K)
    w = conv_w[:, 0]                                                        # (32, 5, 5)
    t = w[:, :, jnp.clip(dj, 0, K - 1)]                                     # (32,5,28,2,12)
    t = jnp.where(valid[None, None], t, 0.0)
    cw_toep = (t.transpose(1, 2, 3, 4, 0)
                .reshape(K * W_IN, 2 * W_P * C_OUT)).astype(jnp.bfloat16)   # (140, 768)
    cb_pool = jnp.tile(conv_b, W_P).reshape(1, W_P * C_OUT)                 # (1, 384) f32
    # PyTorch flatten order is (c, i', j'); kernel feature order is (i', j', c).
    w1m = (fc1_w.reshape(HID, C_OUT, H_P, W_P)
                 .transpose(2, 3, 1, 0)
                 .reshape(FEAT, HID)).astype(jnp.bfloat16)                  # (4608, 32)
    b1m = fc1_b.reshape(1, HID)
    w2m = fc2_w.T                                                           # (32, 2)
    b2m = fc2_b.reshape(1, N_CLS)
    return cw_toep, cb_pool, w1m, b1m, w2m, b2m


# ------------------------------ pure-JAX reference ----------------------------
def reference(x, conv_w, conv_b, fc1_w, fc1_b, fc2_w, fc2_b):
    B = x.shape[0]
    y = jax.lax.conv_general_dilated(
        x, conv_w, window_strides=(1, 1), padding="VALID",
        dimension_numbers=("NCHW", "OIHW", "NCHW"))
    y = jax.nn.relu(y + conv_b[None, :, None, None])               # (B, 32, 24, 24)
    y = y.reshape(B, C_OUT, H_P, 2, W_P, 2).max(axis=(3, 5))       # (B, 32, 12, 12)
    y = y.reshape(B, FEAT)                                         # CHW flatten (torch .view)
    h = jax.nn.relu(y @ fc1_w.T + fc1_b)
    logits = h @ fc2_w.T + fc2_b
    return jax.nn.sigmoid(logits)


if __name__ == "__main__":
    key = jax.random.PRNGKey(0)
    k_params, k_x = jax.random.split(key)

    torch_params = init_torch_style_params(k_params)
    kernel_params = to_kernel_params(*torch_params)

    x = jax.random.normal(k_x, (2, 1, H_IN, W_IN), dtype=jnp.float32)

    out = jax.jit(infix_classifier)(x, *kernel_params)
    out = jax.block_until_ready(out)

    ref = jax.block_until_ready(reference(x, *torch_params))
    assert out.shape == (2, N_CLS)
    # bf16 matmul operands / f32 accumulation -> slightly looser tolerance vs f32 reference
    assert jnp.allclose(out, ref, atol=2e-3, rtol=2e-3), (out, ref)

    print("KERNEL_OK")
</pallas_src>

<mosaic_0001>
module attributes {stable_mosaic.version = 11 : i64} {
  func.func @conv_pool_kernel(%arg0: i32, %arg1: memref<96x140xbf16, #tpu.memory_space<vmem>>, %arg2: memref<96x140xbf16, #tpu.memory_space<vmem>>, %arg3: memref<140x768xbf16, #tpu.memory_space<vmem>>, %arg4: memref<1x384xf32, #tpu.memory_space<vmem>>, %arg5: memref<96x384xbf16, #tpu.memory_space<vmem>>) attributes {dimension_semantics = [#tpu.dimension_semantics<parallel>], iteration_bounds = array<i64: 1>, scalar_prefetch = 0 : i64, scratch_operands = 0 : i64, tpu.core_type = #tpu.core_type<tc>, window_params = [{transform_indices = @transform_0, window_bounds = array<i64: 96, 140>}, {transform_indices = @transform_1, window_bounds = array<i64: 96, 140>}, {pipeline_mode = #tpu.pipeline_mode<synchronous>, transform_indices = @transform_2, window_bounds = array<i64: 140, 768>}, {pipeline_mode = #tpu.pipeline_mode<synchronous>, transform_indices = @transform_3, window_bounds = array<i64: 1, 384>}, {transform_indices = @transform_4, window_bounds = array<i64: 96, 384>}]} {
    %c0 = arith.constant 0 : index
    %c0_0 = arith.constant 0 : index
    %0 = vector.load %arg1[%c0, %c0_0] : memref<96x140xbf16, #tpu.memory_space<vmem>>, vector<96x140xbf16>
    %c0_1 = arith.constant 0 : index
    %c0_2 = arith.constant 0 : index
    %1 = vector.load %arg3[%c0_1, %c0_2] : memref<140x768xbf16, #tpu.memory_space<vmem>>, vector<140x768xbf16>
    %cst = arith.constant dense<0.000000e+00> : vector<96x768xf32>
    %2 = tpu.matmul %0, %1, %cst {dimension_numbers = #tpu.dot_dimension_numbers<[1], [0], [0], [1], [0, 0, 1, 1], [], []>} : vector<96x140xbf16>, vector<140x768xbf16>, vector<96x768xf32> -> vector<96x768xf32>
    %c0_3 = arith.constant 0 : index
    %c0_4 = arith.constant 0 : index
    %3 = vector.load %arg2[%c0_3, %c0_4] : memref<96x140xbf16, #tpu.memory_space<vmem>>, vector<96x140xbf16>
    %c0_5 = arith.constant 0 : index
    %c0_6 = arith.constant 0 : index
    %4 = vector.load %arg3[%c0_5, %c0_6] : memref<140x768xbf16, #tpu.memory_space<vmem>>, vector<140x768xbf16>
    %cst_7 = arith.constant dense<0.000000e+00> : vector<96x768xf32>
    %5 = tpu.matmul %3, %4, %cst_7 {dimension_numbers = #tpu.dot_dimension_numbers<[1], [0], [0], [1], [0, 0, 1, 1], [], []>} : vector<96x140xbf16>, vector<140x768xbf16>, vector<96x768xf32> -> vector<96x768xf32>
    %6 = vector.extract_strided_slice %2 {offsets = [0, 0], sizes = [96, 384], strides = [1, 1]} : vector<96x768xf32> to vector<96x384xf32>
    %7 = vector.extract_strided_slice %2 {offsets = [0, 384], sizes = [96, 384], strides = [1, 1]} : vector<96x768xf32> to vector<96x384xf32>
    %8 = arith.maximumf %6, %7 : vector<96x384xf32>
    %9 = vector.extract_strided_slice %5 {offsets = [0, 0], sizes = [96, 384], strides = [1, 1]} : vector<96x768xf32> to vector<96x384xf32>
    %10 = vector.extract_strided_slice %5 {offsets = [0, 384], sizes = [96, 384], strides = [1, 1]} : vector<96x768xf32> to vector<96x384xf32>
    %11 = arith.maximumf %9, %10 : vector<96x384xf32>
    %12 = arith.maximumf %8, %11 : vector<96x384xf32>
    %c0_8 = arith.constant 0 : index
    %c0_9 = arith.constant 0 : index
    %13 = vector.load %arg4[%c0_8, %c0_9] : memref<1x384xf32, #tpu.memory_space<vmem>>, vector<1x384xf32>
    %14 = vector.broadcast %13 : vector<1x384xf32> to vector<96x384xf32>
    %15 = arith.addf %12, %14 : vector<96x384xf32>
    %cst_10 = arith.constant 0.000000e+00 : f32
    %16 = vector.broadcast %cst_10 : f32 to vector<96x384xf32>
    %17 = arith.maximumf %15, %16 : vector<96x384xf32>
    %18 = arith.truncf %17 : vector<96x384xf32> to vector<96x384xbf16>
    %c0_11 = arith.constant 0 : index
    %c0_12 = arith.constant 0 : index
    %19 = vector.load %arg5[%c0_11, %c0_12] : memref<96x384xbf16, #tpu.memory_space<vmem>>, vector<96x384xbf16>
    tpu.vector_store %arg5[%c0_11, %c0_12], %18 {strides = array<i32>} : memref<96x384xbf16, #tpu.memory_space<vmem>>, vector<96x384xbf16>,
    return
  }
  func.func @transform_0(%arg0: i32) -> (i32, i32) {
    %c0_i32 = arith.constant 0 : i32
    %c0_i32_0 = arith.constant 0 : i32
    return %arg0, %c0_i32 : i32, i32
  }
  func.func @transform_1(%arg0: i32) -> (i32, i32) {
    %c0_i32 = arith.constant 0 : i32
    %c0_i32_0 = arith.constant 0 : i32
    return %arg0, %c0_i32 : i32, i32
  }
  func.func @transform_2(%arg0: i32) -> (i32, i32) {
    %c0_i32 = arith.constant 0 : i32
    %c0_i32_0 = arith.constant 0 : i32
    %c0_i32_1 = arith.constant 0 : i32
    return %c0_i32, %c0_i32_0 : i32, i32
  }
  func.func @transform_3(%arg0: i32) -> (i32, i32) {
    %c0_i32 = arith.constant 0 : i32
    %c0_i32_0 = arith.constant 0 : i32
    %c0_i32_1 = arith.constant 0 : i32
    return %c0_i32, %c0_i32_0 : i32, i32
  }
  func.func @transform_4(%arg0: i32) -> (i32, i32) {
    %c0_i32 = arith.constant 0 : i32
    %c0_i32_0 = arith.constant 0 : i32
    return %arg0, %c0_i32 : i32, i32
  }
}

module attributes {stable_mosaic.version = 11 : i64} {
  func.func @mlp_kernel(%arg0: i32, %arg1: memref<8x4608xbf16, #tpu.memory_space<vmem>>, %arg2: memref<4608x32xbf16, #tpu.memory_space<vmem>>, %arg3: memref<1x32xf32, #tpu.memory_space<vmem>>, %arg4: memref<32x2xf32, #tpu.memory_space<vmem>>, %arg5: memref<1x2xf32, #tpu.memory_space<vmem>>, %arg6: memref<8x2xf32, #tpu.memory_space<vmem>>) attributes {dimension_semantics = [#tpu.dimension_semantics<parallel>], iteration_bounds = array<i64: 1>, scalar_prefetch = 0 : i64, scratch_operands = 0 : i64, tpu.core_type = #tpu.core_type<tc>, window_params = [{transform_indices = @transform_0, window_bounds = array<i64: 8, 4608>}, {pipeline_mode = #tpu.pipeline_mode<synchronous>, transform_indices = @transform_1, window_bounds = array<i64: 4608, 32>}, {pipeline_mode = #tpu.pipeline_mode<synchronous>, transform_indices = @transform_2, window_bounds = array<i64: 1, 32>}, {pipeline_mode = #tpu.pipeline_mode<synchronous>, transform_indices = @transform_3, window_bounds = array<i64: 32, 2>}, {pipeline_mode = #tpu.pipeline_mode<synchronous>, transform_indices = @transform_4, window_bounds = array<i64: 1, 2>}, {transform_indices = @transform_5, window_bounds = array<i64: 8, 2>}]} {
    %c0 = arith.constant 0 : index
    %c0_0 = arith.constant 0 : index
    %0 = vector.load %arg1[%c0, %c0_0] : memref<8x4608xbf16, #tpu.memory_space<vmem>>, vector<8x4608xbf16>
    %c0_1 = arith.constant 0 : index
    %c0_2 = arith.constant 0 : index
    %1 = vector.load %arg2[%c0_1, %c0_2] : memref<4608x32xbf16, #tpu.memory_space<vmem>>, vector<4608x32xbf16>
    %cst = arith.constant dense<0.000000e+00> : vector<8x32xf32>
    %2 = tpu.matmul %0, %1, %cst {dimension_numbers = #tpu.dot_dimension_numbers<[1], [0], [0], [1], [0, 0, 1, 1], [], []>} : vector<8x4608xbf16>, vector<4608x32xbf16>, vector<8x32xf32> -> vector<8x32xf32>
    %c0_3 = arith.constant 0 : index
    %c0_4 = arith.constant 0 : index
    %3 = vector.load %arg3[%c0_3, %c0_4] : memref<1x32xf32, #tpu.memory_space<vmem>>, vector<1x32xf32>
    %4 = vector.broadcast %3 : vector<1x32xf32> to vector<8x32xf32>
    %5 = arith.addf %2, %4 : vector<8x32xf32>
    %cst_5 = arith.constant 0.000000e+00 : f32
    %6 = vector.broadcast %cst_5 : f32 to vector<8x32xf32>
    %7 = arith.maximumf %5, %6 : vector<8x32xf32>
    %c0_6 = arith.constant 0 : index
    %c0_7 = arith.constant 0 : index
    %8 = vector.load %arg4[%c0_6, %c0_7] : memref<32x2xf32, #tpu.memory_space<vmem>>, vector<32x2xf32>
    %cst_8 = arith.constant dense<0.000000e+00> : vector<8x2xf32>
    %9 = tpu.matmul %7, %8, %cst_8 {dimension_numbers = #tpu.dot_dimension_numbers<[1], [0], [0], [1], [0, 0, 1, 1], [], []>} : vector<8x32xf32>, vector<32x2xf32>, vector<8x2xf32> -> vector<8x2xf32>
    %c0_9 = arith.constant 0 : index
    %c0_10 = arith.constant 0 : index
    %10 = vector.load %arg5[%c0_9, %c0_10] : memref<1x2xf32, #tpu.memory_space<vmem>>, vector<1x2xf32>
    %11 = vector.broadcast %10 : vector<1x2xf32> to vector<8x2xf32>
    %12 = arith.addf %9, %11 : vector<8x2xf32>
    %13 = arith.negf %12 : vector<8x2xf32>
    %14 = math.exp %13 : vector<8x2xf32>
    %cst_11 = arith.constant 1.000000e+00 : f32
    %15 = vector.broadcast %cst_11 : f32 to vector<8x2xf32>
    %16 = arith.addf %15, %14 : vector<8x2xf32>
    %17 = arith.divf %15, %16 : vector<8x2xf32>
    %c0_12 = arith.constant 0 : index
    %c0_13 = arith.constant 0 : index
    %18 = vector.load %arg6[%c0_12, %c0_13] : memref<8x2xf32, #tpu.memory_space<vmem>>, vector<8x2xf32>
    tpu.vector_store %arg6[%c0_12, %c0_13], %17 {strides = array<i32>} : memref<8x2xf32, #tpu.memory_space<vmem>>, vector<8x2xf32>,
    return
  }
  func.func @transform_0(%arg0: i32) -> (i32, i32) {
    %c0_i32 = arith.constant 0 : i32
    %c0_i32_0 = arith.constant 0 : i32
    return %arg0, %c0_i32 : i32, i32
  }
  func.func @transform_1(%arg0: i32) -> (i32, i32) {
    %c0_i32 = arith.constant 0 : i32
    %c0_i32_0 = arith.constant 0 : i32
    %c0_i32_1 = arith.constant 0 : i32
    return %c0_i32, %c0_i32_0 : i32, i32
  }
  func.func @transform_2(%arg0: i32) -> (i32, i32) {
    %c0_i32 = arith.constant 0 : i32
    %c0_i32_0 = arith.constant 0 : i32
    %c0_i32_1 = arith.constant 0 : i32
    return %c0_i32, %c0_i32_0 : i32, i32
  }
  func.func @transform_3(%arg0: i32) -> (i32, i32) {
    %c0_i32 = arith.constant 0 : i32
    %c0_i32_0 = arith.constant 0 : i32
    %c0_i32_1 = arith.constant 0 : i32
    return %c0_i32, %c0_i32_0 : i32, i32
  }
  func.func @transform_4(%arg0: i32) -> (i32, i32) {
    %c0_i32 = arith.constant 0 : i32
    %c0_i32_0 = arith.constant 0 : i32
    %c0_i32_1 = arith.constant 0 : i32
    return %c0_i32, %c0_i32_0 : i32, i32
  }
  func.func @transform_5(%arg0: i32) -> (i32, i32) {
    %c0_i32 = arith.constant 0 : i32
    %c0_i32_0 = arith.constant 0 : i32
    return %arg0, %c0_i32 : i32, i32
  }
}

</mosaic_0001>

<llo_original>
// kernel: infix_classifier.2
$region0: #{infix_classifier.2}
  #allocation0 [shape = 'u32[]', space=smem, size = 0x4, offset = 0x4, fixed_abs, tag = 'smem constant byte address 0x4 - core index']
  #allocation1 [shape = 'u32[72,128]{1,0:T(1,128)}', space=vmem, size = 0x9000, scoped, tag = 'internal scratch']
  %s0 = inlined_call_operand.vmem [shape: bf16[96,140], index: 0, kind: input, shape index: {}]
  %s1 = inlined_call_operand.vmem [shape: bf16[96,140], index: 1, kind: input, shape index: {}]
  %s2 = inlined_call_operand.vmem [shape: bf16[140,768], index: 2, kind: input, shape index: {}]
  %s3 = inlined_call_operand.vmem [shape: f32[1,384], index: 3, kind: input, shape index: {}]
  %s4 = inlined_call_operand.vmem [shape: bf16[96,384], index: 4, kind: output, shape index: {}]
  %s5 = sld [smem:[#allocation0]]
  $region26: #{infix_classifier.2} parent=0
    _
  %s7 = ssub.s32 1, %s5
  %s8 = scalar_select 0, %s7, %s5
  // Predicated region
  $region2: #{infix_classifier.2} parent=0 // pred_check
    _
  $region3: #{infix_classifier.2} parent=0 // pred_check_branch
    %10 = sbr.rel (0) target = $region5
  $region4: #{infix_classifier.2} parent=0 // pred_region
    _
  $region5: #{infix_classifier.2} parent=0 // pred_fallthru
    _
  // Predicated region
  $region6: #{infix_classifier.2} parent=0 // pred_check
    _
  $region7: #{infix_classifier.2} parent=0 // pred_check_branch
    %12 = sbr.rel (0) target = $region9
  $region8: #{infix_classifier.2} parent=0 // pred_region
    _
  $region9: #{infix_classifier.2} parent=0 // pred_fallthru
    _
  // Predicated region
  $region10: #{infix_classifier.2} parent=0 // pred_check
    _
  $region11: #{infix_classifier.2} parent=0 // pred_check_branch
    %14 = sbr.rel (0) target = $region13
  $region12: #{infix_classifier.2} parent=0 // pred_region
    _
  $region13: #{infix_classifier.2} parent=0 // pred_fallthru
    _
  // Predicated region
  $region14: #{infix_classifier.2} parent=0 // pred_check
    _
  $region15: #{infix_classifier.2} parent=0 // pred_check_branch
    %16 = sbr.rel (0) target = $region17
  $region16: #{infix_classifier.2} parent=0 // pred_region
    _
  $region17: #{infix_classifier.2} parent=0 // pred_fallthru
    _
  %v18 = vld [vmem:[%s0] sm:$0xff]
  %v19 = vld [vmem:[%s0 + $0x8] sm:$0xff]
  %v20 = vld [vmem:[%s0 + $0x10] sm:$0xff]
  %v21 = vld [vmem:[%s0 + $0x18] sm:$0xff]
  %v22 = vld [vmem:[%s0 + $0x20] sm:$0xff]
  %v23 = vld [vmem:[%s0 + $0x28] sm:$0xff]
  %v24 = vld [vmem:[%s0 + $0x30] sm:$0xff]
  %v25 = vld [vmem:[%s0 + $0x38] sm:$0xff]
  %v26 = vld [vmem:[%s0 + $0x40] sm:$0xff]
  %v27 = vld [vmem:[%s0 + $0x48] sm:$0xff]
  %v28 = vld [vmem:[%s0 + $0x50] sm:$0xff]
  %v29 = vld [vmem:[%s0 + $0x58] sm:$0xff]
  %v30 = vld [vmem:[%s2] sm:$0xff]
  %v31 = vld [vmem:[%s2 + $0x8] sm:$0xff]
  %v32 = vld [vmem:[%s2 + $0x10] sm:$0xff]
  %v33 = vld [vmem:[%s2 + $0x18] sm:$0xff]
  %v34 = vld [vmem:[%s2 + $0x20] sm:$0xff]
  %v35 = vld [vmem:[%s2 + $0x28] sm:$0xff]
  %v36 = vld [vmem:[%s2 + $0x30] sm:$0xff]
  %v37 = vld [vmem:[%s2 + $0x38] sm:$0xff]
  %v38 = vld [vmem:[%s2 + $0x40] sm:$0xff]
  %v39 = vld [vmem:[%s2 + $0x48] sm:$0xff]
  %v40 = vld [vmem:[%s2 + $0x50] sm:$0xff]
  %v41 = vld [vmem:[%s2 + $0x58] sm:$0xff]
  %v42 = vld [vmem:[%s2 + $0x60] sm:$0xff]
  %v43 = vld [vmem:[%s2 + $0x68] sm:$0xff]
  %v44 = vld [vmem:[%s2 + $0x70] sm:$0xff]
  %v45 = vld [vmem:[%s2 + $0x78] sm:$0xff]
  %v46 = vld [vmem:[%s2 + $0x80] sm:$0xff]
  %v47 = vld [vmem:[%s2 + $0x88] sm:$0xff]
  %v48 = vld [vmem:[%s2 + $0x90] sm:$0xff]
  %v49 = vld [vmem:[%s2 + $0x98] sm:$0xff]
  %v50 = vld [vmem:[%s2 + $0xa0] sm:$0xff]
  %v51 = vld [vmem:[%s2 + $0xa8] sm:$0xff]
  %v52 = vld [vmem:[%s2 + $0xb0] sm:$0xff]
  %v53 = vld [vmem:[%s2 + $0xb8] sm:$0xff]
  %v54 = vld [vmem:[%s2 + $0xc0] sm:$0xff]
  %v55 = vld [vmem:[%s2 + $0xc8] sm:$0xff]
  %v56 = vld [vmem:[%s2 + $0xd0] sm:$0xff]
  %v57 = vld [vmem:[%s2 + $0xd8] sm:$0xff]
  %v58 = vld [vmem:[%s2 + $0xe0] sm:$0xff]
  %v59 = vld [vmem:[%s2 + $0xe8] sm:$0xff]
  %v60 = vld [vmem:[%s2 + $0xf0] sm:$0xff]
  %v61 = vld [vmem:[%s2 + $0xf8] sm:$0xff]
  %v62 = vld [vmem:[%s2 + $0x100] sm:$0xff]
  %v63 = vld [vmem:[%s2 + $0x108] sm:$0xff]
  %v64 = vld [vmem:[%s2 + $0x110] sm:$0xff]
  %v65 = vld [vmem:[%s2 + $0x118] sm:$0xff]
  %v66 = vld [vmem:[%s2 + $0x120] sm:$0xff]
  %v67 = vld [vmem:[%s2 + $0x128] sm:$0xff]
  %v68 = vld [vmem:[%s2 + $0x130] sm:$0xff]
  %v69 = vld [vmem:[%s2 + $0x138] sm:$0xff]
  %v70 = vld [vmem:[%s2 + $0x140] sm:$0xff]
  %v71 = vld [vmem:[%s2 + $0x148] sm:$0xff]
  %v72 = vld [vmem:[%s2 + $0x150] sm:$0xff]
  %v73 = vld [vmem:[%s2 + $0x158] sm:$0xff]
  %v74 = vld [vmem:[%s2 + $0x160] sm:$0xff]
  %v75 = vld [vmem:[%s2 + $0x168] sm:$0xff]
  %v76 = vld [vmem:[%s2 + $0x170] sm:$0xff]
  %v77 = vld [vmem:[%s2 + $0x178] sm:$0xff]
  %v78 = vld [vmem:[%s2 + $0x180] sm:$0xff]
  %v79 = vld [vmem:[%s2 + $0x188] sm:$0xff]
  %v80 = vld [vmem:[%s2 + $0x190] sm:$0xff]
  %v81 = vld [vmem:[%s2 + $0x198] sm:$0x33]
  %v82 = vld [vmem:[%s2 + $0x1a0] sm:$0x33]
  %v83 = vld [vmem:[%s2 + $0x1a8] sm:$0x33]
  %v96 = vunpack.c.l.b16 %v18
  %v97 = vunpack.c.h.b16 %v18
  %v98 = vunpack.c.l.b16 %v19
  %v99 = vunpack.c.h.b16 %v19
  %v100 = vunpack.c.l.b16 %v20
  %v101 = vunpack.c.h.b16 %v20
  %v102 = vunpack.c.l.b16 %v21
  %v103 = vunpack.c.h.b16 %v21
  %v104 = vunpack.c.l.b16 %v22
  %v105 = vunpack.c.h.b16 %v22
  %v106 = vunpack.c.l.b16 %v23
  %v107 = vunpack.c.h.b16 %v23
  %v108 = vunpack.c.l.b16 %v24
  %v109 = vunpack.c.h.b16 %v24
  %v110 = vunpack.c.l.b16 %v25
  %v111 = vunpack.c.h.b16 %v25
  %v112 = vunpack.c.l.b16 %v26
  %v113 = vunpack.c.h.b16 %v26
  %v114 = vunpack.c.l.b16 %v27
  %v115 = vunpack.c.h.b16 %v27
  %v116 = vunpack.c.l.b16 %v28
  %v117 = vunpack.c.h.b16 %v28
  %v118 = vunpack.c.l.b16 %v29
  %v119 = vunpack.c.h.b16 %v29
  %v120 = vpack.c.b16 %v98, %v96
  %v121 = vpack.c.b16 %v99, %v97
  %v122 = vpack.c.b16 %v102, %v100
  %v123 = vpack.c.b16 %v103, %v101
  %v124 = vpack.c.b16 %v106, %v104
  %v125 = vpack.c.b16 %v107, %v105
  %v126 = vpack.c.b16 %v110, %v108
  %v127 = vpack.c.b16 %v111, %v109
  %v128 = vpack.c.b16 %v114, %v112
  %v129 = vpack.c.b16 %v115, %v113
  %v130 = vpack.c.b16 %v118, %v116
  %v131 = vpack.c.b16 %v119, %v117
  %v192 = vunpack.c.l.b16 %v30
  %v193 = vunpack.c.h.b16 %v30
  %v194 = vunpack.c.l.b16 %v31
  %v195 = vunpack.c.h.b16 %v31
  %v196 = vunpack.c.l.b16 %v32
  %v197 = vunpack.c.h.b16 %v32
  %v198 = vunpack.c.l.b16 %v33
  %v199 = vunpack.c.h.b16 %v33
  %v200 = vunpack.c.l.b16 %v34
  %v201 = vunpack.c.h.b16 %v34
  %v202 = vunpack.c.l.b16 %v35
  %v203 = vunpack.c.h.b16 %v35
  %v204 = vunpack.c.l.b16 %v36
  %v205 = vunpack.c.h.b16 %v36
  %v206 = vunpack.c.l.b16 %v37
  %v207 = vunpack.c.h.b16 %v37
  %v208 = vunpack.c.l.b16 %v38
  %v209 = vunpack.c.h.b16 %v38
  %v210 = vunpack.c.l.b16 %v39
  %v211 = vunpack.c.h.b16 %v39
  %v212 = vunpack.c.l.b16 %v40
  %v213 = vunpack.c.h.b16 %v40
  %v214 = vunpack.c.l.b16 %v41
  %v215 = vunpack.c.h.b16 %v41
  %v216 = vunpack.c.l.b16 %v42
  %v217 = vunpack.c.h.b16 %v42
  %v218 = vunpack.c.l.b16 %v43
  %v219 = vunpack.c.h.b16 %v43
  %v220 = vunpack.c.l.b16 %v44
  %v221 = vunpack.c.h.b16 %v44
  %v222 = vunpack.c.l.b16 %v45
  %v223 = vunpack.c.h.b16 %v45
  %v224 = vunpack.c.l.b16 %v46
  %v225 = vunpack.c.h.b16 %v46
  %v226 = vunpack.c.l.b16 %v47
  %v227 = vunpack.c.h.b16 %v47
  %v228 = vunpack.c.l.b16 %v48
  %v229 = vunpack.c.h.b16 %v48
  %v230 = vunpack.c.l.b16 %v49
  %v231 = vunpack.c.h.b16 %v49
  %v232 = vunpack.c.l.b16 %v50
  %v233 = vunpack.c.h.b16 %v50
  %v234 = vunpack.c.l.b16 %v51
  %v235 = vunpack.c.h.b16 %v51
  %v236 = vunpack.c.l.b16 %v52
  %v237 = vunpack.c.h.b16 %v52
  %v238 = vunpack.c.l.b16 %v53
  %v239 = vunpack.c.h.b16 %v53
  %v240 = vunpack.c.l.b16 %v54
  %v241 = vunpack.c.h.b16 %v54
  %v242 = vunpack.c.l.b16 %v55
  %v243 = vunpack.c.h.b16 %v55
  %v244 = vunpack.c.l.b16 %v56
  %v245 = vunpack.c.h.b16 %v56
  %v246 = vunpack.c.l.b16 %v57
  %v247 = vunpack.c.h.b16 %v57
  %v248 = vunpack.c.l.b16 %v58
  %v249 = vunpack.c.h.b16 %v58
  %v250 = vunpack.c.l.b16 %v59
  %v251 = vunpack.c.h.b16 %v59
  %v252 = vunpack.c.l.b16 %v60
  %v253 = vunpack.c.h.b16 %v60
  %v254 = vunpack.c.l.b16 %v61
  %v255 = vunpack.c.h.b16 %v61
  %v256 = vunpack.c.l.b16 %v62
  %v257 = vunpack.c.h.b16 %v62
  %v258 = vunpack.c.l.b16 %v63
  %v259 = vunpack.c.h.b16 %v63
  %v260 = vunpack.c.l.b16 %v64
  %v261 = vunpack.c.h.b16 %v64
  %v262 = vunpack.c.l.b16 %v65
  %v263 = vunpack.c.h.b16 %v65
  %v264 = vunpack.c.l.b16 %v66
  %v265 = vunpack.c.h.b16 %v66
  %v266 = vunpack.c.l.b16 %v67
  %v267 = vunpack.c.h.b16 %v67
  %v268 = vunpack.c.l.b16 %v68
  %v269 = vunpack.c.h.b16 %v68
  %v270 = vunpack.c.l.b16 %v69
  %v271 = vunpack.c.h.b16 %v69
  %v272 = vunpack.c.l.b16 %v70
  %v273 = vunpack.c.h.b16 %v70
  %v274 = vunpack.c.l.b16 %v71
  %v275 = vunpack.c.h.b16 %v71
  %v276 = vunpack.c.l.b16 %v72
  %v277 = vunpack.c.h.b16 %v72
  %v278 = vunpack.c.l.b16 %v73
  %v279 = vunpack.c.h.b16 %v73
  %v280 = vunpack.c.l.b16 %v74
  %v281 = vunpack.c.h.b16 %v74
  %v282 = vunpack.c.l.b16 %v75
  %v283 = vunpack.c.h.b16 %v75
  %v284 = vunpack.c.l.b16 %v76
  %v285 = vunpack.c.h.b16 %v76
  %v286 = vunpack.c.l.b16 %v77
  %v287 = vunpack.c.h.b16 %v77
  %v288 = vunpack.c.l.b16 %v78
  %v289 = vunpack.c.h.b16 %v78
  %v290 = vunpack.c.l.b16 %v79
  %v291 = vunpack.c.h.b16 %v79
  %v292 = vunpack.c.l.b16 %v80
  %v293 = vunpack.c.h.b16 %v80
  %v294 = vunpack.c.l.b16 %v81
  %v295 = vunpack.c.h.b16 %v81
  %v296 = vunpack.c.l.b16 %v82
  %v297 = vunpack.c.h.b16 %v82
  %v298 = vunpack.c.l.b16 %v83
  %v299 = vunpack.c.h.b16 %v83
  %v300 = vpack.c.b16 %v198, %v192
  %v301 = vpack.c.b16 %v199, %v193
  %v302 = vpack.c.b16 %v200, %v194
  %v303 = vpack.c.b16 %v201, %v195
  %v304 = vpack.c.b16 %v202, %v196
  %v305 = vpack.c.b16 %v203, %v197
  %v306 = vpack.c.b16 %v210, %v204
  %v307 = vpack.c.b16 %v211, %v205
  %v308 = vpack.c.b16 %v212, %v206
  %v309 = vpack.c.b16 %v213, %v207
  %v310 = vpack.c.b16 %v214, %v208
  %v311 = vpack.c.b16 %v215, %v209
  %v312 = vpack.c.b16 %v222, %v216
  %v313 = vpack.c.b16 %v223, %v217
  %v314 = vpack.c.b16 %v224, %v218
  %v315 = vpack.c.b16 %v225, %v219
  %v316 = vpack.c.b16 %v226, %v220
  %v317 = vpack.c.b16 %v227, %v221
  %v318 = vpack.c.b16 %v234, %v228
  %v319 = vpack.c.b16 %v235, %v229
  %v320 = vpack.c.b16 %v236, %v230
  %v321 = vpack.c.b16 %v237, %v231
  %v322 = vpack.c.b16 %v238, %v232
  %v323 = vpack.c.b16 %v239, %v233
  %v324 = vpack.c.b16 %v246, %v240
  %v325 = vpack.c.b16 %v247, %v241
  %v326 = vpack.c.b16 %v248, %v242
  %v327 = vpack.c.b16 %v249, %v243
  %v328 = vpack.c.b16 %v250, %v244
  %v329 = vpack.c.b16 %v251, %v245
  %v330 = vpack.c.b16 %v258, %v252
  %v331 = vpack.c.b16 %v259, %v253
  %v332 = vpack.c.b16 %v260, %v254
  %v333 = vpack.c.b16 %v261, %v255
  %v334 = vpack.c.b16 %v262, %v256
  %v335 = vpack.c.b16 %v263, %v257
  %v336 = vpack.c.b16 %v270, %v264
  %v337 = vpack.c.b16 %v271, %v265
  %v338 = vpack.c.b16 %v272, %v266
  %v339 = vpack.c.b16 %v273, %v267
  %v340 = vpack.c.b16 %v274, %v268
  %v341 = vpack.c.b16 %v275, %v269
  %v342 = vpack.c.b16 %v282, %v276
  %v343 = vpack.c.b16 %v283, %v277
  %v344 = vpack.c.b16 %v284, %v278
  %v345 = vpack.c.b16 %v285, %v279
  %v346 = vpack.c.b16 %v286, %v280
  %v347 = vpack.c.b16 %v287, %v281
  %v348 = vpack.c.b16 %v294, %v288
  %v349 = vpack.c.b16 %v295, %v289
  %v350 = vpack.c.b16 %v296, %v290
  %v351 = vpack.c.b16 %v297, %v291
  %v352 = vpack.c.b16 %v298, %v292
  %v353 = vpack.c.b16 %v299, %v293
  %vm402 = vcmask 97280
  %v404 = vsel %vm402, %v121, 0
  %v407 = vsel %vm402, %v123, 0
  %v410 = vsel %vm402, %v125, 0
  %v413 = vsel %vm402, %v127, 0
  %v416 = vsel %vm402, %v129, 0
  %v419 = vsel %vm402, %v131, 0
  %vm421 = vcmask 1045504
  %v423 = vsel %vm421, %v348, 0
  %v426 = vsel %vm421, %v349, 0
  %v429 = vsel %vm421, %v350, 0
  %v432 = vsel %vm421, %v351, 0
  %v435 = vsel %vm421, %v352, 0
  %v438 = vsel %vm421, %v353, 0
  %440 = vmatpush.bf16.msra.mxu0 %v342
  %441 = vmatpush.bf16.msra.mxu0 %v336
  %442 = vmatpush.bf16.msra.mxu0 %v330
  %443 = vmatpush.bf16.msra.mxu0 %v324
  %444 = vmatpush.bf16.msra.mxu0 %v318
  %445 = vmatpush.bf16.msra.mxu0 %v312
  %446 = vmatpush.bf16.msra.mxu0 %v306
  %447 = vmatpush.bf16.msra.mxu0 %v300
  %448 = vmatmul.bf16.gmra.mxu0 %v120
  %v449 = vpop.f32.mrf.mxu0
  %v450 = vadd.f32 0.0, %v449
  %v451 = vpop.f32.mrf.mxu0
  %v452 = vadd.f32 0.0, %v451
  %453 = vmatmul.bf16.gmra.mxu0 %v122
  %v454 = vpop.f32.mrf.mxu0
  %v455 = vadd.f32 0.0, %v454
  %v456 = vpop.f32.mrf.mxu0
  %v457 = vadd.f32 0.0, %v456
  %458 = vmatmul.bf16.gmra.mxu0 %v124
  %v459 = vpop.f32.mrf.mxu0
  %v460 = vadd.f32 0.0, %v459
  %v461 = vpop.f32.mrf.mxu0
  %v462 = vadd.f32 0.0, %v461
  %463 = vmatmul.bf16.gmra.mxu0 %v126
  %v464 = vpop.f32.mrf.mxu0
  %v465 = vadd.f32 0.0, %v464
  %v466 = vpop.f32.mrf.mxu0
  %v467 = vadd.f32 0.0, %v466
  %468 = vmatmul.bf16.gmra.mxu0 %v128
  %v469 = vpop.f32.mrf.mxu0
  %v470 = vadd.f32 0.0, %v469
  %v471 = vpop.f32.mrf.mxu0
  %v472 = vadd.f32 0.0, %v471
  %473 = vmatmul.bf16.gmra.mxu0 %v130
  %v474 = vpop.f32.mrf.mxu0
  %v475 = vadd.f32 0.0, %v474
  %v476 = vpop.f32.mrf.mxu0
  %v477 = vadd.f32 0.0, %v476
  %478 = vdwg.mxu0
  %479 = vmatpush.bf16.msra.mxu0 0
  %480 = vmatpush.bf16.msra.mxu0 0
  %481 = vmatpush.bf16.msra.mxu0 0
  %482 = vmatpush.bf16.msra.mxu0 0
  %483 = vmatpush.bf16.msra.mxu0 0
  %484 = vmatpush.bf16.msra.mxu0 0
  %485 = vmatpush.bf16.msra.mxu0 0
  %486 = vmatpush.bf16.msra.mxu0 %v423
  %487 = vmatmul.bf16.gmra.mxu0 %v404
  %v488 = vpop.f32.mrf.mxu0
  %v489 = vadd.f32 %v450, %v488
  %v490 = vpop.f32.mrf.mxu0
  %v491 = vadd.f32 %v452, %v490
  %492 = vmatmul.bf16.gmra.mxu0 %v407
  %v493 = vpop.f32.mrf.mxu0
  %v494 = vadd.f32 %v455, %v493
  %v495 = vpop.f32.mrf.mxu0
  %v496 = vadd.f32 %v457, %v495
  %497 = vmatmul.bf16.gmra.mxu0 %v410
  %v498 = vpop.f32.mrf.mxu0
  %v499 = vadd.f32 %v460, %v498
  %v500 = vpop.f32.mrf.mxu0
  %v501 = vadd.f32 %v462, %v500
  %502 = vmatmul.bf16.gmra.mxu0 %v413
  %v503 = vpop.f32.mrf.mxu0
  %v504 = vadd.f32 %v465, %v503
  %v505 = vpop.f32.mrf.mxu0
  %v506 = vadd.f32 %v467, %v505
  %507 = vmatmul.bf16.gmra.mxu0 %v416
  %v508 = vpop.f32.mrf.mxu0
  %v509 = vadd.f32 %v470, %v508
  %v510 = vpop.f32.mrf.mxu0
  %v511 = vadd.f32 %v472, %v510
  %512 = vmatmul.bf16.gmra.mxu0 %v419
  %v513 = vpop.f32.mrf.mxu0
  %v514 = vadd.f32 %v475, %v513
  %v515 = vpop.f32.mrf.mxu0
  %v516 = vadd.f32 %v477, %v515
  %517 = vdwg.mxu0
  %518 = vmatpush.bf16.msra.mxu0 %v343
  %519 = vmatpush.bf16.msra.mxu0 %v337
  %520 = vmatpush.bf16.msra.mxu0 %v331
  %521 = vmatpush.bf16.msra.mxu0 %v325
  %522 = vmatpush.bf16.msra.mxu0 %v319
  %523 = vmatpush.bf16.msra.mxu0 %v313
  %524 = vmatpush.bf16.msra.mxu0 %v307
  %525 = vmatpush.bf16.msra.mxu0 %v301
  %526 = vmatmul.bf16.gmra.mxu0 %v120
  %v527 = vpop.f32.mrf.mxu0
  %v528 = vadd.f32 0.0, %v527
  %v529 = vpop.f32.mrf.mxu0
  %v530 = vadd.f32 0.0, %v529
  %531 = vmatmul.bf16.gmra.mxu0 %v122
  %v532 = vpop.f32.mrf.mxu0
  %v533 = vadd.f32 0.0, %v532
  %v534 = vpop.f32.mrf.mxu0
  %v535 = vadd.f32 0.0, %v534
  %536 = vmatmul.bf16.gmra.mxu0 %v124
  %v537 = vpop.f32.mrf.mxu0
  %v538 = vadd.f32 0.0, %v537
  %v539 = vpop.f32.mrf.mxu0
  %v540 = vadd.f32 0.0, %v539
  %541 = vmatmul.bf16.gmra.mxu0 %v126
  %v542 = vpop.f32.mrf.mxu0
  %v543 = vadd.f32 0.0, %v542
  %v544 = vpop.f32.mrf.mxu0
  %v545 = vadd.f32 0.0, %v544
  %546 = vmatmul.bf16.gmra.mxu0 %v128
  %v547 = vpop.f32.mrf.mxu0
  %v548 = vadd.f32 0.0, %v547
  %v549 = vpop.f32.mrf.mxu0
  %v550 = vadd.f32 0.0, %v549
  %551 = vmatmul.bf16.gmra.mxu0 %v130
  %v552 = vpop.f32.mrf.mxu0
  %v553 = vadd.f32 0.0, %v552
  %v554 = vpop.f32.mrf.mxu0
  %v555 = vadd.f32 0.0, %v554
  %556 = vdwg.mxu0
  %557 = vmatpush.bf16.msra.mxu0 0
  %558 = vmatpush.bf16.msra.mxu0 0
  %559 = vmatpush.bf16.msra.mxu0 0
  %560 = vmatpush.bf16.msra.mxu0 0
  %561 = vmatpush.bf16.msra.mxu0 0
  %562 = vmatpush.bf16.msra.mxu0 0
  %563 = vmatpush.bf16.msra.mxu0 0
  %564 = vmatpush.bf16.msra.mxu0 %v426
  %565 = vmatmul.bf16.gmra.mxu0 %v404
  %v566 = vpop.f32.mrf.mxu0
  %v567 = vadd.f32 %v528, %v566
  %v568 = vpop.f32.mrf.mxu0
  %v569 = vadd.f32 %v530, %v568
  %570 = vmatmul.bf16.gmra.mxu0 %v407
  %v571 = vpop.f32.mrf.mxu0
  %v572 = vadd.f32 %v533, %v571
  %v573 = vpop.f32.mrf.mxu0
  %v574 = vadd.f32 %v535, %v573
  %575 = vmatmul.bf16.gmra.mxu0 %v410
  %v576 = vpop.f32.mrf.mxu0
  %v577 = vadd.f32 %v538, %v576
  %v578 = vpop.f32.mrf.mxu0
  %v579 = vadd.f32 %v540, %v578
  %580 = vmatmul.bf16.gmra.mxu0 %v413
  %v581 = vpop.f32.mrf.mxu0
  %v582 = vadd.f32 %v543, %v581
  %v583 = vpop.f32.mrf.mxu0
  %v584 = vadd.f32 %v545, %v583
  %585 = vmatmul.bf16.gmra.mxu0 %v416
  %v586 = vpop.f32.mrf.mxu0
  %v587 = vadd.f32 %v548, %v586
  %v588 = vpop.f32.mrf.mxu0
  %v589 = vadd.f32 %v550, %v588
  %590 = vmatmul.bf16.gmra.mxu0 %v419
  %v591 = vpop.f32.mrf.mxu0
  %v592 = vadd.f32 %v553, %v591
  %v593 = vpop.f32.mrf.mxu0
  %v594 = vadd.f32 %v555, %v593
  %595 = vdwg.mxu0
  %596 = vmatpush.bf16.msra.mxu0 %v344
  %597 = vmatpush.bf16.msra.mxu0 %v338
  %598 = vmatpush.bf16.msra.mxu0 %v332
  %599 = vmatpush.bf16.msra.mxu0 %v326
  %600 = vmatpush.bf16.msra.mxu0 %v320
  %601 = vmatpush.bf16.msra.mxu0 %v314
  %602 = vmatpush.bf16.msra.mxu0 %v308
  %603 = vmatpush.bf16.msra.mxu0 %v302
  %604 = vmatmul.bf16.gmra.mxu0 %v120
  %v605 = vpop.f32.mrf.mxu0
  %v606 = vadd.f32 0.0, %v605
  %v607 = vpop.f32.mrf.mxu0
  %v608 = vadd.f32 0.0, %v607
  %609 = vmatmul.bf16.gmra.mxu0 %v122
  %v610 = vpop.f32.mrf.mxu0
  %v611 = vadd.f32 0.0, %v610
  %v612 = vpop.f32.mrf.mxu0
  %v613 = vadd.f32 0.0, %v612
  %614 = vmatmul.bf16.gmra.mxu0 %v124
  %v615 = vpop.f32.mrf.mxu0
  %v616 = vadd.f32 0.0, %v615
  %v617 = vpop.f32.mrf.mxu0
  %v618 = vadd.f32 0.0, %v617
  %619 = vmatmul.bf16.gmra.mxu0 %v126
  %v620 = vpop.f32.mrf.mxu0
  %v621 = vadd.f32 0.0, %v620
  %v622 = vpop.f32.mrf.mxu0
  %v623 = vadd.f32 0.0, %v622
  %624 = vmatmul.bf16.gmra.mxu0 %v128
  %v625 = vpop.f32.mrf.mxu0
  %v626 = vadd.f32 0.0, %v625
  %v627 = vpop.f32.mrf.mxu0
  %v628 = vadd.f32 0.0, %v627
  %629 = vmatmul.bf16.gmra.mxu0 %v130
  %v630 = vpop.f32.mrf.mxu0
  %v631 = vadd.f32 0.0, %v630
  %v632 = vpop.f32.mrf.mxu0
  %v633 = vadd.f32 0.0, %v632
  %634 = vdwg.mxu0
  %635 = vmatpush.bf16.msra.mxu0 0
  %636 = vmatpush.bf16.msra.mxu0 0
  %637 = vmatpush.bf16.msra.mxu0 0
  %638 = vmatpush.bf16.msra.mxu0 0
  %639 = vmatpush.bf16.msra.mxu0 0
  %640 = vmatpush.bf16.msra.mxu0 0
  %641 = vmatpush.bf16.msra.mxu0 0
  %642 = vmatpush.bf16.msra.mxu0 %v429
  %643 = vmatmul.bf16.gmra.mxu0 %v404
  %v644 = vpop.f32.mrf.mxu0
  %v645 = vadd.f32 %v606, %v644
  %v646 = vpop.f32.mrf.mxu0
  %v647 = vadd.f32 %v608, %v646
  %648 = vmatmul.bf16.gmra.mxu0 %v407
  %v649 = vpop.f32.mrf.mxu0
  %v650 = vadd.f32 %v611, %v649
  %v651 = vpop.f32.mrf.mxu0
  %v652 = vadd.f32 %v613, %v651
  %653 = vmatmul.bf16.gmra.mxu0 %v410
  %v654 = vpop.f32.mrf.mxu0
  %v655 = vadd.f32 %v616, %v654
  %v656 = vpop.f32.mrf.mxu0
  %v657 = vadd.f32 %v618, %v656
  %658 = vmatmul.bf16.gmra.mxu0 %v413
  %v659 = vpop.f32.mrf.mxu0
  %v660 = vadd.f32 %v621, %v659
  %v661 = vpop.f32.mrf.mxu0
  %v662 = vadd.f32 %v623, %v661
  %663 = vmatmul.bf16.gmra.mxu0 %v416
  %v664 = vpop.f32.mrf.mxu0
  %v665 = vadd.f32 %v626, %v664
  %v666 = vpop.f32.mrf.mxu0
  %v667 = vadd.f32 %v628, %v666
  %668 = vmatmul.bf16.gmra.mxu0 %v419
  %v669 = vpop.f32.mrf.mxu0
  %v670 = vadd.f32 %v631, %v669
  %v671 = vpop.f32.mrf.mxu0
  %v672 = vadd.f32 %v633, %v671
  %673 = vdwg.mxu0
  %674 = vmatpush.bf16.msra.mxu0 %v345
  %675 = vmatpush.bf16.msra.mxu0 %v339
  %676 = vmatpush.bf16.msra.mxu0 %v333
  %677 = vmatpush.bf16.msra.mxu0 %v327
  %678 = vmatpush.bf16.msra.mxu0 %v321
  %679 = vmatpush.bf16.msra.mxu0 %v315
  %680 = vmatpush.bf16.msra.mxu0 %v309
  %681 = vmatpush.bf16.msra.mxu0 %v303
  %682 = vmatmul.bf16.gmra.mxu0 %v120
  %v683 = vpop.f32.mrf.mxu0
  %v684 = vadd.f32 0.0, %v683
  %v685 = vpop.f32.mrf.mxu0
  %v686 = vadd.f32 0.0, %v685
  %687 = vmatmul.bf16.gmra.mxu0 %v122
  %v688 = vpop.f32.mrf.mxu0
  %v689 = vadd.f32 0.0, %v688
  %v690 = vpop.f32.mrf.mxu0
  %v691 = vadd.f32 0.0, %v690
  %692 = vmatmul.bf16.gmra.mxu0 %v124
  %v693 = vpop.f32.mrf.mxu0
  %v694 = vadd.f32 0.0, %v693
  %v695 = vpop.f32.mrf.mxu0
  %v696 = vadd.f32 0.0, %v695
  %697 = vmatmul.bf16.gmra.mxu0 %v126
  %v698 = vpop.f32.mrf.mxu0
  %v699 = vadd.f32 0.0, %v698
  %v700 = vpop.f32.mrf.mxu0
  %v701 = vadd.f32 0.0, %v700
  %702 = vmatmul.bf16.gmra.mxu0 %v128
  %v703 = vpop.f32.mrf.mxu0
  %v704 = vadd.f32 0.0, %v703
  %v705 = vpop.f32.mrf.mxu0
  %v706 = vadd.f32 0.0, %v705
  %707 = vmatmul.bf16.gmra.mxu0 %v130
  %v708 = vpop.f32.mrf.mxu0
  %v709 = vadd.f32 0.0, %v708
  %v710 = vpop.f32.mrf.mxu0
  %v711 = vadd.f32 0.0, %v710
  %712 = vdwg.mxu0
  %713 = vmatpush.bf16.msra.mxu0 0
  %714 = vmatpush.bf16.msra.mxu0 0
  %715 = vmatpush.bf16.msra.mxu0 0
  %716 = vmatpush.bf16.msra.mxu0 0
  %717 = vmatpush.bf16.msra.mxu0 0
  %718 = vmatpush.bf16.msra.mxu0 0
  %719 = vmatpush.bf16.msra.mxu0 0
  %720 = vmatpush.bf16.msra.mxu0 %v432
  %721 = vmatmul.bf16.gmra.mxu0 %v404
  %v722 = vpop.f32.mrf.mxu0
  %v723 = vadd.f32 %v684, %v722
  %v724 = vpop.f32.mrf.mxu0
  %v725 = vadd.f32 %v686, %v724
  %726 = vmatmul.bf16.gmra.mxu0 %v407
  %v727 = vpop.f32.mrf.mxu0
  %v728 = vadd.f32 %v689, %v727
  %v729 = vpop.f32.mrf.mxu0
  %v730 = vadd.f32 %v691, %v729
  %731 = vmatmul.bf16.gmra.mxu0 %v410
  %v732 = vpop.f32.mrf.mxu0
  %v733 = vadd.f32 %v694, %v732
  %v734 = vpop.f32.mrf.mxu0
  %v735 = vadd.f32 %v696, %v734
  %736 = vmatmul.bf16.gmra.mxu0 %v413
  %v737 = vpop.f32.mrf.mxu0
  %v738 = vadd.f32 %v699, %v737
  %v739 = vpop.f32.mrf.mxu0
  %v740 = vadd.f32 %v701, %v739
  %741 = vmatmul.bf16.gmra.mxu0 %v416
  %v742 = vpop.f32.mrf.mxu0
  %v743 = vadd.f32 %v704, %v742
  %v744 = vpop.f32.mrf.mxu0
  %v745 = vadd.f32 %v706, %v744
  %746 = vmatmul.bf16.gmra.mxu0 %v419
  %v747 = vpop.f32.mrf.mxu0
  %v748 = vadd.f32 %v709, %v747
  %v749 = vpop.f32.mrf.mxu0
  %v750 = vadd.f32 %v711, %v749
  %751 = vdwg.mxu0
  %752 = vmatpush.bf16.msra.mxu0 %v346
  %753 = vmatpush.bf16.msra.mxu0 %v340
  %754 = vmatpush.bf16.msra.mxu0 %v334
  %755 = vmatpush.bf16.msra.mxu0 %v328
  %756 = vmatpush.bf16.msra.mxu0 %v322
  %757 = vmatpush.bf16.msra.mxu0 %v316
  %758 = vmatpush.bf16.msra.mxu0 %v310
  %759 = vmatpush.bf16.msra.mxu0 %v304
  %760 = vmatmul.bf16.gmra.mxu0 %v120
  %v761 = vpop.f32.mrf.mxu0
  %v762 = vadd.f32 0.0, %v761
  %v763 = vpop.f32.mrf.mxu0
  %v764 = vadd.f32 0.0, %v763
  %765 = vmatmul.bf16.gmra.mxu0 %v122
  %v766 = vpop.f32.mrf.mxu0
  %v767 = vadd.f32 0.0, %v766
  %v768 = vpop.f32.mrf.mxu0
  %v769 = vadd.f32 0.0, %v768
  %770 = vmatmul.bf16.gmra.mxu0 %v124
  %v771 = vpop.f32.mrf.mxu0
  %v772 = vadd.f32 0.0, %v771
  %v773 = vpop.f32.mrf.mxu0
  %v774 = vadd.f32 0.0, %v773
  %775 = vmatmul.bf16.gmra.mxu0 %v126
  %v776 = vpop.f32.mrf.mxu0
  %v777 = vadd.f32 0.0, %v776
  %v778 = vpop.f32.mrf.mxu0
  %v779 = vadd.f32 0.0, %v778
  %780 = vmatmul.bf16.gmra.mxu0 %v128
  %v781 = vpop.f32.mrf.mxu0
  %v782 = vadd.f32 0.0, %v781
  %v783 = vpop.f32.mrf.mxu0
  %v784 = vadd.f32 0.0, %v783
  %785 = vmatmul.bf16.gmra.mxu0 %v130
  %v786 = vpop.f32.mrf.mxu0
  %v787 = vadd.f32 0.0, %v786
  %v788 = vpop.f32.mrf.mxu0
  %v789 = vadd.f32 0.0, %v788
  %790 = vdwg.mxu0
  %791 = vmatpush.bf16.msra.mxu0 0
  %792 = vmatpush.bf16.msra.mxu0 0
  %793 = vmatpush.bf16.msra.mxu0 0
  %794 = vmatpush.bf16.msra.mxu0 0
  %795 = vmatpush.bf16.msra.mxu0 0
  %796 = vmatpush.bf16.msra.mxu0 0
  %797 = vmatpush.bf16.msra.mxu0 0
  %798 = vmatpush.bf16.msra.mxu0 %v435
  %799 = vmatmul.bf16.gmra.mxu0 %v404
  %v800 = vpop.f32.mrf.mxu0
  %v801 = vadd.f32 %v762, %v800
  %v802 = vpop.f32.mrf.mxu0
  %v803 = vadd.f32 %v764, %v802
  %804 = vmatmul.bf16.gmra.mxu0 %v407
  %v805 = vpop.f32.mrf.mxu0
  %v806 = vadd.f32 %v767, %v805
  %v807 = vpop.f32.mrf.mxu0
  %v808 = vadd.f32 %v769, %v807
  %809 = vmatmul.bf16.gmra.mxu0 %v410
  %v810 = vpop.f32.mrf.mxu0
  %v811 = vadd.f32 %v772, %v810
  %v812 = vpop.f32.mrf.mxu0
  %v813 = vadd.f32 %v774, %v812
  %814 = vmatmul.bf16.gmra.mxu0 %v413
  %v815 = vpop.f32.mrf.mxu0
  %v816 = vadd.f32 %v777, %v815
  %v817 = vpop.f32.mrf.mxu0
  %v818 = vadd.f32 %v779, %v817
  %819 = vmatmul.bf16.gmra.mxu0 %v416
  %v820 = vpop.f32.mrf.mxu0
  %v821 = vadd.f32 %v782, %v820
  %v822 = vpop.f32.mrf.mxu0
  %v823 = vadd.f32 %v784, %v822
  %824 = vmatmul.bf16.gmra.mxu0 %v419
  %v825 = vpop.f32.mrf.mxu0
  %v826 = vadd.f32 %v787, %v825
  %v827 = vpop.f32.mrf.mxu0
  %v828 = vadd.f32 %v789, %v827
  %829 = vdwg.mxu0
  %830 = vmatpush.bf16.msra.mxu0 %v347
  %831 = vmatpush.bf16.msra.mxu0 %v341
  %832 = vmatpush.bf16.msra.mxu0 %v335
  %833 = vmatpush.bf16.msra.mxu0 %v329
  %834 = vmatpush.bf16.msra.mxu0 %v323
  %835 = vmatpush.bf16.msra.mxu0 %v317
  %836 = vmatpush.bf16.msra.mxu0 %v311
  %837 = vmatpush.bf16.msra.mxu0 %v305
  %838 = vmatmul.bf16.gmra.mxu0 %v120
  %v839 = vpop.f32.mrf.mxu0
  %v840 = vadd.f32 0.0, %v839
  %v841 = vpop.f32.mrf.mxu0
  %v842 = vadd.f32 0.0, %v841
  %843 = vmatmul.bf16.gmra.mxu0 %v122
  %v844 = vpop.f32.mrf.mxu0
  %v845 = vadd.f32 0.0, %v844
  %v846 = vpop.f32.mrf.mxu0
  %v847 = vadd.f32 0.0, %v846
  %848 = vmatmul.bf16.gmra.mxu0 %v124
  %v849 = vpop.f32.mrf.mxu0
  %v850 = vadd.f32 0.0, %v849
  %v851 = vpop.f32.mrf.mxu0
  %v852 = vadd.f32 0.0, %v851
  %853 = vmatmul.bf16.gmra.mxu0 %v126
  %v854 = vpop.f32.mrf.mxu0
  %v855 = vadd.f32 0.0, %v854
  %v856 = vpop.f32.mrf.mxu0
  %v857 = vadd.f32 0.0, %v856
  %858 = vmatmul.bf16.gmra.mxu0 %v128
  %v859 = vpop.f32.mrf.mxu0
  %v860 = vadd.f32 0.0, %v859
  %v861 = vpop.f32.mrf.mxu0
  %v862 = vadd.f32 0.0, %v861
  %863 = vmatmul.bf16.gmra.mxu0 %v130
  %v864 = vpop.f32.mrf.mxu0
  %v865 = vadd.f32 0.0, %v864
  %v866 = vpop.f32.mrf.mxu0
  %v867 = vadd.f32 0.0, %v866
  %868 = vdwg.mxu0
  %869 = vmatpush.bf16.msra.mxu0 0
  %870 = vmatpush.bf16.msra.mxu0 0
  %871 = vmatpush.bf16.msra.mxu0 0
  %872 = vmatpush.bf16.msra.mxu0 0
  %873 = vmatpush.bf16.msra.mxu0 0
  %874 = vmatpush.bf16.msra.mxu0 0
  %875 = vmatpush.bf16.msra.mxu0 0
  %876 = vmatpush.bf16.msra.mxu0 %v438
  %877 = vmatmul.bf16.gmra.mxu0 %v404
  %v878 = vpop.f32.mrf.mxu0
  %v879 = vadd.f32 %v840, %v878
  %v880 = vpop.f32.mrf.mxu0
  %v881 = vadd.f32 %v842, %v880
  %882 = vmatmul.bf16.gmra.mxu0 %v407
  %v883 = vpop.f32.mrf.mxu0
  %v884 = vadd.f32 %v845, %v883
  %v885 = vpop.f32.mrf.mxu0
  %v886 = vadd.f32 %v847, %v885
  %887 = vmatmul.bf16.gmra.mxu0 %v410
  %v888 = vpop.f32.mrf.mxu0
  %v889 = vadd.f32 %v850, %v888
  %v890 = vpop.f32.mrf.mxu0
  %v891 = vadd.f32 %v852, %v890
  %892 = vmatmul.bf16.gmra.mxu0 %v413
  %v893 = vpop.f32.mrf.mxu0
  %v894 = vadd.f32 %v855, %v893
  %v895 = vpop.f32.mrf.mxu0
  %v896 = vadd.f32 %v857, %v895
  %897 = vmatmul.bf16.gmra.mxu0 %v416
  %v898 = vpop.f32.mrf.mxu0
  %v899 = vadd.f32 %v860, %v898
  %v900 = vpop.f32.mrf.mxu0
  %v901 = vadd.f32 %v862, %v900
  %902 = vmatmul.bf16.gmra.mxu0 %v419
  %v903 = vpop.f32.mrf.mxu0
  %v904 = vadd.f32 %v865, %v903
  %v905 = vpop.f32.mrf.mxu0
  %v906 = vadd.f32 %v867, %v905
  %907 = vdwg.mxu0
  %v908 = vld [vmem:[%s1] sm:$0xff]
  %v909 = vld [vmem:[%s1 + $0x8] sm:$0xff]
  %v910 = vld [vmem:[%s1 + $0x10] sm:$0xff]
  %v911 = vld [vmem:[%s1 + $0x18] sm:$0xff]
  %v912 = vld [vmem:[%s1 + $0x20] sm:$0xff]
  %v913 = vld [vmem:[%s1 + $0x28] sm:$0xff]
  %v914 = vld [vmem:[%s1 + $0x30] sm:$0xff]
  %v915 = vld [vmem:[%s1 + $0x38] sm:$0xff]
  %v916 = vld [vmem:[%s1 + $0x40] sm:$0xff]
  %v917 = vld [vmem:[%s1 + $0x48] sm:$0xff]
  %v918 = vld [vmem:[%s1 + $0x50] sm:$0xff]
  %v919 = vld [vmem:[%s1 + $0x58] sm:$0xff]
  %v932 = vunpack.c.l.b16 %v908
  %v933 = vunpack.c.h.b16 %v908
  %v934 = vunpack.c.l.b16 %v909
  %v935 = vunpack.c.h.b16 %v909
  %v936 = vunpack.c.l.b16 %v910
  %v937 = vunpack.c.h.b16 %v910
  %v938 = vunpack.c.l.b16 %v911
  %v939 = vunpack.c.h.b16 %v911
  %v940 = vunpack.c.l.b16 %v912
  %v941 = vunpack.c.h.b16 %v912
  %v942 = vunpack.c.l.b16 %v913
  %v943 = vunpack.c.h.b16 %v913
  %v944 = vunpack.c.l.b16 %v914
  %v945 = vunpack.c.h.b16 %v914
  %v946 = vunpack.c.l.b16 %v915
  %v947 = vunpack.c.h.b16 %v915
  %v948 = vunpack.c.l.b16 %v916
  %v949 = vunpack.c.h.b16 %v916
  %v950 = vunpack.c.l.b16 %v917
  %v951 = vunpack.c.h.b16 %v917
  %v952 = vunpack.c.l.b16 %v918
  %v953 = vunpack.c.h.b16 %v918
  %v954 = vunpack.c.l.b16 %v919
  %v955 = vunpack.c.h.b16 %v919
  %v956 = vpack.c.b16 %v934, %v932
  %v957 = vpack.c.b16 %v935, %v933
  %v958 = vpack.c.b16 %v938, %v936
  %v959 = vpack.c.b16 %v939, %v937
  %v960 = vpack.c.b16 %v942, %v940
  %v961 = vpack.c.b16 %v943, %v941
  %v962 = vpack.c.b16 %v946, %v944
  %v963 = vpack.c.b16 %v947, %v945
  %v964 = vpack.c.b16 %v950, %v948
  %v965 = vpack.c.b16 %v951, %v949
  %v966 = vpack.c.b16 %v954, %v952
  %v967 = vpack.c.b16 %v955, %v953
  %v975 = vsel %vm402, %v957, 0
  %v978 = vsel %vm402, %v959, 0
  %v981 = vsel %vm402, %v961, 0
  %v984 = vsel %vm402, %v963, 0
  %v987 = vsel %vm402, %v965, 0
  %v990 = vsel %vm402, %v967, 0
  %992 = vmatpush.bf16.msra.mxu0 %v342
  %993 = vmatpush.bf16.msra.mxu0 %v336
  %994 = vmatpush.bf16.msra.mxu0 %v330
  %995 = vmatpush.bf16.msra.mxu0 %v324
  %996 = vmatpush.bf16.msra.mxu0 %v318
  %997 = vmatpush.bf16.msra.mxu0 %v312
  %998 = vmatpush.bf16.msra.mxu0 %v306
  %999 = vmatpush.bf16.msra.mxu0 %v300
  %1000 = vmatmul.bf16.gmra.mxu0 %v956
  %v1001 = vpop.f32.mrf.mxu0
  %v1002 = vadd.f32 0.0, %v1001
  %v1003 = vpop.f32.mrf.mxu0
  %v1004 = vadd.f32 0.0, %v1003
  %1005 = vmatmul.bf16.gmra.mxu0 %v958
  %v1006 = vpop.f32.mrf.mxu0
  %v1007 = vadd.f32 0.0, %v1006
  %v1008 = vpop.f32.mrf.mxu0
  %v1009 = vadd.f32 0.0, %v1008
  %1010 = vmatmul.bf16.gmra.mxu0 %v960
  %v1011 = vpop.f32.mrf.mxu0
  %v1012 = vadd.f32 0.0, %v1011
  %v1013 = vpop.f32.mrf.mxu0
  %v1014 = vadd.f32 0.0, %v1013
  %1015 = vmatmul.bf16.gmra.mxu0 %v962
  %v1016 = vpop.f32.mrf.mxu0
  %v1017 = vadd.f32 0.0, %v1016
  %v1018 = vpop.f32.mrf.mxu0
  %v1019 = vadd.f32 0.0, %v1018
  %1020 = vmatmul.bf16.gmra.mxu0 %v964
  %v1021 = vpop.f32.mrf.mxu0
  %v1022 = vadd.f32 0.0, %v1021
  %v1023 = vpop.f32.mrf.mxu0
  %v1024 = vadd.f32 0.0, %v1023
  %1025 = vmatmul.bf16.gmra.mxu0 %v966
  %v1026 = vpop.f32.mrf.mxu0
  %v1027 = vadd.f32 0.0, %v1026
  %v1028 = vpop.f32.mrf.mxu0
  %v1029 = vadd.f32 0.0, %v1028
  %1030 = vdwg.mxu0
  %1031 = vmatpush.bf16.msra.mxu0 0
  %1032 = vmatpush.bf16.msra.mxu0 0
  %1033 = vmatpush.bf16.msra.mxu0 0
  %1034 = vmatpush.bf16.msra.mxu0 0
  %1035 = vmatpush.bf16.msra.mxu0 0
  %1036 = vmatpush.bf16.msra.mxu0 0
  %1037 = vmatpush.bf16.msra.mxu0 0
  %1038 = vmatpush.bf16.msra.mxu0 %v423
  %1039 = vmatmul.bf16.gmra.mxu0 %v975
  %v1040 = vpop.f32.mrf.mxu0
  %v1041 = vadd.f32 %v1002, %v1040
  %v1042 = vpop.f32.mrf.mxu0
  %v1043 = vadd.f32 %v1004, %v1042
  %1044 = vmatmul.bf16.gmra.mxu0 %v978
  %v1045 = vpop.f32.mrf.mxu0
  %v1046 = vadd.f32 %v1007, %v1045
  %v1047 = vpop.f32.mrf.mxu0
  %v1048 = vadd.f32 %v1009, %v1047
  %1049 = vmatmul.bf16.gmra.mxu0 %v981
  %v1050 = vpop.f32.mrf.mxu0
  %v1051 = vadd.f32 %v1012, %v1050
  %v1052 = vpop.f32.mrf.mxu0
  %v1053 = vadd.f32 %v1014, %v1052
  %1054 = vmatmul.bf16.gmra.mxu0 %v984
  %v1055 = vpop.f32.mrf.mxu0
  %v1056 = vadd.f32 %v1017, %v1055
  %v1057 = vpop.f32.mrf.mxu0
  %v1058 = vadd.f32 %v1019, %v1057
  %1059 = vmatmul.bf16.gmra.mxu0 %v987
  %v1060 = vpop.f32.mrf.mxu0
  %v1061 = vadd.f32 %v1022, %v1060
  %v1062 = vpop.f32.mrf.mxu0
  %v1063 = vadd.f32 %v1024, %v1062
  %1064 = vmatmul.bf16.gmra.mxu0 %v990
  %v1065 = vpop.f32.mrf.mxu0
  %v1066 = vadd.f32 %v1027, %v1065
  %v1067 = vpop.f32.mrf.mxu0
  %v1068 = vadd.f32 %v1029, %v1067
  %1069 = vdwg.mxu0
  %1070 = vmatpush.bf16.msra.mxu0 %v343
  %1071 = vmatpush.bf16.msra.mxu0 %v337
  %1072 = vmatpush.bf16.msra.mxu0 %v331
  %1073 = vmatpush.bf16.msra.mxu0 %v325
  %1074 = vmatpush.bf16.msra.mxu0 %v319
  %1075 = vmatpush.bf16.msra.mxu0 %v313
  %1076 = vmatpush.bf16.msra.mxu0 %v307
  %1077 = vmatpush.bf16.msra.mxu0 %v301
  %1078 = vmatmul.bf16.gmra.mxu0 %v956
  %v1079 = vpop.f32.mrf.mxu0
  %v1080 = vadd.f32 0.0, %v1079
  %v1081 = vpop.f32.mrf.mxu0
  %v1082 = vadd.f32 0.0, %v1081
  %1083 = vmatmul.bf16.gmra.mxu0 %v958
  %v1084 = vpop.f32.mrf.mxu0
  %v1085 = vadd.f32 0.0, %v1084
  %v1086 = vpop.f32.mrf.mxu0
  %v1087 = vadd.f32 0.0, %v1086
  %1088 = vmatmul.bf16.gmra.mxu0 %v960
  %v1089 = vpop.f32.mrf.mxu0
  %v1090 = vadd.f32 0.0, %v1089
  %v1091 = vpop.f32.mrf.mxu0
  %v1092 = vadd.f32 0.0, %v1091
  %1093 = vmatmul.bf16.gmra.mxu0 %v962
  %v1094 = vpop.f32.mrf.mxu0
  %v1095 = vadd.f32 0.0, %v1094
  %v1096 = vpop.f32.mrf.mxu0
  %v1097 = vadd.f32 0.0, %v1096
  %1098 = vmatmul.bf16.gmra.mxu0 %v964
  %v1099 = vpop.f32.mrf.mxu0
  %v1100 = vadd.f32 0.0, %v1099
  %v1101 = vpop.f32.mrf.mxu0
  %v1102 = vadd.f32 0.0, %v1101
  %1103 = vmatmul.bf16.gmra.mxu0 %v966
  %v1104 = vpop.f32.mrf.mxu0
  %v1105 = vadd.f32 0.0, %v1104
  %v1106 = vpop.f32.mrf.mxu0
  %v1107 = vadd.f32 0.0, %v1106
  %1108 = vdwg.mxu0
  %1109 = vmatpush.bf16.msra.mxu0 0
  %1110 = vmatpush.bf16.msra.mxu0 0
  %1111 = vmatpush.bf16.msra.mxu0 0
  %1112 = vmatpush.bf16.msra.mxu0 0
  %1113 = vmatpush.bf16.msra.mxu0 0
  %1114 = vmatpush.bf16.msra.mxu0 0
  %1115 = vmatpush.bf16.msra.mxu0 0
  %1116 = vmatpush.bf16.msra.mxu0 %v426
  %1117 = vmatmul.bf16.gmra.mxu0 %v975
  %v1118 = vpop.f32.mrf.mxu0
  %v1119 = vadd.f32 %v1080, %v1118
  %v1120 = vpop.f32.mrf.mxu0
  %v1121 = vadd.f32 %v1082, %v1120
  %1122 = vmatmul.bf16.gmra.mxu0 %v978
  %v1123 = vpop.f32.mrf.mxu0
  %v1124 = vadd.f32 %v1085, %v1123
  %v1125 = vpop.f32.mrf.mxu0
  %v1126 = vadd.f32 %v1087, %v1125
  %1127 = vmatmul.bf16.gmra.mxu0 %v981
  %v1128 = vpop.f32.mrf.mxu0
  %v1129 = vadd.f32 %v1090, %v1128
  %v1130 = vpop.f32.mrf.mxu0
  %v1131 = vadd.f32 %v1092, %v1130
  %1132 = vmatmul.bf16.gmra.mxu0 %v984
  %v1133 = vpop.f32.mrf.mxu0
  %v1134 = vadd.f32 %v1095, %v1133
  %v1135 = vpop.f32.mrf.mxu0
  %v1136 = vadd.f32 %v1097, %v1135
  %1137 = vmatmul.bf16.gmra.mxu0 %v987
  %v1138 = vpop.f32.mrf.mxu0
  %v1139 = vadd.f32 %v1100, %v1138
  %v1140 = vpop.f32.mrf.mxu0
  %v1141 = vadd.f32 %v1102, %v1140
  %1142 = vmatmul.bf16.gmra.mxu0 %v990
  %v1143 = vpop.f32.mrf.mxu0
  %v1144 = vadd.f32 %v1105, %v1143
  %v1145 = vpop.f32.mrf.mxu0
  %v1146 = vadd.f32 %v1107, %v1145
  %1147 = vdwg.mxu0
  %1148 = vmatpush.bf16.msra.mxu0 %v344
  %1149 = vmatpush.bf16.msra.mxu0 %v338
  %1150 = vmatpush.bf16.msra.mxu0 %v332
  %1151 = vmatpush.bf16.msra.mxu0 %v326
  %1152 = vmatpush.bf16.msra.mxu0 %v320
  %1153 = vmatpush.bf16.msra.mxu0 %v314
  %1154 = vmatpush.bf16.msra.mxu0 %v308
  %1155 = vmatpush.bf16.msra.mxu0 %v302
  %1156 = vmatmul.bf16.gmra.mxu0 %v956
  %v1157 = vpop.f32.mrf.mxu0
  %v1158 = vadd.f32 0.0, %v1157
  %v1159 = vpop.f32.mrf.mxu0
  %v1160 = vadd.f32 0.0, %v1159
  %1161 = vmatmul.bf16.gmra.mxu0 %v958
  %v1162 = vpop.f32.mrf.mxu0
  %v1163 = vadd.f32 0.0, %v1162
  %v1164 = vpop.f32.mrf.mxu0
  %v1165 = vadd.f32 0.0, %v1164
  %1166 = vmatmul.bf16.gmra.mxu0 %v960
  %v1167 = vpop.f32.mrf.mxu0
  %v1168 = vadd.f32 0.0, %v1167
  %v1169 = vpop.f32.mrf.mxu0
  %v1170 = vadd.f32 0.0, %v1169
  %1171 = vmatmul.bf16.gmra.mxu0 %v962
  %v1172 = vpop.f32.mrf.mxu0
  %v1173 = vadd.f32 0.0, %v1172
  %v1174 = vpop.f32.mrf.mxu0
  %v1175 = vadd.f32 0.0, %v1174
  %1176 = vmatmul.bf16.gmra.mxu0 %v964
  %v1177 = vpop.f32.mrf.mxu0
  %v1178 = vadd.f32 0.0, %v1177
  %v1179 = vpop.f32.mrf.mxu0
  %v1180 = vadd.f32 0.0, %v1179
  %1181 = vmatmul.bf16.gmra.mxu0 %v966
  %v1182 = vpop.f32.mrf.mxu0
  %v1183 = vadd.f32 0.0, %v1182
  %v1184 = vpop.f32.mrf.mxu0
  %v1185 = vadd.f32 0.0, %v1184
  %1186 = vdwg.mxu0
  %1187 = vmatpush.bf16.msra.mxu0 0
  %1188 = vmatpush.bf16.msra.mxu0 0
  %1189 = vmatpush.bf16.msra.mxu0 0
  %1190 = vmatpush.bf16.msra.mxu0 0
  %1191 = vmatpush.bf16.msra.mxu0 0
  %1192 = vmatpush.bf16.msra.mxu0 0
  %1193 = vmatpush.bf16.msra.mxu0 0
  %1194 = vmatpush.bf16.msra.mxu0 %v429
  %1195 = vmatmul.bf16.gmra.mxu0 %v975
  %v1196 = vpop.f32.mrf.mxu0
  %v1197 = vadd.f32 %v1158, %v1196
  %v1198 = vpop.f32.mrf.mxu0
  %v1199 = vadd.f32 %v1160, %v1198
  %1200 = vmatmul.bf16.gmra.mxu0 %v978
  %v1201 = vpop.f32.mrf.mxu0
  %v1202 = vadd.f32 %v1163, %v1201
  %v1203 = vpop.f32.mrf.mxu0
  %v1204 = vadd.f32 %v1165, %v1203
  %1205 = vmatmul.bf16.gmra.mxu0 %v981
  %v1206 = vpop.f32.mrf.mxu0
  %v1207 = vadd.f32 %v1168, %v1206
  %v1208 = vpop.f32.mrf.mxu0
  %v1209 = vadd.f32 %v1170, %v1208
  %1210 = vmatmul.bf16.gmra.mxu0 %v984
  %v1211 = vpop.f32.mrf.mxu0
  %v1212 = vadd.f32 %v1173, %v1211
  %v1213 = vpop.f32.mrf.mxu0
  %v1214 = vadd.f32 %v1175, %v1213
  %1215 = vmatmul.bf16.gmra.mxu0 %v987
  %v1216 = vpop.f32.mrf.mxu0
  %v1217 = vadd.f32 %v1178, %v1216
  %v1218 = vpop.f32.mrf.mxu0
  %v1219 = vadd.f32 %v1180, %v1218
  %1220 = vmatmul.bf16.gmra.mxu0 %v990
  %v1221 = vpop.f32.mrf.mxu0
  %v1222 = vadd.f32 %v1183, %v1221
  %v1223 = vpop.f32.mrf.mxu0
  %v1224 = vadd.f32 %v1185, %v1223
  %1225 = vdwg.mxu0
  %1226 = vmatpush.bf16.msra.mxu0 %v345
  %1227 = vmatpush.bf16.msra.mxu0 %v339
  %1228 = vmatpush.bf16.msra.mxu0 %v333
  %1229 = vmatpush.bf16.msra.mxu0 %v327
  %1230 = vmatpush.bf16.msra.mxu0 %v321
  %1231 = vmatpush.bf16.msra.mxu0 %v315
  %1232 = vmatpush.bf16.msra.mxu0 %v309
  %1233 = vmatpush.bf16.msra.mxu0 %v303
  %1234 = vmatmul.bf16.gmra.mxu0 %v956
  %v1235 = vpop.f32.mrf.mxu0
  %v1236 = vadd.f32 0.0, %v1235
  %v1237 = vpop.f32.mrf.mxu0
  %v1238 = vadd.f32 0.0, %v1237
  %1239 = vmatmul.bf16.gmra.mxu0 %v958
  %v1240 = vpop.f32.mrf.mxu0
  %v1241 = vadd.f32 0.0, %v1240
  %v1242 = vpop.f32.mrf.mxu0
  %v1243 = vadd.f32 0.0, %v1242
  %1244 = vmatmul.bf16.gmra.mxu0 %v960
  %v1245 = vpop.f32.mrf.mxu0
  %v1246 = vadd.f32 0.0, %v1245
  %v1247 = vpop.f32.mrf.mxu0
  %v1248 = vadd.f32 0.0, %v1247
  %1249 = vmatmul.bf16.gmra.mxu0 %v962
  %v1250 = vpop.f32.mrf.mxu0
  %v1251 = vadd.f32 0.0, %v1250
  %v1252 = vpop.f32.mrf.mxu0
  %v1253 = vadd.f32 0.0, %v1252
  %1254 = vmatmul.bf16.gmra.mxu0 %v964
  %v1255 = vpop.f32.mrf.mxu0
  %v1256 = vadd.f32 0.0, %v1255
  %v1257 = vpop.f32.mrf.mxu0
  %v1258 = vadd.f32 0.0, %v1257
  %1259 = vmatmul.bf16.gmra.mxu0 %v966
  %v1260 = vpop.f32.mrf.mxu0
  %v1261 = vadd.f32 0.0, %v1260
  %v1262 = vpop.f32.mrf.mxu0
  %v1263 = vadd.f32 0.0, %v1262
  %1264 = vdwg.mxu0
  %1265 = vmatpush.bf16.msra.mxu0 0
  %1266 = vmatpush.bf16.msra.mxu0 0
  %1267 = vmatpush.bf16.msra.mxu0 0
  %1268 = vmatpush.bf16.msra.mxu0 0
  %1269 = vmatpush.bf16.msra.mxu0 0
  %1270 = vmatpush.bf16.msra.mxu0 0
  %1271 = vmatpush.bf16.msra.mxu0 0
  %1272 = vmatpush.bf16.msra.mxu0 %v432
  %1273 = vmatmul.bf16.gmra.mxu0 %v975
  %v1274 = vpop.f32.mrf.mxu0
  %v1275 = vadd.f32 %v1236, %v1274
  %v1276 = vpop.f32.mrf.mxu0
  %v1277 = vadd.f32 %v1238, %v1276
  %1278 = vmatmul.bf16.gmra.mxu0 %v978
  %v1279 = vpop.f32.mrf.mxu0
  %v1280 = vadd.f32 %v1241, %v1279
  %v1281 = vpop.f32.mrf.mxu0
  %v1282 = vadd.f32 %v1243, %v1281
  %1283 = vmatmul.bf16.gmra.mxu0 %v981
  %v1284 = vpop.f32.mrf.mxu0
  %v1285 = vadd.f32 %v1246, %v1284
  %v1286 = vpop.f32.mrf.mxu0
  %v1287 = vadd.f32 %v1248, %v1286
  %1288 = vmatmul.bf16.gmra.mxu0 %v984
  %v1289 = vpop.f32.mrf.mxu0
  %v1290 = vadd.f32 %v1251, %v1289
  %v1291 = vpop.f32.mrf.mxu0
  %v1292 = vadd.f32 %v1253, %v1291
  %1293 = vmatmul.bf16.gmra.mxu0 %v987
  %v1294 = vpop.f32.mrf.mxu0
  %v1295 = vadd.f32 %v1256, %v1294
  %v1296 = vpop.f32.mrf.mxu0
  %v1297 = vadd.f32 %v1258, %v1296
  %1298 = vmatmul.bf16.gmra.mxu0 %v990
  %v1299 = vpop.f32.mrf.mxu0
  %v1300 = vadd.f32 %v1261, %v1299
  %v1301 = vpop.f32.mrf.mxu0
  %v1302 = vadd.f32 %v1263, %v1301
  %1303 = vdwg.mxu0
  %1304 = vmatpush.bf16.msra.mxu0 %v346
  %1305 = vmatpush.bf16.msra.mxu0 %v340
  %1306 = vmatpush.bf16.msra.mxu0 %v334
  %1307 = vmatpush.bf16.msra.mxu0 %v328
  %1308 = vmatpush.bf16.msra.mxu0 %v322
  %1309 = vmatpush.bf16.msra.mxu0 %v316
  %1310 = vmatpush.bf16.msra.mxu0 %v310
  %1311 = vmatpush.bf16.msra.mxu0 %v304
  %1312 = vmatmul.bf16.gmra.mxu0 %v956
  %v1313 = vpop.f32.mrf.mxu0
  %v1314 = vadd.f32 0.0, %v1313
  %v1315 = vpop.f32.mrf.mxu0
  %v1316 = vadd.f32 0.0, %v1315
  %1317 = vmatmul.bf16.gmra.mxu0 %v958
  %v1318 = vpop.f32.mrf.mxu0
  %v1319 = vadd.f32 0.0, %v1318
  %v1320 = vpop.f32.mrf.mxu0
  %v1321 = vadd.f32 0.0, %v1320
  %1322 = vmatmul.bf16.gmra.mxu0 %v960
  %v1323 = vpop.f32.mrf.mxu0
  %v1324 = vadd.f32 0.0, %v1323
  %v1325 = vpop.f32.mrf.mxu0
  %v1326 = vadd.f32 0.0, %v1325
  %1327 = vmatmul.bf16.gmra.mxu0 %v962
  %v1328 = vpop.f32.mrf.mxu0
  %v1329 = vadd.f32 0.0, %v1328
  %v1330 = vpop.f32.mrf.mxu0
  %v1331 = vadd.f32 0.0, %v1330
  %1332 = vmatmul.bf16.gmra.mxu0 %v964
  %v1333 = vpop.f32.mrf.mxu0
  %v1334 = vadd.f32 0.0, %v1333
  %v1335 = vpop.f32.mrf.mxu0
  %v1336 = vadd.f32 0.0, %v1335
  %1337 = vmatmul.bf16.gmra.mxu0 %v966
  %v1338 = vpop.f32.mrf.mxu0
  %v1339 = vadd.f32 0.0, %v1338
  %v1340 = vpop.f32.mrf.mxu0
  %v1341 = vadd.f32 0.0, %v1340
  %1342 = vdwg.mxu0
  %1343 = vmatpush.bf16.msra.mxu0 0
  %1344 = vmatpush.bf16.msra.mxu0 0
  %1345 = vmatpush.bf16.msra.mxu0 0
  %1346 = vmatpush.bf16.msra.mxu0 0
  %1347 = vmatpush.bf16.msra.mxu0 0
  %1348 = vmatpush.bf16.msra.mxu0 0
  %1349 = vmatpush.bf16.msra.mxu0 0
  %1350 = vmatpush.bf16.msra.mxu0 %v435
  %1351 = vmatmul.bf16.gmra.mxu0 %v975
  %v1352 = vpop.f32.mrf.mxu0
  %v1353 = vadd.f32 %v1314, %v1352
  %v1354 = vpop.f32.mrf.mxu0
  %v1355 = vadd.f32 %v1316, %v1354
  %1356 = vmatmul.bf16.gmra.mxu0 %v978
  %v1357 = vpop.f32.mrf.mxu0
  %v1358 = vadd.f32 %v1319, %v1357
  %v1359 = vpop.f32.mrf.mxu0
  %v1360 = vadd.f32 %v1321, %v1359
  %1361 = vmatmul.bf16.gmra.mxu0 %v981
  %v1362 = vpop.f32.mrf.mxu0
  %v1363 = vadd.f32 %v1324, %v1362
  %v1364 = vpop.f32.mrf.mxu0
  %v1365 = vadd.f32 %v1326, %v1364
  %1366 = vmatmul.bf16.gmra.mxu0 %v984
  %v1367 = vpop.f32.mrf.mxu0
  %v1368 = vadd.f32 %v1329, %v1367
  %v1369 = vpop.f32.mrf.mxu0
  %v1370 = vadd.f32 %v1331, %v1369
  %1371 = vmatmul.bf16.gmra.mxu0 %v987
  %v1372 = vpop.f32.mrf.mxu0
  %v1373 = vadd.f32 %v1334, %v1372
  %v1374 = vpop.f32.mrf.mxu0
  %v1375 = vadd.f32 %v1336, %v1374
  %1376 = vmatmul.bf16.gmra.mxu0 %v990
  %v1377 = vpop.f32.mrf.mxu0
  %v1378 = vadd.f32 %v1339, %v1377
  %v1379 = vpop.f32.mrf.mxu0
  %v1380 = vadd.f32 %v1341, %v1379
  %1381 = vdwg.mxu0
  %1382 = vmatpush.bf16.msra.mxu0 %v347
  %1383 = vmatpush.bf16.msra.mxu0 %v341
  %1384 = vmatpush.bf16.msra.mxu0 %v335
  %1385 = vmatpush.bf16.msra.mxu0 %v329
  %1386 = vmatpush.bf16.msra.mxu0 %v323
  %1387 = vmatpush.bf16.msra.mxu0 %v317
  %1388 = vmatpush.bf16.msra.mxu0 %v311
  %1389 = vmatpush.bf16.msra.mxu0 %v305
  %1390 = vmatmul.bf16.gmra.mxu0 %v956
  %v1391 = vpop.f32.mrf.mxu0
  %v1392 = vadd.f32 0.0, %v1391
  %v1393 = vpop.f32.mrf.mxu0
  %v1394 = vadd.f32 0.0, %v1393
  %1395 = vmatmul.bf16.gmra.mxu0 %v958
  %v1396 = vpop.f32.mrf.mxu0
  %v1397 = vadd.f32 0.0, %v1396
  %v1398 = vpop.f32.mrf.mxu0
  %v1399 = vadd.f32 0.0, %v1398
  %1400 = vmatmul.bf16.gmra.mxu0 %v960
  %v1401 = vpop.f32.mrf.mxu0
  %v1402 = vadd.f32 0.0, %v1401
  %v1403 = vpop.f32.mrf.mxu0
  %v1404 = vadd.f32 0.0, %v1403
  %1405 = vmatmul.bf16.gmra.mxu0 %v962
  %v1406 = vpop.f32.mrf.mxu0
  %v1407 = vadd.f32 0.0, %v1406
  %v1408 = vpop.f32.mrf.mxu0
  %v1409 = vadd.f32 0.0, %v1408
  %1410 = vmatmul.bf16.gmra.mxu0 %v964
  %v1411 = vpop.f32.mrf.mxu0
  %v1412 = vadd.f32 0.0, %v1411
  %v1413 = vpop.f32.mrf.mxu0
  %v1414 = vadd.f32 0.0, %v1413
  %1415 = vmatmul.bf16.gmra.mxu0 %v966
  %v1416 = vpop.f32.mrf.mxu0
  %v1417 = vadd.f32 0.0, %v1416
  %v1418 = vpop.f32.mrf.mxu0
  %v1419 = vadd.f32 0.0, %v1418
  %1420 = vdwg.mxu0
  %1421 = vmatpush.bf16.msra.mxu0 0
  %1422 = vmatpush.bf16.msra.mxu0 0
  %1423 = vmatpush.bf16.msra.mxu0 0
  %1424 = vmatpush.bf16.msra.mxu0 0
  %1425 = vmatpush.bf16.msra.mxu0 0
  %1426 = vmatpush.bf16.msra.mxu0 0
  %1427 = vmatpush.bf16.msra.mxu0 0
  %1428 = vmatpush.bf16.msra.mxu0 %v438
  %1429 = vmatmul.bf16.gmra.mxu0 %v975
  %v1430 = vpop.f32.mrf.mxu0
  %v1431 = vadd.f32 %v1392, %v1430
  %v1432 = vpop.f32.mrf.mxu0
  %v1433 = vadd.f32 %v1394, %v1432
  %1434 = vmatmul.bf16.gmra.mxu0 %v978
  %v1435 = vpop.f32.mrf.mxu0
  %v1436 = vadd.f32 %v1397, %v1435
  %v1437 = vpop.f32.mrf.mxu0
  %v1438 = vadd.f32 %v1399, %v1437
  %1439 = vmatmul.bf16.gmra.mxu0 %v981
  %v1440 = vpop.f32.mrf.mxu0
  %v1441 = vadd.f32 %v1402, %v1440
  %v1442 = vpop.f32.mrf.mxu0
  %v1443 = vadd.f32 %v1404, %v1442
  %1444 = vmatmul.bf16.gmra.mxu0 %v984
  %v1445 = vpop.f32.mrf.mxu0
  %v1446 = vadd.f32 %v1407, %v1445
  %v1447 = vpop.f32.mrf.mxu0
  %v1448 = vadd.f32 %v1409, %v1447
  %1449 = vmatmul.bf16.gmra.mxu0 %v987
  %v1450 = vpop.f32.mrf.mxu0
  %v1451 = vadd.f32 %v1412, %v1450
  %v1452 = vpop.f32.mrf.mxu0
  %v1453 = vadd.f32 %v1414, %v1452
  %1454 = vmatmul.bf16.gmra.mxu0 %v990
  %v1455 = vpop.f32.mrf.mxu0
  %v1456 = vadd.f32 %v1417, %v1455
  %v1457 = vpop.f32.mrf.mxu0
  %v1458 = vadd.f32 %v1419, %v1457
  %1459 = vdwg.mxu0
  %v1460 = vmax.f32 %v489, %v723
  %v1461 = vmax.f32 %v567, %v801
  %v1462 = vmax.f32 %v645, %v879
  %v1463 = vmax.f32 %v491, %v725
  %v1464 = vmax.f32 %v569, %v803
  %v1465 = vmax.f32 %v647, %v881
  %v1466 = vmax.f32 %v494, %v728
  %v1467 = vmax.f32 %v572, %v806
  %v1468 = vmax.f32 %v650, %v884
  %v1469 = vmax.f32 %v496, %v730
  %v1470 = vmax.f32 %v574, %v808
  %v1471 = vmax.f32 %v652, %v886
  %v1472 = vmax.f32 %v499, %v733
  %v1473 = vmax.f32 %v577, %v811
  %v1474 = vmax.f32 %v655, %v889
  %v1475 = vmax.f32 %v501, %v735
  %v1476 = vmax.f32 %v579, %v813
  %v1477 = vmax.f32 %v657, %v891
  %v1478 = vmax.f32 %v504, %v738
  %v1479 = vmax.f32 %v582, %v816
  %v1480 = vmax.f32 %v660, %v894
  %v1481 = vmax.f32 %v506, %v740
  %v1482 = vmax.f32 %v584, %v818
  %v1483 = vmax.f32 %v662, %v896
  %v1484 = vmax.f32 %v509, %v743
  %v1485 = vmax.f32 %v587, %v821
  %v1486 = vmax.f32 %v665, %v899
  %v1487 = vmax.f32 %v511, %v745
  %v1488 = vmax.f32 %v589, %v823
  %v1489 = vmax.f32 %v667, %v901
  %v1490 = vmax.f32 %v514, %v748
  %v1491 = vmax.f32 %v592, %v826
  %v1492 = vmax.f32 %v670, %v904
  %v1493 = vmax.f32 %v516, %v750
  %v1494 = vmax.f32 %v594, %v828
  %v1495 = vmax.f32 %v672, %v906
  %v1496 = vmax.f32 %v1041, %v1275
  %v1497 = vmax.f32 %v1119, %v1353
  %v1498 = vmax.f32 %v1197, %v1431
  %v1499 = vmax.f32 %v1043, %v1277
  %v1500 = vmax.f32 %v1121, %v1355
  %v1501 = vmax.f32 %v1199, %v1433
  %v1502 = vmax.f32 %v1046, %v1280
  %v1503 = vmax.f32 %v1124, %v1358
  %v1504 = vmax.f32 %v1202, %v1436
  %v1505 = vmax.f32 %v1048, %v1282
  %v1506 = vmax.f32 %v1126, %v1360
  %v1507 = vmax.f32 %v1204, %v1438
  %v1508 = vmax.f32 %v1051, %v1285
  %v1509 = vmax.f32 %v1129, %v1363
  %v1510 = vmax.f32 %v1207, %v1441
  %v1511 = vmax.f32 %v1053, %v1287
  %v1512 = vmax.f32 %v1131, %v1365
  %v1513 = vmax.f32 %v1209, %v1443
  %v1514 = vmax.f32 %v1056, %v1290
  %v1515 = vmax.f32 %v1134, %v1368
  %v1516 = vmax.f32 %v1212, %v1446
  %v1517 = vmax.f32 %v1058, %v1292
  %v1518 = vmax.f32 %v1136, %v1370
  %v1519 = vmax.f32 %v1214, %v1448
  %v1520 = vmax.f32 %v1061, %v1295
  %v1521 = vmax.f32 %v1139, %v1373
  %v1522 = vmax.f32 %v1217, %v1451
  %v1523 = vmax.f32 %v1063, %v1297
  %v1524 = vmax.f32 %v1141, %v1375
  %v1525 = vmax.f32 %v1219, %v1453
  %v1526 = vmax.f32 %v1066, %v1300
  %v1527 = vmax.f32 %v1144, %v1378
  %v1528 = vmax.f32 %v1222, %v1456
  %v1529 = vmax.f32 %v1068, %v1302
  %v1530 = vmax.f32 %v1146, %v1380
  %v1531 = vmax.f32 %v1224, %v1458
  %v1532 = vmax.f32 %v1460, %v1496
  %v1533 = vmax.f32 %v1461, %v1497
  %v1534 = vmax.f32 %v1462, %v1498
  %v1535 = vmax.f32 %v1463, %v1499
  %v1536 = vmax.f32 %v1464, %v1500
  %v1537 = vmax.f32 %v1465, %v1501
  %v1538 = vmax.f32 %v1466, %v1502
  %v1539 = vmax.f32 %v1467, %v1503
  %v1540 = vmax.f32 %v1468, %v1504
  %v1541 = vmax.f32 %v1469, %v1505
  %v1542 = vmax.f32 %v1470, %v1506
  %v1543 = vmax.f32 %v1471, %v1507
  %v1544 = vmax.f32 %v1472, %v1508
  %v1545 = vmax.f32 %v1473, %v1509
  %v1546 = vmax.f32 %v1474, %v1510
  %v1547 = vmax.f32 %v1475, %v1511
  %v1548 = vmax.f32 %v1476, %v1512
  %v1549 = vmax.f32 %v1477, %v1513
  %v1550 = vmax.f32 %v1478, %v1514
  %v1551 = vmax.f32 %v1479, %v1515
  %v1552 = vmax.f32 %v1480, %v1516
  %v1553 = vmax.f32 %v1481, %v1517
  %v1554 = vmax.f32 %v1482, %v1518
  %v1555 = vmax.f32 %v1483, %v1519
  %v1556 = vmax.f32 %v1484, %v1520
  %v1557 = vmax.f32 %v1485, %v1521
  %v1558 = vmax.f32 %v1486, %v1522
  %v1559 = vmax.f32 %v1487, %v1523
  %v1560 = vmax.f32 %v1488, %v1524
  %v1561 = vmax.f32 %v1489, %v1525
  %v1562 = vmax.f32 %v1490, %v1526
  %v1563 = vmax.f32 %v1491, %v1527
  %v1564 = vmax.f32 %v1492, %v1528
  %v1565 = vmax.f32 %v1493, %v1529
  %v1566 = vmax.f32 %v1494, %v1530
  %v1567 = vmax.f32 %v1495, %v1531
  %v1568 = vld [vmem:[%s3] sm:$0x7]
  %v1570 = vperm.slane %v1568, 0
  %v1571 = vperm.slane %v1568, 1
  %v1572 = vperm.slane %v1568, 2
  %v1576 = vadd.f32 %v1532, %v1570
  %v1577 = vadd.f32 %v1533, %v1571
  %v1578 = vadd.f32 %v1534, %v1572
  %v1579 = vadd.f32 %v1535, %v1570
  %v1580 = vadd.f32 %v1536, %v1571
  %v1581 = vadd.f32 %v1537, %v1572
  %v1582 = vadd.f32 %v1538, %v1570
  %v1583 = vadd.f32 %v1539, %v1571
  %v1584 = vadd.f32 %v1540, %v1572
  %v1585 = vadd.f32 %v1541, %v1570
  %v1586 = vadd.f32 %v1542, %v1571
  %v1587 = vadd.f32 %v1543, %v1572
  %v1588 = vadd.f32 %v1544, %v1570
  %v1589 = vadd.f32 %v1545, %v1571
  %v1590 = vadd.f32 %v1546, %v1572
  %v1591 = vadd.f32 %v1547, %v1570
  %v1592 = vadd.f32 %v1548, %v1571
  %v1593 = vadd.f32 %v1549, %v1572
  %v1594 = vadd.f32 %v1550, %v1570
  %v1595 = vadd.f32 %v1551, %v1571
  %v1596 = vadd.f32 %v1552, %v1572
  %v1597 = vadd.f32 %v1553, %v1570
  %v1598 = vadd.f32 %v1554, %v1571
  %v1599 = vadd.f32 %v1555, %v1572
  %v1600 = vadd.f32 %v1556, %v1570
  %v1601 = vadd.f32 %v1557, %v1571
  %v1602 = vadd.f32 %v1558, %v1572
  %v1603 = vadd.f32 %v1559, %v1570
  %v1604 = vadd.f32 %v1560, %v1571
  %v1605 = vadd.f32 %v1561, %v1572
  %v1606 = vadd.f32 %v1562, %v1570
  %v1607 = vadd.f32 %v1563, %v1571
  %v1608 = vadd.f32 %v1564, %v1572
  %v1609 = vadd.f32 %v1565, %v1570
  %v1610 = vadd.f32 %v1566, %v1571
  %v1611 = vadd.f32 %v1567, %v1572
  %v1612 = vmax.f32 %v1576, 0.0
  %v1613 = vmax.f32 %v1577, 0.0
  %v1614 = vmax.f32 %v1578, 0.0
  %v1615 = vmax.f32 %v1579, 0.0
  %v1616 = vmax.f32 %v1580, 0.0
  %v1617 = vmax.f32 %v1581, 0.0
  %v1618 = vmax.f32 %v1582, 0.0
  %v1619 = vmax.f32 %v1583, 0.0
  %v1620 = vmax.f32 %v1584, 0.0
  %v1621 = vmax.f32 %v1585, 0.0
  %v1622 = vmax.f32 %v1586, 0.0
  %v1623 = vmax.f32 %v1587, 0.0
  %v1624 = vmax.f32 %v1588, 0.0
  %v1625 = vmax.f32 %v1589, 0.0
  %v1626 = vmax.f32 %v1590, 0.0
  %v1627 = vmax.f32 %v1591, 0.0
  %v1628 = vmax.f32 %v1592, 0.0
  %v1629 = vmax.f32 %v1593, 0.0
  %v1630 = vmax.f32 %v1594, 0.0
  %v1631 = vmax.f32 %v1595, 0.0
  %v1632 = vmax.f32 %v1596, 0.0
  %v1633 = vmax.f32 %v1597, 0.0
  %v1634 = vmax.f32 %v1598, 0.0
  %v1635 = vmax.f32 %v1599, 0.0
  %v1636 = vmax.f32 %v1600, 0.0
  %v1637 = vmax.f32 %v1601, 0.0
  %v1638 = vmax.f32 %v1602, 0.0
  %v1639 = vmax.f32 %v1603, 0.0
  %v1640 = vmax.f32 %v1604, 0.0
  %v1641 = vmax.f32 %v1605, 0.0
  %v1642 = vmax.f32 %v1606, 0.0
  %v1643 = vmax.f32 %v1607, 0.0
  %v1644 = vmax.f32 %v1608, 0.0
  %v1645 = vmax.f32 %v1609, 0.0
  %v1646 = vmax.f32 %v1610, 0.0
  %v1647 = vmax.f32 %v1611, 0.0
  %v1648 = vpack.c.bf16 %v1613, %v1612
  %v1649 = vpack.c.bf16 %v1614, %v1614
  %v1650 = vpack.c.bf16 %v1616, %v1615
  %v1651 = vpack.c.bf16 %v1617, %v1617
  %v1652 = vpack.c.bf16 %v1619, %v1618
  %v1653 = vpack.c.bf16 %v1620, %v1620
  %v1654 = vpack.c.bf16 %v1622, %v1621
  %v1655 = vpack.c.bf16 %v1623, %v1623
  %v1656 = vpack.c.bf16 %v1625, %v1624
  %v1657 = vpack.c.bf16 %v1626, %v1626
  %v1658 = vpack.c.bf16 %v1628, %v1627
  %v1659 = vpack.c.bf16 %v1629, %v1629
  %v1660 = vpack.c.bf16 %v1631, %v1630
  %v1661 = vpack.c.bf16 %v1632, %v1632
  %v1662 = vpack.c.bf16 %v1634, %v1633
  %v1663 = vpack.c.bf16 %v1635, %v1635
  %v1664 = vpack.c.bf16 %v1637, %v1636
  %v1665 = vpack.c.bf16 %v1638, %v1638
  %v1666 = vpack.c.bf16 %v1640, %v1639
  %v1667 = vpack.c.bf16 %v1641, %v1641
  %v1668 = vpack.c.bf16 %v1643, %v1642
  %v1669 = vpack.c.bf16 %v1644, %v1644
  %v1670 = vpack.c.bf16 %v1646, %v1645
  %v1671 = vpack.c.bf16 %v1647, %v1647
  %1672 = vst [vmem:[%s4] sm:$0xff] %v1648
  %1673 = vst [vmem:[%s4 + $0x8] sm:$0xf] %v1649
  %1674 = vst [vmem:[%s4 + $0xc] sm:$0xff] %v1650
  %1675 = vst [vmem:[%s4 + $0x14] sm:$0xf] %v1651
  %1676 = vst [vmem:[%s4 + $0x18] sm:$0xff] %v1652
  %1677 = vst [vmem:[%s4 + $0x20] sm:$0xf] %v1653
  %1678 = vst [vmem:[%s4 + $0x24] sm:$0xff] %v1654
  %1679 = vst [vmem:[%s4 + $0x2c] sm:$0xf] %v1655
  %1680 = vst [vmem:[%s4 + $0x30] sm:$0xff] %v1656
  %1681 = vst [vmem:[%s4 + $0x38] sm:$0xf] %v1657
  %1682 = vst [vmem:[%s4 + $0x3c] sm:$0xff] %v1658
  %1683 = vst [vmem:[%s4 + $0x44] sm:$0xf] %v1659
  %1684 = vst [vmem:[%s4 + $0x48] sm:$0xff] %v1660
  %1685 = vst [vmem:[%s4 + $0x50] sm:$0xf] %v1661
  %1686 = vst [vmem:[%s4 + $0x54] sm:$0xff] %v1662
  %1687 = vst [vmem:[%s4 + $0x5c] sm:$0xf] %v1663
  %1688 = vst [vmem:[%s4 + $0x60] sm:$0xff] %v1664
  %1689 = vst [vmem:[%s4 + $0x68] sm:$0xf] %v1665
  %1690 = vst [vmem:[%s4 + $0x6c] sm:$0xff] %v1666
  %1691 = vst [vmem:[%s4 + $0x74] sm:$0xf] %v1667
  %1692 = vst [vmem:[%s4 + $0x78] sm:$0xff] %v1668
  %1693 = vst [vmem:[%s4 + $0x80] sm:$0xf] %v1669
  %1694 = vst [vmem:[%s4 + $0x84] sm:$0xff] %v1670
  %1695 = vst [vmem:[%s4 + $0x8c] sm:$0xf] %v1671
  // Predicated region
  $region18: #{infix_classifier.2} parent=0 // pred_check
    _
  $region19: #{infix_classifier.2} parent=0 // pred_check_branch
    %1697 = sbr.rel (0) target = $region21
  $region20: #{infix_classifier.2} parent=0 // pred_region
    _
  $region21: #{infix_classifier.2} parent=0 // pred_fallthru
    _
  // Predicated region
  $region22: #{infix_classifier.2} parent=0 // pred_check
    _
  $region23: #{infix_classifier.2} parent=0 // pred_check_branch
    %1699 = sbr.rel (0) target = $region25
  $region24: #{infix_classifier.2} parent=0 // pred_region
    _
  $region25: #{infix_classifier.2} parent=0 // pred_fallthru
    _

// kernel: infix_classifier.3
$region0: #{infix_classifier.3}
  #allocation0 [shape = 'u32[]', space=smem, size = 0x4, offset = 0x4, fixed_abs, tag = 'smem constant byte address 0x4 - core index']
  #allocation1 [shape = 'u32[72,128]{1,0:T(1,128)}', space=vmem, size = 0x9000, scoped, tag = 'internal scratch']
  %s0 = inlined_call_operand.vmem [shape: bf16[8,4608], index: 0, kind: input, shape index: {}]
  %s1 = inlined_call_operand.vmem [shape: bf16[4608,32], index: 1, kind: input, shape index: {}]
  %s2 = inlined_call_operand.vmem [shape: f32[1,32], index: 2, kind: input, shape index: {}]
  %s3 = inlined_call_operand.vmem [shape: f32[32,2], index: 3, kind: input, shape index: {}]
  %s4 = inlined_call_operand.vmem [shape: f32[1,2], index: 4, kind: input, shape index: {}]
  %s5 = inlined_call_operand.vmem [shape: f32[8,2], index: 5, kind: output, shape index: {}]
  %s6 = sld [smem:[#allocation0]]
  $region30: #{infix_classifier.3} parent=0
    _
  %s8 = ssub.s32 1, %s6
  %s9 = scalar_select 0, %s8, %s6
  // Predicated region
  $region2: #{infix_classifier.3} parent=0 // pred_check
    _
  $region3: #{infix_classifier.3} parent=0 // pred_check_branch
    %11 = sbr.rel (0) target = $region5
  $region4: #{infix_classifier.3} parent=0 // pred_region
    _
  $region5: #{infix_classifier.3} parent=0 // pred_fallthru
    _
  // Predicated region
  $region6: #{infix_classifier.3} parent=0 // pred_check
    _
  $region7: #{infix_classifier.3} parent=0 // pred_check_branch
    %13 = sbr.rel (0) target = $region9
  $region8: #{infix_classifier.3} parent=0 // pred_region
    _
  $region9: #{infix_classifier.3} parent=0 // pred_fallthru
    _
  // Predicated region
  $region10: #{infix_classifier.3} parent=0 // pred_check
    _
  $region11: #{infix_classifier.3} parent=0 // pred_check_branch
    %15 = sbr.rel (0) target = $region13
  $region12: #{infix_classifier.3} parent=0 // pred_region
    _
  $region13: #{infix_classifier.3} parent=0 // pred_fallthru
    _
  // Predicated region
  $region14: #{infix_classifier.3} parent=0 // pred_check
    _
  $region15: #{infix_classifier.3} parent=0 // pred_check_branch
    %17 = sbr.rel (0) target = $region17
  $region16: #{infix_classifier.3} parent=0 // pred_region
    _
  $region17: #{infix_classifier.3} parent=0 // pred_fallthru
    _
  // Predicated region
  $region18: #{infix_classifier.3} parent=0 // pred_check
    _
  $region19: #{infix_classifier.3} parent=0 // pred_check_branch
    %19 = sbr.rel (0) target = $region21
  $region20: #{infix_classifier.3} parent=0 // pred_region
    _
  $region21: #{infix_classifier.3} parent=0 // pred_fallthru
    _
  %v20 = vld [vmem:[%s0] sm:$0xff]
  %v21 = vld [vmem:[%s0 + $0x8] sm:$0xff]
  %v22 = vld [vmem:[%s0 + $0x10] sm:$0xff]
  %v23 = vld [vmem:[%s0 + $0x18] sm:$0xff]
  %v24 = vld [vmem:[%s0 + $0x20] sm:$0xff]
  %v25 = vld [vmem:[%s0 + $0x28] sm:$0xff]
  %v26 = vld [vmem:[%s0 + $0x30] sm:$0xff]
  %v27 = vld [vmem:[%s0 + $0x38] sm:$0xff]
  %v28 = vld [vmem:[%s0 + $0x40] sm:$0xff]
  %v29 = vld [vmem:[%s0 + $0x48] sm:$0xff]
  %v30 = vld [vmem:[%s0 + $0x50] sm:$0xff]
  %v31 = vld [vmem:[%s0 + $0x58] sm:$0xff]
  %v32 = vld [vmem:[%s0 + $0x60] sm:$0xff]
  %v33 = vld [vmem:[%s0 + $0x68] sm:$0xff]
  %v34 = vld [vmem:[%s0 + $0x70] sm:$0xff]
  %v35 = vld [vmem:[%s0 + $0x78] sm:$0xff]
  %v36 = vld [vmem:[%s0 + $0x80] sm:$0xff]
  %v37 = vld [vmem:[%s0 + $0x88] sm:$0xff]
  %v38 = vld [vmem:[%s1] sm:$0xf]
  %v39 = vld [vmem:[%s1 + $0x4] sm:$0xf]
  %v40 = vld [vmem:[%s1 + $0x8] sm:$0xf]
  %v41 = vld [vmem:[%s1 + $0xc] sm:$0xf]
  %v42 = vld [vmem:[%s1 + $0x10] sm:$0xf]
  %v43 = vld [vmem:[%s1 + $0x14] sm:$0xf]
  %v44 = vld [vmem:[%s1 + $0x18] sm:$0xf]
  %v45 = vld [vmem:[%s1 + $0x1c] sm:$0xf]
  %v46 = vld [vmem:[%s1 + $0x20] sm:$0xf]
  %v47 = vld [vmem:[%s1 + $0x24] sm:$0xf]
  %v48 = vld [vmem:[%s1 + $0x28] sm:$0xf]
  %v49 = vld [vmem:[%s1 + $0x2c] sm:$0xf]
  %v50 = vld [vmem:[%s1 + $0x30] sm:$0xf]
  %v51 = vld [vmem:[%s1 + $0x34] sm:$0xf]
  %v52 = vld [vmem:[%s1 + $0x38] sm:$0xf]
  %v53 = vld [vmem:[%s1 + $0x3c] sm:$0xf]
  %v54 = vld [vmem:[%s1 + $0x40] sm:$0xf]
  %v55 = vld [vmem:[%s1 + $0x44] sm:$0xf]
  %v56 = vld [vmem:[%s1 + $0x48] sm:$0xf]
  %v57 = vld [vmem:[%s1 + $0x4c] sm:$0xf]
  %v58 = vld [vmem:[%s1 + $0x50] sm:$0xf]
  %v59 = vld [vmem:[%s1 + $0x54] sm:$0xf]
  %v60 = vld [vmem:[%s1 + $0x58] sm:$0xf]
  %v61 = vld [vmem:[%s1 + $0x5c] sm:$0xf]
  %v62 = vld [vmem:[%s1 + $0x60] sm:$0xf]
  %v63 = vld [vmem:[%s1 + $0x64] sm:$0xf]
  %v64 = vld [vmem:[%s1 + $0x68] sm:$0xf]
  %v65 = vld [vmem:[%s1 + $0x6c] sm:$0xf]
  %v66 = vld [vmem:[%s1 + $0x70] sm:$0xf]
  %v67 = vld [vmem:[%s1 + $0x74] sm:$0xf]
  %v68 = vld [vmem:[%s1 + $0x78] sm:$0xf]
  %v69 = vld [vmem:[%s1 + $0x7c] sm:$0xf]
  %v70 = vld [vmem:[%s1 + $0x80] sm:$0xf]
  %v71 = vld [vmem:[%s1 + $0x84] sm:$0xf]
  %v72 = vld [vmem:[%s1 + $0x88] sm:$0xf]
  %v73 = vld [vmem:[%s1 + $0x8c] sm:$0xf]
  %v74 = vld [vmem:[%s1 + $0x90] sm:$0xf]
  %v75 = vld [vmem:[%s1 + $0x94] sm:$0xf]
  %v76 = vld [vmem:[%s1 + $0x98] sm:$0xf]
  %v77 = vld [vmem:[%s1 + $0x9c] sm:$0xf]
  %v78 = vld [vmem:[%s1 + $0xa0] sm:$0xf]
  %v79 = vld [vmem:[%s1 + $0xa4] sm:$0xf]
  %v80 = vld [vmem:[%s1 + $0xa8] sm:$0xf]
  %v81 = vld [vmem:[%s1 + $0xac] sm:$0xf]
  %v82 = vld [vmem:[%s1 + $0xb0] sm:$0xf]
  %v83 = vld [vmem:[%s1 + $0xb4] sm:$0xf]
  %v84 = vld [vmem:[%s1 + $0xb8] sm:$0xf]
  %v85 = vld [vmem:[%s1 + $0xbc] sm:$0xf]
  %v86 = vld [vmem:[%s1 + $0xc0] sm:$0xf]
  %v87 = vld [vmem:[%s1 + $0xc4] sm:$0xf]
  %v88 = vld [vmem:[%s1 + $0xc8] sm:$0xf]
  %v89 = vld [vmem:[%s1 + $0xcc] sm:$0xf]
  %v90 = vld [vmem:[%s1 + $0xd0] sm:$0xf]
  %v91 = vld [vmem:[%s1 + $0xd4] sm:$0xf]
  %v92 = vld [vmem:[%s1 + $0xd8] sm:$0xf]
  %v93 = vld [vmem:[%s1 + $0xdc] sm:$0xf]
  %v94 = vld [vmem:[%s1 + $0xe0] sm:$0xf]
  %v95 = vld [vmem:[%s1 + $0xe4] sm:$0xf]
  %v96 = vld [vmem:[%s1 + $0xe8] sm:$0xf]
  %v97 = vld [vmem:[%s1 + $0xec] sm:$0xf]
  %v98 = vld [vmem:[%s1 + $0xf0] sm:$0xf]
  %v99 = vld [vmem:[%s1 + $0xf4] sm:$0xf]
  %v100 = vld [vmem:[%s1 + $0xf8] sm:$0xf]
  %v101 = vld [vmem:[%s1 + $0xfc] sm:$0xf]
  %v102 = vld [vmem:[%s1 + $0x100] sm:$0xf]
  %v103 = vld [vmem:[%s1 + $0x104] sm:$0xf]
  %v104 = vld [vmem:[%s1 + $0x108] sm:$0xf]
  %v105 = vld [vmem:[%s1 + $0x10c] sm:$0xf]
  %v106 = vld [vmem:[%s1 + $0x110] sm:$0xf]
  %v107 = vld [vmem:[%s1 + $0x114] sm:$0xf]
  %v108 = vld [vmem:[%s1 + $0x118] sm:$0xf]
  %v109 = vld [vmem:[%s1 + $0x11c] sm:$0xf]
  %v110 = vld [vmem:[%s1 + $0x120] sm:$0xf]
  %v111 = vld [vmem:[%s1 + $0x124] sm:$0xf]
  %v112 = vld [vmem:[%s1 + $0x128] sm:$0xf]
  %v113 = vld [vmem:[%s1 + $0x12c] sm:$0xf]
  %v114 = vld [vmem:[%s1 + $0x130] sm:$0xf]
  %v115 = vld [vmem:[%s1 + $0x134] sm:$0xf]
  %v116 = vld [vmem:[%s1 + $0x138] sm:$0xf]
  %v117 = vld [vmem:[%s1 + $0x13c] sm:$0xf]
  %v118 = vld [vmem:[%s1 + $0x140] sm:$0xf]
  %v119 = vld [vmem:[%s1 + $0x144] sm:$0xf]
  %v120 = vld [vmem:[%s1 + $0x148] sm:$0xf]
  %v121 = vld [vmem:[%s1 + $0x14c] sm:$0xf]
  %v122 = vld [vmem:[%s1 + $0x150] sm:$0xf]
  %v123 = vld [vmem:[%s1 + $0x154] sm:$0xf]
  %v124 = vld [vmem:[%s1 + $0x158] sm:$0xf]
  %v125 = vld [vmem:[%s1 + $0x15c] sm:$0xf]
  %v126 = vld [vmem:[%s1 + $0x160] sm:$0xf]
  %v127 = vld [vmem:[%s1 + $0x164] sm:$0xf]
  %v128 = vld [vmem:[%s1 + $0x168] sm:$0xf]
  %v129 = vld [vmem:[%s1 + $0x16c] sm:$0xf]
  %v130 = vld [vmem:[%s1 + $0x170] sm:$0xf]
  %v131 = vld [vmem:[%s1 + $0x174] sm:$0xf]
  %v132 = vld [vmem:[%s1 + $0x178] sm:$0xf]
  %v133 = vld [vmem:[%s1 + $0x17c] sm:$0xf]
  %v134 = vld [vmem:[%s1 + $0x180] sm:$0xf]
  %v135 = vld [vmem:[%s1 + $0x184] sm:$0xf]
  %v136 = vld [vmem:[%s1 + $0x188] sm:$0xf]
  %v137 = vld [vmem:[%s1 + $0x18c] sm:$0xf]
  %v138 = vld [vmem:[%s1 + $0x190] sm:$0xf]
  %v139 = vld [vmem:[%s1 + $0x194] sm:$0xf]
  %v140 = vld [vmem:[%s1 + $0x198] sm:$0xf]
  %v141 = vld [vmem:[%s1 + $0x19c] sm:$0xf]
  %v142 = vld [vmem:[%s1 + $0x1a0] sm:$0xf]
  %v143 = vld [vmem:[%s1 + $0x1a4] sm:$0xf]
  %v144 = vld [vmem:[%s1 + $0x1a8] sm:$0xf]
  %v145 = vld [vmem:[%s1 + $0x1ac] sm:$0xf]
  %v146 = vld [vmem:[%s1 + $0x1b0] sm:$0xf]
  %v147 = vld [vmem:[%s1 + $0x1b4] sm:$0xf]
  %v148 = vld [vmem:[%s1 + $0x1b8] sm:$0xf]
  %v149 = vld [vmem:[%s1 + $0x1bc] sm:$0xf]
  %v150 = vld [vmem:[%s1 + $0x1c0] sm:$0xf]
  %v151 = vld [vmem:[%s1 + $0x1c4] sm:$0xf]
  %v152 = vld [vmem:[%s1 + $0x1c8] sm:$0xf]
  %v153 = vld [vmem:[%s1 + $0x1cc] sm:$0xf]
  %v154 = vld [vmem:[%s1 + $0x1d0] sm:$0xf]
  %v155 = vld [vmem:[%s1 + $0x1d4] sm:$0xf]
  %v156 = vld [vmem:[%s1 + $0x1d8] sm:$0xf]
  %v157 = vld [vmem:[%s1 + $0x1dc] sm:$0xf]
  %v158 = vld [vmem:[%s1 + $0x1e0] sm:$0xf]
  %v159 = vld [vmem:[%s1 + $0x1e4] sm:$0xf]
  %v160 = vld [vmem:[%s1 + $0x1e8] sm:$0xf]
  %v161 = vld [vmem:[%s1 + $0x1ec] sm:$0xf]
  %v162 = vld [vmem:[%s1 + $0x1f0] sm:$0xf]
  %v163 = vld [vmem:[%s1 + $0x1f4] sm:$0xf]
  %v164 = vld [vmem:[%s1 + $0x1f8] sm:$0xf]
  %v165 = vld [vmem:[%s1 + $0x1fc] sm:$0xf]
  %v166 = vld [vmem:[%s1 + $0x200] sm:$0xf]
  %v167 = vld [vmem:[%s1 + $0x204] sm:$0xf]
  %v168 = vld [vmem:[%s1 + $0x208] sm:$0xf]
  %v169 = vld [vmem:[%s1 + $0x20c] sm:$0xf]
  %v170 = vld [vmem:[%s1 + $0x210] sm:$0xf]
  %v171 = vld [vmem:[%s1 + $0x214] sm:$0xf]
  %v172 = vld [vmem:[%s1 + $0x218] sm:$0xf]
  %v173 = vld [vmem:[%s1 + $0x21c] sm:$0xf]
  %v174 = vld [vmem:[%s1 + $0x220] sm:$0xf]
  %v175 = vld [vmem:[%s1 + $0x224] sm:$0xf]
  %v176 = vld [vmem:[%s1 + $0x228] sm:$0xf]
  %v177 = vld [vmem:[%s1 + $0x22c] sm:$0xf]
  %v178 = vld [vmem:[%s1 + $0x230] sm:$0xf]
  %v179 = vld [vmem:[%s1 + $0x234] sm:$0xf]
  %v180 = vld [vmem:[%s1 + $0x238] sm:$0xf]
  %v181 = vld [vmem:[%s1 + $0x23c] sm:$0xf]
  %v182 = vld [vmem:[%s1 + $0x240] sm:$0xf]
  %v183 = vld [vmem:[%s1 + $0x244] sm:$0xf]
  %v184 = vld [vmem:[%s1 + $0x248] sm:$0xf]
  %v185 = vld [vmem:[%s1 + $0x24c] sm:$0xf]
  %v186 = vld [vmem:[%s1 + $0x250] sm:$0xf]
  %v187 = vld [vmem:[%s1 + $0x254] sm:$0xf]
  %v188 = vld [vmem:[%s1 + $0x258] sm:$0xf]
  %v189 = vld [vmem:[%s1 + $0x25c] sm:$0xf]
  %v190 = vld [vmem:[%s1 + $0x260] sm:$0xf]
  %v191 = vld [vmem:[%s1 + $0x264] sm:$0xf]
  %v192 = vld [vmem:[%s1 + $0x268] sm:$0xf]
  %v193 = vld [vmem:[%s1 + $0x26c] sm:$0xf]
  %v194 = vld [vmem:[%s1 + $0x270] sm:$0xf]
  %v195 = vld [vmem:[%s1 + $0x274] sm:$0xf]
  %v196 = vld [vmem:[%s1 + $0x278] sm:$0xf]
  %v197 = vld [vmem:[%s1 + $0x27c] sm:$0xf]
  %v198 = vld [vmem:[%s1 + $0x280] sm:$0xf]
  %v199 = vld [vmem:[%s1 + $0x284] sm:$0xf]
  %v200 = vld [vmem:[%s1 + $0x288] sm:$0xf]
  %v201 = vld [vmem:[%s1 + $0x28c] sm:$0xf]
  %v202 = vld [vmem:[%s1 + $0x290] sm:$0xf]
  %v203 = vld [vmem:[%s1 + $0x294] sm:$0xf]
  %v204 = vld [vmem:[%s1 + $0x298] sm:$0xf]
  %v205 = vld [vmem:[%s1 + $0x29c] sm:$0xf]
  %v206 = vld [vmem:[%s1 + $0x2a0] sm:$0xf]
  %v207 = vld [vmem:[%s1 + $0x2a4] sm:$0xf]
  %v208 = vld [vmem:[%s1 + $0x2a8] sm:$0xf]
  %v209 = vld [vmem:[%s1 + $0x2ac] sm:$0xf]
  %v210 = vld [vmem:[%s1 + $0x2b0] sm:$0xf]
  %v211 = vld [vmem:[%s1 + $0x2b4] sm:$0xf]
  %v212 = vld [vmem:[%s1 + $0x2b8] sm:$0xf]
  %v213 = vld [vmem:[%s1 + $0x2bc] sm:$0xf]
  %v214 = vld [vmem:[%s1 + $0x2c0] sm:$0xf]
  %v215 = vld [vmem:[%s1 + $0x2c4] sm:$0xf]
  %v216 = vld [vmem:[%s1 + $0x2c8] sm:$0xf]
  %v217 = vld [vmem:[%s1 + $0x2cc] sm:$0xf]
  %v218 = vld [vmem:[%s1 + $0x2d0] sm:$0xf]
  %v219 = vld [vmem:[%s1 + $0x2d4] sm:$0xf]
  %v220 = vld [vmem:[%s1 + $0x2d8] sm:$0xf]
  %v221 = vld [vmem:[%s1 + $0x2dc] sm:$0xf]
  %v222 = vld [vmem:[%s1 + $0x2e0] sm:$0xf]
  %v223 = vld [vmem:[%s1 + $0x2e4] sm:$0xf]
  %v224 = vld [vmem:[%s1 + $0x2e8] sm:$0xf]
  %v225 = vld [vmem:[%s1 + $0x2ec] sm:$0xf]
  %v226 = vld [vmem:[%s1 + $0x2f0] sm:$0xf]
  %v227 = vld [vmem:[%s1 + $0x2f4] sm:$0xf]
  %v228 = vld [vmem:[%s1 + $0x2f8] sm:$0xf]
  %v229 = vld [vmem:[%s1 + $0x2fc] sm:$0xf]
  %v230 = vld [vmem:[%s1 + $0x300] sm:$0xf]
  %v231 = vld [vmem:[%s1 + $0x304] sm:$0xf]
  %v232 = vld [vmem:[%s1 + $0x308] sm:$0xf]
  %v233 = vld [vmem:[%s1 + $0x30c] sm:$0xf]
  %v234 = vld [vmem:[%s1 + $0x310] sm:$0xf]
  %v235 = vld [vmem:[%s1 + $0x314] sm:$0xf]
  %v236 = vld [vmem:[%s1 + $0x318] sm:$0xf]
  %v237 = vld [vmem:[%s1 + $0x31c] sm:$0xf]
  %v238 = vld [vmem:[%s1 + $0x320] sm:$0xf]
  %v239 = vld [vmem:[%s1 + $0x324] sm:$0xf]
  %v240 = vld [vmem:[%s1 + $0x328] sm:$0xf]
  %v241 = vld [vmem:[%s1 + $0x32c] sm:$0xf]
  %v242 = vld [vmem:[%s1 + $0x330] sm:$0xf]
  %v243 = vld [vmem:[%s1 + $0x334] sm:$0xf]
  %v244 = vld [vmem:[%s1 + $0x338] sm:$0xf]
  %v245 = vld [vmem:[%s1 + $0x33c] sm:$0xf]
  %v246 = vld [vmem:[%s1 + $0x340] sm:$0xf]
  %v247 = vld [vmem:[%s1 + $0x344] sm:$0xf]
  %v248 = vld [vmem:[%s1 + $0x348] sm:$0xf]
  %v249 = vld [vmem:[%s1 + $0x34c] sm:$0xf]
  %v250 = vld [vmem:[%s1 + $0x350] sm:$0xf]
  %v251 = vld [vmem:[%s1 + $0x354] sm:$0xf]
  %v252 = vld [vmem:[%s1 + $0x358] sm:$0xf]
  %v253 = vld [vmem:[%s1 + $0x35c] sm:$0xf]
  %v254 = vld [vmem:[%s1 + $0x360] sm:$0xf]
  %v255 = vld [vmem:[%s1 + $0x364] sm:$0xf]
  %v256 = vld [vmem:[%s1 + $0x368] sm:$0xf]
  %v257 = vld [vmem:[%s1 + $0x36c] sm:$0xf]
  %v258 = vld [vmem:[%s1 + $0x370] sm:$0xf]
  %v259 = vld [vmem:[%s1 + $0x374] sm:$0xf]
  %v260 = vld [vmem:[%s1 + $0x378] sm:$0xf]
  %v261 = vld [vmem:[%s1 + $0x37c] sm:$0xf]
  %v262 = vld [vmem:[%s1 + $0x380] sm:$0xf]
  %v263 = vld [vmem:[%s1 + $0x384] sm:$0xf]
  %v264 = vld [vmem:[%s1 + $0x388] sm:$0xf]
  %v265 = vld [vmem:[%s1 + $0x38c] sm:$0xf]
  %v266 = vld [vmem:[%s1 + $0x390] sm:$0xf]
  %v267 = vld [vmem:[%s1 + $0x394] sm:$0xf]
  %v268 = vld [vmem:[%s1 + $0x398] sm:$0xf]
  %v269 = vld [vmem:[%s1 + $0x39c] sm:$0xf]
  %v270 = vld [vmem:[%s1 + $0x3a0] sm:$0xf]
  %v271 = vld [vmem:[%s1 + $0x3a4] sm:$0xf]
  %v272 = vld [vmem:[%s1 + $0x3a8] sm:$0xf]
  %v273 = vld [vmem:[%s1 + $0x3ac] sm:$0xf]
  %v274 = vld [vmem:[%s1 + $0x3b0] sm:$0xf]
  %v275 = vld [vmem:[%s1 + $0x3b4] sm:$0xf]
  %v276 = vld [vmem:[%s1 + $0x3b8] sm:$0xf]
  %v277 = vld [vmem:[%s1 + $0x3bc] sm:$0xf]
  %v278 = vld [vmem:[%s1 + $0x3c0] sm:$0xf]
  %v279 = vld [vmem:[%s1 + $0x3c4] sm:$0xf]
  %v280 = vld [vmem:[%s1 + $0x3c8] sm:$0xf]
  %v281 = vld [vmem:[%s1 + $0x3cc] sm:$0xf]
  %v282 = vld [vmem:[%s1 + $0x3d0] sm:$0xf]
  %v283 = vld [vmem:[%s1 + $0x3d4] sm:$0xf]
  %v284 = vld [vmem:[%s1 + $0x3d8] sm:$0xf]
  %v285 = vld [vmem:[%s1 + $0x3dc] sm:$0xf]
  %v286 = vld [vmem:[%s1 + $0x3e0] sm:$0xf]
  %v287 = vld [vmem:[%s1 + $0x3e4] sm:$0xf]
  %v288 = vld [vmem:[%s1 + $0x3e8] sm:$0xf]
  %v289 = vld [vmem:[%s1 + $0x3ec] sm:$0xf]
  %v290 = vld [vmem:[%s1 + $0x3f0] sm:$0xf]
  %v291 = vld [vmem:[%s1 + $0x3f4] sm:$0xf]
  %v292 = vld [vmem:[%s1 + $0x3f8] sm:$0xf]
  %v293 = vld [vmem:[%s1 + $0x3fc] sm:$0xf]
  %v294 = vld [vmem:[%s1 + $0x400] sm:$0xf]
  %v295 = vld [vmem:[%s1 + $0x404] sm:$0xf]
  %v296 = vld [vmem:[%s1 + $0x408] sm:$0xf]
  %v297 = vld [vmem:[%s1 + $0x40c] sm:$0xf]
  %v298 = vld [vmem:[%s1 + $0x410] sm:$0xf]
  %v299 = vld [vmem:[%s1 + $0x414] sm:$0xf]
  %v300 = vld [vmem:[%s1 + $0x418] sm:$0xf]
  %v301 = vld [vmem:[%s1 + $0x41c] sm:$0xf]
  %v302 = vld [vmem:[%s1 + $0x420] sm:$0xf]
  %v303 = vld [vmem:[%s1 + $0x424] sm:$0xf]
  %v304 = vld [vmem:[%s1 + $0x428] sm:$0xf]
  %v305 = vld [vmem:[%s1 + $0x42c] sm:$0xf]
  %v306 = vld [vmem:[%s1 + $0x430] sm:$0xf]
  %v307 = vld [vmem:[%s1 + $0x434] sm:$0xf]
  %v308 = vld [vmem:[%s1 + $0x438] sm:$0xf]
  %v309 = vld [vmem:[%s1 + $0x43c] sm:$0xf]
  %v310 = vld [vmem:[%s1 + $0x440] sm:$0xf]
  %v311 = vld [vmem:[%s1 + $0x444] sm:$0xf]
  %v312 = vld [vmem:[%s1 + $0x448] sm:$0xf]
  %v313 = vld [vmem:[%s1 + $0x44c] sm:$0xf]
  %v314 = vld [vmem:[%s1 + $0x450] sm:$0xf]
  %v315 = vld [vmem:[%s1 + $0x454] sm:$0xf]
  %v316 = vld [vmem:[%s1 + $0x458] sm:$0xf]
  %v317 = vld [vmem:[%s1 + $0x45c] sm:$0xf]
  %v318 = vld [vmem:[%s1 + $0x460] sm:$0xf]
  %v319 = vld [vmem:[%s1 + $0x464] sm:$0xf]
  %v320 = vld [vmem:[%s1 + $0x468] sm:$0xf]
  %v321 = vld [vmem:[%s1 + $0x46c] sm:$0xf]
  %v322 = vld [vmem:[%s1 + $0x470] sm:$0xf]
  %v323 = vld [vmem:[%s1 + $0x474] sm:$0xf]
  %v324 = vld [vmem:[%s1 + $0x478] sm:$0xf]
  %v325 = vld [vmem:[%s1 + $0x47c] sm:$0xf]
  %v326 = vld [vmem:[%s1 + $0x480] sm:$0xf]
  %v327 = vld [vmem:[%s1 + $0x484] sm:$0xf]
  %v328 = vld [vmem:[%s1 + $0x488] sm:$0xf]
  %v329 = vld [vmem:[%s1 + $0x48c] sm:$0xf]
  %v330 = vld [vmem:[%s1 + $0x490] sm:$0xf]
  %v331 = vld [vmem:[%s1 + $0x494] sm:$0xf]
  %v332 = vld [vmem:[%s1 + $0x498] sm:$0xf]
  %v333 = vld [vmem:[%s1 + $0x49c] sm:$0xf]
  %v334 = vld [vmem:[%s1 + $0x4a0] sm:$0xf]
  %v335 = vld [vmem:[%s1 + $0x4a4] sm:$0xf]
  %v336 = vld [vmem:[%s1 + $0x4a8] sm:$0xf]
  %v337 = vld [vmem:[%s1 + $0x4ac] sm:$0xf]
  %v338 = vld [vmem:[%s1 + $0x4b0] sm:$0xf]
  %v339 = vld [vmem:[%s1 + $0x4b4] sm:$0xf]
  %v340 = vld [vmem:[%s1 + $0x4b8] sm:$0xf]
  %v341 = vld [vmem:[%s1 + $0x4bc] sm:$0xf]
  %v342 = vld [vmem:[%s1 + $0x4c0] sm:$0xf]
  %v343 = vld [vmem:[%s1 + $0x4c4] sm:$0xf]
  %v344 = vld [vmem:[%s1 + $0x4c8] sm:$0xf]
  %v345 = vld [vmem:[%s1 + $0x4cc] sm:$0xf]
  %v346 = vld [vmem:[%s1 + $0x4d0] sm:$0xf]
  %v347 = vld [vmem:[%s1 + $0x4d4] sm:$0xf]
  %v348 = vld [vmem:[%s1 + $0x4d8] sm:$0xf]
  %v349 = vld [vmem:[%s1 + $0x4dc] sm:$0xf]
  %v350 = vld [vmem:[%s1 + $0x4e0] sm:$0xf]
  %v351 = vld [vmem:[%s1 + $0x4e4] sm:$0xf]
  %v352 = vld [vmem:[%s1 + $0x4e8] sm:$0xf]
  %v353 = vld [vmem:[%s1 + $0x4ec] sm:$0xf]
  %v354 = vld [vmem:[%s1 + $0x4f0] sm:$0xf]
  %v355 = vld [vmem:[%s1 + $0x4f4] sm:$0xf]
  %v356 = vld [vmem:[%s1 + $0x4f8] sm:$0xf]
  %v357 = vld [vmem:[%s1 + $0x4fc] sm:$0xf]
  %v358 = vld [vmem:[%s1 + $0x500] sm:$0xf]
  %v359 = vld [vmem:[%s1 + $0x504] sm:$0xf]
  %v360 = vld [vmem:[%s1 + $0x508] sm:$0xf]
  %v361 = vld [vmem:[%s1 + $0x50c] sm:$0xf]
  %v362 = vld [vmem:[%s1 + $0x510] sm:$0xf]
  %v363 = vld [vmem:[%s1 + $0x514] sm:$0xf]
  %v364 = vld [vmem:[%s1 + $0x518] sm:$0xf]
  %v365 = vld [vmem:[%s1 + $0x51c] sm:$0xf]
  %v366 = vld [vmem:[%s1 + $0x520] sm:$0xf]
  %v367 = vld [vmem:[%s1 + $0x524] sm:$0xf]
  %v368 = vld [vmem:[%s1 + $0x528] sm:$0xf]
  %v369 = vld [vmem:[%s1 + $0x52c] sm:$0xf]
  %v370 = vld [vmem:[%s1 + $0x530] sm:$0xf]
  %v371 = vld [vmem:[%s1 + $0x534] sm:$0xf]
  %v372 = vld [vmem:[%s1 + $0x538] sm:$0xf]
  %v373 = vld [vmem:[%s1 + $0x53c] sm:$0xf]
  %v374 = vld [vmem:[%s1 + $0x540] sm:$0xf]
  %v375 = vld [vmem:[%s1 + $0x544] sm:$0xf]
  %v376 = vld [vmem:[%s1 + $0x548] sm:$0xf]
  %v377 = vld [vmem:[%s1 + $0x54c] sm:$0xf]
  %v378 = vld [vmem:[%s1 + $0x550] sm:$0xf]
  %v379 = vld [vmem:[%s1 + $0x554] sm:$0xf]
  %v380 = vld [vmem:[%s1 + $0x558] sm:$0xf]
  %v381 = vld [vmem:[%s1 + $0x55c] sm:$0xf]
  %v382 = vld [vmem:[%s1 + $0x560] sm:$0xf]
  %v383 = vld [vmem:[%s1 + $0x564] sm:$0xf]
  %v384 = vld [vmem:[%s1 + $0x568] sm:$0xf]
  %v385 = vld [vmem:[%s1 + $0x56c] sm:$0xf]
  %v386 = vld [vmem:[%s1 + $0x570] sm:$0xf]
  %v387 = vld [vmem:[%s1 + $0x574] sm:$0xf]
  %v388 = vld [vmem:[%s1 + $0x578] sm:$0xf]
  %v389 = vld [vmem:[%s1 + $0x57c] sm:$0xf]
  %v390 = vld [vmem:[%s1 + $0x580] sm:$0xf]
  %v391 = vld [vmem:[%s1 + $0x584] sm:$0xf]
  %v392 = vld [vmem:[%s1 + $0x588] sm:$0xf]
  %v393 = vld [vmem:[%s1 + $0x58c] sm:$0xf]
  %v394 = vld [vmem:[%s1 + $0x590] sm:$0xf]
  %v395 = vld [vmem:[%s1 + $0x594] sm:$0xf]
  %v396 = vld [vmem:[%s1 + $0x598] sm:$0xf]
  %v397 = vld [vmem:[%s1 + $0x59c] sm:$0xf]
  %v398 = vld [vmem:[%s1 + $0x5a0] sm:$0xf]
  %v399 = vld [vmem:[%s1 + $0x5a4] sm:$0xf]
  %v400 = vld [vmem:[%s1 + $0x5a8] sm:$0xf]
  %v401 = vld [vmem:[%s1 + $0x5ac] sm:$0xf]
  %v402 = vld [vmem:[%s1 + $0x5b0] sm:$0xf]
  %v403 = vld [vmem:[%s1 + $0x5b4] sm:$0xf]
  %v404 = vld [vmem:[%s1 + $0x5b8] sm:$0xf]
  %v405 = vld [vmem:[%s1 + $0x5bc] sm:$0xf]
  %v406 = vld [vmem:[%s1 + $0x5c0] sm:$0xf]
  %v407 = vld [vmem:[%s1 + $0x5c4] sm:$0xf]
  %v408 = vld [vmem:[%s1 + $0x5c8] sm:$0xf]
  %v409 = vld [vmem:[%s1 + $0x5cc] sm:$0xf]
  %v410 = vld [vmem:[%s1 + $0x5d0] sm:$0xf]
  %v411 = vld [vmem:[%s1 + $0x5d4] sm:$0xf]
  %v412 = vld [vmem:[%s1 + $0x5d8] sm:$0xf]
  %v413 = vld [vmem:[%s1 + $0x5dc] sm:$0xf]
  %v414 = vld [vmem:[%s1 + $0x5e0] sm:$0xf]
  %v415 = vld [vmem:[%s1 + $0x5e4] sm:$0xf]
  %v416 = vld [vmem:[%s1 + $0x5e8] sm:$0xf]
  %v417 = vld [vmem:[%s1 + $0x5ec] sm:$0xf]
  %v418 = vld [vmem:[%s1 + $0x5f0] sm:$0xf]
  %v419 = vld [vmem:[%s1 + $0x5f4] sm:$0xf]
  %v420 = vld [vmem:[%s1 + $0x5f8] sm:$0xf]
  %v421 = vld [vmem:[%s1 + $0x5fc] sm:$0xf]
  %v422 = vld [vmem:[%s1 + $0x600] sm:$0xf]
  %v423 = vld [vmem:[%s1 + $0x604] sm:$0xf]
  %v424 = vld [vmem:[%s1 + $0x608] sm:$0xf]
  %v425 = vld [vmem:[%s1 + $0x60c] sm:$0xf]
  %v426 = vld [vmem:[%s1 + $0x610] sm:$0xf]
  %v427 = vld [vmem:[%s1 + $0x614] sm:$0xf]
  %v428 = vld [vmem:[%s1 + $0x618] sm:$0xf]
  %v429 = vld [vmem:[%s1 + $0x61c] sm:$0xf]
  %v430 = vld [vmem:[%s1 + $0x620] sm:$0xf]
  %v431 = vld [vmem:[%s1 + $0x624] sm:$0xf]
  %v432 = vld [vmem:[%s1 + $0x628] sm:$0xf]
  %v433 = vld [vmem:[%s1 + $0x62c] sm:$0xf]
  %v434 = vld [vmem:[%s1 + $0x630] sm:$0xf]
  %v435 = vld [vmem:[%s1 + $0x634] sm:$0xf]
  %v436 = vld [vmem:[%s1 + $0x638] sm:$0xf]
  %v437 = vld [vmem:[%s1 + $0x63c] sm:$0xf]
  %v438 = vld [vmem:[%s1 + $0x640] sm:$0xf]
  %v439 = vld [vmem:[%s1 + $0x644] sm:$0xf]
  %v440 = vld [vmem:[%s1 + $0x648] sm:$0xf]
  %v441 = vld [vmem:[%s1 + $0x64c] sm:$0xf]
  %v442 = vld [vmem:[%s1 + $0x650] sm:$0xf]
  %v443 = vld [vmem:[%s1 + $0x654] sm:$0xf]
  %v444 = vld [vmem:[%s1 + $0x658] sm:$0xf]
  %v445 = vld [vmem:[%s1 + $0x65c] sm:$0xf]
  %v446 = vld [vmem:[%s1 + $0x660] sm:$0xf]
  %v447 = vld [vmem:[%s1 + $0x664] sm:$0xf]
  %v448 = vld [vmem:[%s1 + $0x668] sm:$0xf]
  %v449 = vld [vmem:[%s1 + $0x66c] sm:$0xf]
  %v450 = vld [vmem:[%s1 + $0x670] sm:$0xf]
  %v451 = vld [vmem:[%s1 + $0x674] sm:$0xf]
  %v452 = vld [vmem:[%s1 + $0x678] sm:$0xf]
  %v453 = vld [vmem:[%s1 + $0x67c] sm:$0xf]
  %v454 = vld [vmem:[%s1 + $0x680] sm:$0xf]
  %v455 = vld [vmem:[%s1 + $0x684] sm:$0xf]
  %v456 = vld [vmem:[%s1 + $0x688] sm:$0xf]
  %v457 = vld [vmem:[%s1 + $0x68c] sm:$0xf]
  %v458 = vld [vmem:[%s1 + $0x690] sm:$0xf]
  %v459 = vld [vmem:[%s1 + $0x694] sm:$0xf]
  %v460 = vld [vmem:[%s1 + $0x698] sm:$0xf]
  %v461 = vld [vmem:[%s1 + $0x69c] sm:$0xf]
  %v462 = vld [vmem:[%s1 + $0x6a0] sm:$0xf]
  %v463 = vld [vmem:[%s1 + $0x6a4] sm:$0xf]
  %v464 = vld [vmem:[%s1 + $0x6a8] sm:$0xf]
  %v465 = vld [vmem:[%s1 + $0x6ac] sm:$0xf]
  %v466 = vld [vmem:[%s1 + $0x6b0] sm:$0xf]
  %v467 = vld [vmem:[%s1 + $0x6b4] sm:$0xf]
  %v468 = vld [vmem:[%s1 + $0x6b8] sm:$0xf]
  %v469 = vld [vmem:[%s1 + $0x6bc] sm:$0xf]
  %v470 = vld [vmem:[%s1 + $0x6c0] sm:$0xf]
  %v471 = vld [vmem:[%s1 + $0x6c4] sm:$0xf]
  %v472 = vld [vmem:[%s1 + $0x6c8] sm:$0xf]
  %v473 = vld [vmem:[%s1 + $0x6cc] sm:$0xf]
  %v474 = vld [vmem:[%s1 + $0x6d0] sm:$0xf]
  %v475 = vld [vmem:[%s1 + $0x6d4] sm:$0xf]
  %v476 = vld [vmem:[%s1 + $0x6d8] sm:$0xf]
  %v477 = vld [vmem:[%s1 + $0x6dc] sm:$0xf]
  %v478 = vld [vmem:[%s1 + $0x6e0] sm:$0xf]
  %v479 = vld [vmem:[%s1 + $0x6e4] sm:$0xf]
  %v480 = vld [vmem:[%s1 + $0x6e8] sm:$0xf]
  %v481 = vld [vmem:[%s1 + $0x6ec] sm:$0xf]
  %v482 = vld [vmem:[%s1 + $0x6f0] sm:$0xf]
  %v483 = vld [vmem:[%s1 + $0x6f4] sm:$0xf]
  %v484 = vld [vmem:[%s1 + $0x6f8] sm:$0xf]
  %v485 = vld [vmem:[%s1 + $0x6fc] sm:$0xf]
  %v486 = vld [vmem:[%s1 + $0x700] sm:$0xf]
  %v487 = vld [vmem:[%s1 + $0x704] sm:$0xf]
  %v488 = vld [vmem:[%s1 + $0x708] sm:$0xf]
  %v489 = vld [vmem:[%s1 + $0x70c] sm:$0xf]
  %v490 = vld [vmem:[%s1 + $0x710] sm:$0xf]
  %v491 = vld [vmem:[%s1 + $0x714] sm:$0xf]
  %v492 = vld [vmem:[%s1 + $0x718] sm:$0xf]
  %v493 = vld [vmem:[%s1 + $0x71c] sm:$0xf]
  %v494 = vld [vmem:[%s1 + $0x720] sm:$0xf]
  %v495 = vld [vmem:[%s1 + $0x724] sm:$0xf]
  %v496 = vld [vmem:[%s1 + $0x728] sm:$0xf]
  %v497 = vld [vmem:[%s1 + $0x72c] sm:$0xf]
  %v498 = vld [vmem:[%s1 + $0x730] sm:$0xf]
  %v499 = vld [vmem:[%s1 + $0x734] sm:$0xf]
  %v500 = vld [vmem:[%s1 + $0x738] sm:$0xf]
  %v501 = vld [vmem:[%s1 + $0x73c] sm:$0xf]
  %v502 = vld [vmem:[%s1 + $0x740] sm:$0xf]
  %v503 = vld [vmem:[%s1 + $0x744] sm:$0xf]
  %v504 = vld [vmem:[%s1 + $0x748] sm:$0xf]
  %v505 = vld [vmem:[%s1 + $0x74c] sm:$0xf]
  %v506 = vld [vmem:[%s1 + $0x750] sm:$0xf]
  %v507 = vld [vmem:[%s1 + $0x754] sm:$0xf]
  %v508 = vld [vmem:[%s1 + $0x758] sm:$0xf]
  %v509 = vld [vmem:[%s1 + $0x75c] sm:$0xf]
  %v510 = vld [vmem:[%s1 + $0x760] sm:$0xf]
  %v511 = vld [vmem:[%s1 + $0x764] sm:$0xf]
  %v512 = vld [vmem:[%s1 + $0x768] sm:$0xf]
  %v513 = vld [vmem:[%s1 + $0x76c] sm:$0xf]
  %v514 = vld [vmem:[%s1 + $0x770] sm:$0xf]
  %v515 = vld [vmem:[%s1 + $0x774] sm:$0xf]
  %v516 = vld [vmem:[%s1 + $0x778] sm:$0xf]
  %v517 = vld [vmem:[%s1 + $0x77c] sm:$0xf]
  %v518 = vld [vmem:[%s1 + $0x780] sm:$0xf]
  %v519 = vld [vmem:[%s1 + $0x784] sm:$0xf]
  %v520 = vld [vmem:[%s1 + $0x788] sm:$0xf]
  %v521 = vld [vmem:[%s1 + $0x78c] sm:$0xf]
  %v522 = vld [vmem:[%s1 + $0x790] sm:$0xf]
  %v523 = vld [vmem:[%s1 + $0x794] sm:$0xf]
  %v524 = vld [vmem:[%s1 + $0x798] sm:$0xf]
  %v525 = vld [vmem:[%s1 + $0x79c] sm:$0xf]
  %v526 = vld [vmem:[%s1 + $0x7a0] sm:$0xf]
  %v527 = vld [vmem:[%s1 + $0x7a4] sm:$0xf]
  %v528 = vld [vmem:[%s1 + $0x7a8] sm:$0xf]
  %v529 = vld [vmem:[%s1 + $0x7ac] sm:$0xf]
  %v530 = vld [vmem:[%s1 + $0x7b0] sm:$0xf]
  %v531 = vld [vmem:[%s1 + $0x7b4] sm:$0xf]
  %v532 = vld [vmem:[%s1 + $0x7b8] sm:$0xf]
  %v533 = vld [vmem:[%s1 + $0x7bc] sm:$0xf]
  %v534 = vld [vmem:[%s1 + $0x7c0] sm:$0xf]
  %v535 = vld [vmem:[%s1 + $0x7c4] sm:$0xf]
  %v536 = vld [vmem:[%s1 + $0x7c8] sm:$0xf]
  %v537 = vld [vmem:[%s1 + $0x7cc] sm:$0xf]
  %v538 = vld [vmem:[%s1 + $0x7d0] sm:$0xf]
  %v539 = vld [vmem:[%s1 + $0x7d4] sm:$0xf]
  %v540 = vld [vmem:[%s1 + $0x7d8] sm:$0xf]
  %v541 = vld [vmem:[%s1 + $0x7dc] sm:$0xf]
  %v542 = vld [vmem:[%s1 + $0x7e0] sm:$0xf]
  %v543 = vld [vmem:[%s1 + $0x7e4] sm:$0xf]
  %v544 = vld [vmem:[%s1 + $0x7e8] sm:$0xf]
  %v545 = vld [vmem:[%s1 + $0x7ec] sm:$0xf]
  %v546 = vld [vmem:[%s1 + $0x7f0] sm:$0xf]
  %v547 = vld [vmem:[%s1 + $0x7f4] sm:$0xf]
  %v548 = vld [vmem:[%s1 + $0x7f8] sm:$0xf]
  %v549 = vld [vmem:[%s1 + $0x7fc] sm:$0xf]
  %v550 = vld [vmem:[%s1 + $0x800] sm:$0xf]
  %v551 = vld [vmem:[%s1 + $0x804] sm:$0xf]
  %v552 = vld [vmem:[%s1 + $0x808] sm:$0xf]
  %v553 = vld [vmem:[%s1 + $0x80c] sm:$0xf]
  %v554 = vld [vmem:[%s1 + $0x810] sm:$0xf]
  %v555 = vld [vmem:[%s1 + $0x814] sm:$0xf]
  %v556 = vld [vmem:[%s1 + $0x818] sm:$0xf]
  %v557 = vld [vmem:[%s1 + $0x81c] sm:$0xf]
  %v558 = vld [vmem:[%s1 + $0x820] sm:$0xf]
  %v559 = vld [vmem:[%s1 + $0x824] sm:$0xf]
  %v560 = vld [vmem:[%s1 + $0x828] sm:$0xf]
  %v561 = vld [vmem:[%s1 + $0x82c] sm:$0xf]
  %v562 = vld [vmem:[%s1 + $0x830] sm:$0xf]
  %v563 = vld [vmem:[%s1 + $0x834] sm:$0xf]
  %v564 = vld [vmem:[%s1 + $0x838] sm:$0xf]
  %v565 = vld [vmem:[%s1 + $0x83c] sm:$0xf]
  %v566 = vld [vmem:[%s1 + $0x840] sm:$0xf]
  %v567 = vld [vmem:[%s1 + $0x844] sm:$0xf]
  %v568 = vld [vmem:[%s1 + $0x848] sm:$0xf]
  %v569 = vld [vmem:[%s1 + $0x84c] sm:$0xf]
  %v570 = vld [vmem:[%s1 + $0x850] sm:$0xf]
  %v571 = vld [vmem:[%s1 + $0x854] sm:$0xf]
  %v572 = vld [vmem:[%s1 + $0x858] sm:$0xf]
  %v573 = vld [vmem:[%s1 + $0x85c] sm:$0xf]
  %v574 = vld [vmem:[%s1 + $0x860] sm:$0xf]
  %v575 = vld [vmem:[%s1 + $0x864] sm:$0xf]
  %v576 = vld [vmem:[%s1 + $0x868] sm:$0xf]
  %v577 = vld [vmem:[%s1 + $0x86c] sm:$0xf]
  %v578 = vld [vmem:[%s1 + $0x870] sm:$0xf]
  %v579 = vld [vmem:[%s1 + $0x874] sm:$0xf]
  %v580 = vld [vmem:[%s1 + $0x878] sm:$0xf]
  %v581 = vld [vmem:[%s1 + $0x87c] sm:$0xf]
  %v582 = vld [vmem:[%s1 + $0x880] sm:$0xf]
  %v583 = vld [vmem:[%s1 + $0x884] sm:$0xf]
  %v584 = vld [vmem:[%s1 + $0x888] sm:$0xf]
  %v585 = vld [vmem:[%s1 + $0x88c] sm:$0xf]
  %v586 = vld [vmem:[%s1 + $0x890] sm:$0xf]
  %v587 = vld [vmem:[%s1 + $0x894] sm:$0xf]
  %v588 = vld [vmem:[%s1 + $0x898] sm:$0xf]
  %v589 = vld [vmem:[%s1 + $0x89c] sm:$0xf]
  %v590 = vld [vmem:[%s1 + $0x8a0] sm:$0xf]
  %v591 = vld [vmem:[%s1 + $0x8a4] sm:$0xf]
  %v592 = vld [vmem:[%s1 + $0x8a8] sm:$0xf]
  %v593 = vld [vmem:[%s1 + $0x8ac] sm:$0xf]
  %v594 = vld [vmem:[%s1 + $0x8b0] sm:$0xf]
  %v595 = vld [vmem:[%s1 + $0x8b4] sm:$0xf]
  %v596 = vld [vmem:[%s1 + $0x8b8] sm:$0xf]
  %v597 = vld [vmem:[%s1 + $0x8bc] sm:$0xf]
  %v598 = vld [vmem:[%s1 + $0x8c0] sm:$0xf]
  %v599 = vld [vmem:[%s1 + $0x8c4] sm:$0xf]
  %v600 = vld [vmem:[%s1 + $0x8c8] sm:$0xf]
  %v601 = vld [vmem:[%s1 + $0x8cc] sm:$0xf]
  %v602 = vld [vmem:[%s1 + $0x8d0] sm:$0xf]
  %v603 = vld [vmem:[%s1 + $0x8d4] sm:$0xf]
  %v604 = vld [vmem:[%s1 + $0x8d8] sm:$0xf]
  %v605 = vld [vmem:[%s1 + $0x8dc] sm:$0xf]
  %v606 = vld [vmem:[%s1 + $0x8e0] sm:$0xf]
  %v607 = vld [vmem:[%s1 + $0x8e4] sm:$0xf]
  %v608 = vld [vmem:[%s1 + $0x8e8] sm:$0xf]
  %v609 = vld [vmem:[%s1 + $0x8ec] sm:$0xf]
  %v610 = vld [vmem:[%s1 + $0x8f0] sm:$0xf]
  %v611 = vld [vmem:[%s1 + $0x8f4] sm:$0xf]
  %v612 = vld [vmem:[%s1 + $0x8f8] sm:$0xf]
  %v613 = vld [vmem:[%s1 + $0x8fc] sm:$0xf]
  %v614 = vld [vmem:[%s2] sm:$0x1]
  %v616 = vperm.slane %v614, 0
  %v636 = vunpack.c.l.b16 %v20
  %v637 = vunpack.c.h.b16 %v20
  %v638 = vunpack.c.l.b16 %v21
  %v639 = vunpack.c.h.b16 %v21
  %v640 = vunpack.c.l.b16 %v22
  %v641 = vunpack.c.h.b16 %v22
  %v642 = vunpack.c.l.b16 %v23
  %v643 = vunpack.c.h.b16 %v23
  %v644 = vunpack.c.l.b16 %v24
  %v645 = vunpack.c.h.b16 %v24
  %v646 = vunpack.c.l.b16 %v25
  %v647 = vunpack.c.h.b16 %v25
  %v648 = vunpack.c.l.b16 %v26
  %v649 = vunpack.c.h.b16 %v26
  %v650 = vunpack.c.l.b16 %v27
  %v651 = vunpack.c.h.b16 %v27
  %v652 = vunpack.c.l.b16 %v28
  %v653 = vunpack.c.h.b16 %v28
  %v654 = vunpack.c.l.b16 %v29
  %v655 = vunpack.c.h.b16 %v29
  %v656 = vunpack.c.l.b16 %v30
  %v657 = vunpack.c.h.b16 %v30
  %v658 = vunpack.c.l.b16 %v31
  %v659 = vunpack.c.h.b16 %v31
  %v660 = vunpack.c.l.b16 %v32
  %v661 = vunpack.c.h.b16 %v32
  %v662 = vunpack.c.l.b16 %v33
  %v663 = vunpack.c.h.b16 %v33
  %v664 = vunpack.c.l.b16 %v34
  %v665 = vunpack.c.h.b16 %v34
  %v666 = vunpack.c.l.b16 %v35
  %v667 = vunpack.c.h.b16 %v35
  %v668 = vunpack.c.l.b16 %v36
  %v669 = vunpack.c.h.b16 %v36
  %v670 = vunpack.c.l.b16 %v37
  %v671 = vunpack.c.h.b16 %v37
  %v672 = vpack.c.b16 %v636, %v636
  %v673 = vpack.c.b16 %v637, %v637
  %v674 = vpack.c.b16 %v638, %v638
  %v675 = vpack.c.b16 %v639, %v639
  %v676 = vpack.c.b16 %v640, %v640
  %v677 = vpack.c.b16 %v641, %v641
  %v678 = vpack.c.b16 %v642, %v642
  %v679 = vpack.c.b16 %v643, %v643
  %v680 = vpack.c.b16 %v644, %v644
  %v681 = vpack.c.b16 %v645, %v645
  %v682 = vpack.c.b16 %v646, %v646
  %v683 = vpack.c.b16 %v647, %v647
  %v684 = vpack.c.b16 %v648, %v648
  %v685 = vpack.c.b16 %v649, %v649
  %v686 = vpack.c.b16 %v650, %v650
  %v687 = vpack.c.b16 %v651, %v651
  %v688 = vpack.c.b16 %v652, %v652
  %v689 = vpack.c.b16 %v653, %v653
  %v690 = vpack.c.b16 %v654, %v654
  %v691 = vpack.c.b16 %v655, %v655
  %v692 = vpack.c.b16 %v656, %v656
  %v693 = vpack.c.b16 %v657, %v657
  %v694 = vpack.c.b16 %v658, %v658
  %v695 = vpack.c.b16 %v659, %v659
  %v696 = vpack.c.b16 %v660, %v660
  %v697 = vpack.c.b16 %v661, %v661
  %v698 = vpack.c.b16 %v662, %v662
  %v699 = vpack.c.b16 %v663, %v663
  %v700 = vpack.c.b16 %v664, %v664
  %v701 = vpack.c.b16 %v665, %v665
  %v702 = vpack.c.b16 %v666, %v666
  %v703 = vpack.c.b16 %v667, %v667
  %v704 = vpack.c.b16 %v668, %v668
  %v705 = vpack.c.b16 %v669, %v669
  %v706 = vpack.c.b16 %v670, %v670
  %v707 = vpack.c.b16 %v671, %v671
  %v1320 = vunpack.c.l.b16 %v38
  %v1321 = vunpack.c.l.b16 %v39
  %v1322 = vunpack.c.l.b16 %v40
  %v1323 = vunpack.c.l.b16 %v41
  %v1324 = vunpack.c.l.b16 %v42
  %v1325 = vunpack.c.l.b16 %v43
  %v1326 = vunpack.c.l.b16 %v44
  %v1327 = vunpack.c.l.b16 %v45
  %v1328 = vunpack.c.l.b16 %v46
  %v1329 = vunpack.c.l.b16 %v47
  %v1330 = vunpack.c.l.b16 %v48
  %v1331 = vunpack.c.l.b16 %v49
  %v1332 = vunpack.c.l.b16 %v50
  %v1333 = vunpack.c.l.b16 %v51
  %v1334 = vunpack.c.l.b16 %v52
  %v1335 = vunpack.c.l.b16 %v53
  %v1336 = vunpack.c.l.b16 %v54
  %v1337 = vunpack.c.l.b16 %v55
  %v1338 = vunpack.c.l.b16 %v56
  %v1339 = vunpack.c.l.b16 %v57
  %v1340 = vunpack.c.l.b16 %v58
  %v1341 = vunpack.c.l.b16 %v59
  %v1342 = vunpack.c.l.b16 %v60
  %v1343 = vunpack.c.l.b16 %v61
  %v1344 = vunpack.c.l.b16 %v62
  %v1345 = vunpack.c.l.b16 %v63
  %v1346 = vunpack.c.l.b16 %v64
  %v1347 = vunpack.c.l.b16 %v65
  %v1348 = vunpack.c.l.b16 %v66
  %v1349 = vunpack.c.l.b16 %v67
  %v1350 = vunpack.c.l.b16 %v68
  %v1351 = vunpack.c.l.b16 %v69
  %v1352 = vunpack.c.l.b16 %v70
  %v1353 = vunpack.c.l.b16 %v71
  %v1354 = vunpack.c.l.b16 %v72
  %v1355 = vunpack.c.l.b16 %v73
  %v1356 = vunpack.c.l.b16 %v74
  %v1357 = vunpack.c.l.b16 %v75
  %v1358 = vunpack.c.l.b16 %v76
  %v1359 = vunpack.c.l.b16 %v77
  %v1360 = vunpack.c.l.b16 %v78
  %v1361 = vunpack.c.l.b16 %v79
  %v1362 = vunpack.c.l.b16 %v80
  %v1363 = vunpack.c.l.b16 %v81
  %v1364 = vunpack.c.l.b16 %v82
  %v1365 = vunpack.c.l.b16 %v83
  %v1366 = vunpack.c.l.b16 %v84
  %v1367 = vunpack.c.l.b16 %v85
  %v1368 = vunpack.c.l.b16 %v86
  %v1369 = vunpack.c.l.b16 %v87
  %v1370 = vunpack.c.l.b16 %v88
  %v1371 = vunpack.c.l.b16 %v89
  %v1372 = vunpack.c.l.b16 %v90
  %v1373 = vunpack.c.l.b16 %v91
  %v1374 = vunpack.c.l.b16 %v92
  %v1375 = vunpack.c.l.b16 %v93
  %v1376 = vunpack.c.l.b16 %v94
  %v1377 = vunpack.c.l.b16 %v95
  %v1378 = vunpack.c.l.b16 %v96
  %v1379 = vunpack.c.l.b16 %v97
  %v1380 = vunpack.c.l.b16 %v98
  %v1381 = vunpack.c.l.b16 %v99
  %v1382 = vunpack.c.l.b16 %v100
  %v1383 = vunpack.c.l.b16 %v101
  %v1384 = vunpack.c.l.b16 %v102
  %v1385 = vunpack.c.l.b16 %v103
  %v1386 = vunpack.c.l.b16 %v104
  %v1387 = vunpack.c.l.b16 %v105
  %v1388 = vunpack.c.l.b16 %v106
  %v1389 = vunpack.c.l.b16 %v107
  %v1390 = vunpack.c.l.b16 %v108
  %v1391 = vunpack.c.l.b16 %v109
  %v1392 = vunpack.c.l.b16 %v110
  %v1393 = vunpack.c.l.b16 %v111
  %v1394 = vunpack.c.l.b16 %v112
  %v1395 = vunpack.c.l.b16 %v113
  %v1396 = vunpack.c.l.b16 %v114
  %v1397 = vunpack.c.l.b16 %v115
  %v1398 = vunpack.c.l.b16 %v116
  %v1399 = vunpack.c.l.b16 %v117
  %v1400 = vunpack.c.l.b16 %v118
  %v1401 = vunpack.c.l.b16 %v119
  %v1402 = vunpack.c.l.b16 %v120
  %v1403 = vunpack.c.l.b16 %v121
  %v1404 = vunpack.c.l.b16 %v122
  %v1405 = vunpack.c.l.b16 %v123
  %v1406 = vunpack.c.l.b16 %v124
  %v1407 = vunpack.c.l.b16 %v125
  %v1408 = vunpack.c.l.b16 %v126
  %v1409 = vunpack.c.l.b16 %v127
  %v1410 = vunpack.c.l.b16 %v128
  %v1411 = vunpack.c.l.b16 %v129
  %v1412 = vunpack.c.l.b16 %v130
  %v1413 = vunpack.c.l.b16 %v131
  %v1414 = vunpack.c.l.b16 %v132
  %v1415 = vunpack.c.l.b16 %v133
  %v1416 = vunpack.c.l.b16 %v134
  %v1417 = vunpack.c.l.b16 %v135
  %v1418 = vunpack.c.l.b16 %v136
  %v1419 = vunpack.c.l.b16 %v137
  %v1420 = vunpack.c.l.b16 %v138
  %v1421 = vunpack.c.l.b16 %v139
  %v1422 = vunpack.c.l.b16 %v140
  %v1423 = vunpack.c.l.b16 %v141
  %v1424 = vunpack.c.l.b16 %v142
  %v1425 = vunpack.c.l.b16 %v143
  %v1426 = vunpack.c.l.b16 %v144
  %v1427 = vunpack.c.l.b16 %v145
  %v1428 = vunpack.c.l.b16 %v146
  %v1429 = vunpack.c.l.b16 %v147
  %v1430 = vunpack.c.l.b16 %v148
  %v1431 = vunpack.c.l.b16 %v149
  %v1432 = vunpack.c.l.b16 %v150
  %v1433 = vunpack.c.l.b16 %v151
  %v1434 = vunpack.c.l.b16 %v152
  %v1435 = vunpack.c.l.b16 %v153
  %v1436 = vunpack.c.l.b16 %v154
  %v1437 = vunpack.c.l.b16 %v155
  %v1438 = vunpack.c.l.b16 %v156
  %v1439 = vunpack.c.l.b16 %v157
  %v1440 = vunpack.c.l.b16 %v158
  %v1441 = vunpack.c.l.b16 %v159
  %v1442 = vunpack.c.l.b16 %v160
  %v1443 = vunpack.c.l.b16 %v161
  %v1444 = vunpack.c.l.b16 %v162
  %v1445 = vunpack.c.l.b16 %v163
  %v1446 = vunpack.c.l.b16 %v164
  %v1447 = vunpack.c.l.b16 %v165
  %v1448 = vunpack.c.l.b16 %v166
  %v1449 = vunpack.c.l.b16 %v167
  %v1450 = vunpack.c.l.b16 %v168
  %v1451 = vunpack.c.l.b16 %v169
  %v1452 = vunpack.c.l.b16 %v170
  %v1453 = vunpack.c.l.b16 %v171
  %v1454 = vunpack.c.l.b16 %v172
  %v1455 = vunpack.c.l.b16 %v173
  %v1456 = vunpack.c.l.b16 %v174
  %v1457 = vunpack.c.l.b16 %v175
  %v1458 = vunpack.c.l.b16 %v176
  %v1459 = vunpack.c.l.b16 %v177
  %v1460 = vunpack.c.l.b16 %v178
  %v1461 = vunpack.c.l.b16 %v179
  %v1462 = vunpack.c.l.b16 %v180
  %v1463 = vunpack.c.l.b16 %v181
  %v1464 = vunpack.c.l.b16 %v182
  %v1465 = vunpack.c.l.b16 %v183
  %v1466 = vunpack.c.l.b16 %v184
  %v1467 = vunpack.c.l.b16 %v185
  %v1468 = vunpack.c.l.b16 %v186
  %v1469 = vunpack.c.l.b16 %v187
  %v1470 = vunpack.c.l.b16 %v188
  %v1471 = vunpack.c.l.b16 %v189
  %v1472 = vunpack.c.l.b16 %v190
  %v1473 = vunpack.c.l.b16 %v191
  %v1474 = vunpack.c.l.b16 %v192
  %v1475 = vunpack.c.l.b16 %v193
  %v1476 = vunpack.c.l.b16 %v194
  %v1477 = vunpack.c.l.b16 %v195
  %v1478 = vunpack.c.l.b16 %v196
  %v1479 = vunpack.c.l.b16 %v197
  %v1480 = vunpack.c.l.b16 %v198
  %v1481 = vunpack.c.l.b16 %v199
  %v1482 = vunpack.c.l.b16 %v200
  %v1483 = vunpack.c.l.b16 %v201
  %v1484 = vunpack.c.l.b16 %v202
  %v1485 = vunpack.c.l.b16 %v203
  %v1486 = vunpack.c.l.b16 %v204
  %v1487 = vunpack.c.l.b16 %v205
  %v1488 = vunpack.c.l.b16 %v206
  %v1489 = vunpack.c.l.b16 %v207
  %v1490 = vunpack.c.l.b16 %v208
  %v1491 = vunpack.c.l.b16 %v209
  %v1492 = vunpack.c.l.b16 %v210
  %v1493 = vunpack.c.l.b16 %v211
  %v1494 = vunpack.c.l.b16 %v212
  %v1495 = vunpack.c.l.b16 %v213
  %v1496 = vunpack.c.l.b16 %v214
  %v1497 = vunpack.c.l.b16 %v215
  %v1498 = vunpack.c.l.b16 %v216
  %v1499 = vunpack.c.l.b16 %v217
  %v1500 = vunpack.c.l.b16 %v218
  %v1501 = vunpack.c.l.b16 %v219
  %v1502 = vunpack.c.l.b16 %v220
  %v1503 = vunpack.c.l.b16 %v221
  %v1504 = vunpack.c.l.b16 %v222
  %v1505 = vunpack.c.l.b16 %v223
  %v1506 = vunpack.c.l.b16 %v224
  %v1507 = vunpack.c.l.b16 %v225
  %v1508 = vunpack.c.l.b16 %v226
  %v1509 = vunpack.c.l.b16 %v227
  %v1510 = vunpack.c.l.b16 %v228
  %v1511 = vunpack.c.l.b16 %v229
  %v1512 = vunpack.c.l.b16 %v230
  %v1513 = vunpack.c.l.b16 %v231
  %v1514 = vunpack.c.l.b16 %v232
  %v1515 = vunpack.c.l.b16 %v233
  %v1516 = vunpack.c.l.b16 %v234
  %v1517 = vunpack.c.l.b16 %v235
  %v1518 = vunpack.c.l.b16 %v236
  %v1519 = vunpack.c.l.b16 %v237
  %v1520 = vunpack.c.l.b16 %v238
  %v1521 = vunpack.c.l.b16 %v239
  %v1522 = vunpack.c.l.b16 %v240
  %v1523 = vunpack.c.l.b16 %v241
  %v1524 = vunpack.c.l.b16 %v242
  %v1525 = vunpack.c.l.b16 %v243
  %v1526 = vunpack.c.l.b16 %v244
  %v1527 = vunpack.c.l.b16 %v245
  %v1528 = vunpack.c.l.b16 %v246
  %v1529 = vunpack.c.l.b16 %v247
  %v1530 = vunpack.c.l.b16 %v248
  %v1531 = vunpack.c.l.b16 %v249
  %v1532 = vunpack.c.l.b16 %v250
  %v1533 = vunpack.c.l.b16 %v251
  %v1534 = vunpack.c.l.b16 %v252
  %v1535 = vunpack.c.l.b16 %v253
  %v1536 = vunpack.c.l.b16 %v254
  %v1537 = vunpack.c.l.b16 %v255
  %v1538 = vunpack.c.l.b16 %v256
  %v1539 = vunpack.c.l.b16 %v257
  %v1540 = vunpack.c.l.b16 %v258
  %v1541 = vunpack.c.l.b16 %v259
  %v1542 = vunpack.c.l.b16 %v260
  %v1543 = vunpack.c.l.b16 %v261
  %v1544 = vunpack.c.l.b16 %v262
  %v1545 = vunpack.c.l.b16 %v263
  %v1546 = vunpack.c.l.b16 %v264
  %v1547 = vunpack.c.l.b16 %v265
  %v1548 = vunpack.c.l.b16 %v266
  %v1549 = vunpack.c.l.b16 %v267
  %v1550 = vunpack.c.l.b16 %v268
  %v1551 = vunpack.c.l.b16 %v269
  %v1552 = vunpack.c.l.b16 %v270
  %v1553 = vunpack.c.l.b16 %v271
  %v1554 = vunpack.c.l.b16 %v272
  %v1555 = vunpack.c.l.b16 %v273
  %v1556 = vunpack.c.l.b16 %v274
  %v1557 = vunpack.c.l.b16 %v275
  %v1558 = vunpack.c.l.b16 %v276
  %v1559 = vunpack.c.l.b16 %v277
  %v1560 = vunpack.c.l.b16 %v278
  %v1561 = vunpack.c.l.b16 %v279
  %v1562 = vunpack.c.l.b16 %v280
  %v1563 = vunpack.c.l.b16 %v281
  %v1564 = vunpack.c.l.b16 %v282
  %v1565 = vunpack.c.l.b16 %v283
  %v1566 = vunpack.c.l.b16 %v284
  %v1567 = vunpack.c.l.b16 %v285
  %v1568 = vunpack.c.l.b16 %v286
  %v1569 = vunpack.c.l.b16 %v287
  %v1570 = vunpack.c.l.b16 %v288
  %v1571 = vunpack.c.l.b16 %v289
  %v1572 = vunpack.c.l.b16 %v290
  %v1573 = vunpack.c.l.b16 %v291
  %v1574 = vunpack.c.l.b16 %v292
  %v1575 = vunpack.c.l.b16 %v293
  %v1576 = vunpack.c.l.b16 %v294
  %v1577 = vunpack.c.l.b16 %v295
  %v1578 = vunpack.c.l.b16 %v296
  %v1579 = vunpack.c.l.b16 %v297
  %v1580 = vunpack.c.l.b16 %v298
  %v1581 = vunpack.c.l.b16 %v299
  %v1582 = vunpack.c.l.b16 %v300
  %v1583 = vunpack.c.l.b16 %v301
  %v1584 = vunpack.c.l.b16 %v302
  %v1585 = vunpack.c.l.b16 %v303
  %v1586 = vunpack.c.l.b16 %v304
  %v1587 = vunpack.c.l.b16 %v305
  %v1588 = vunpack.c.l.b16 %v306
  %v1589 = vunpack.c.l.b16 %v307
  %v1590 = vunpack.c.l.b16 %v308
  %v1591 = vunpack.c.l.b16 %v309
  %v1592 = vunpack.c.l.b16 %v310
  %v1593 = vunpack.c.l.b16 %v311
  %v1594 = vunpack.c.l.b16 %v312
  %v1595 = vunpack.c.l.b16 %v313
  %v1596 = vunpack.c.l.b16 %v314
  %v1597 = vunpack.c.l.b16 %v315
  %v1598 = vunpack.c.l.b16 %v316
  %v1599 = vunpack.c.l.b16 %v317
  %v1600 = vunpack.c.l.b16 %v318
  %v1601 = vunpack.c.l.b16 %v319
  %v1602 = vunpack.c.l.b16 %v320
  %v1603 = vunpack.c.l.b16 %v321
  %v1604 = vunpack.c.l.b16 %v322
  %v1605 = vunpack.c.l.b16 %v323
  %v1606 = vunpack.c.l.b16 %v324
  %v1607 = vunpack.c.l.b16 %v325
  %v1608 = vunpack.c.l.b16 %v326
  %v1609 = vunpack.c.l.b16 %v327
  %v1610 = vunpack.c.l.b16 %v328
  %v1611 = vunpack.c.l.b16 %v329
  %v1612 = vunpack.c.l.b16 %v330
  %v1613 = vunpack.c.l.b16 %v331
  %v1614 = vunpack.c.l.b16 %v332
  %v1615 = vunpack.c.l.b16 %v333
  %v1616 = vunpack.c.l.b16 %v334
  %v1617 = vunpack.c.l.b16 %v335
  %v1618 = vunpack.c.l.b16 %v336
  %v1619 = vunpack.c.l.b16 %v337
  %v1620 = vunpack.c.l.b16 %v338
  %v1621 = vunpack.c.l.b16 %v339
  %v1622 = vunpack.c.l.b16 %v340
  %v1623 = vunpack.c.l.b16 %v341
  %v1624 = vunpack.c.l.b16 %v342
  %v1625 = vunpack.c.l.b16 %v343
  %v1626 = vunpack.c.l.b16 %v344
  %v1627 = vunpack.c.l.b16 %v345
  %v1628 = vunpack.c.l.b16 %v346
  %v1629 = vunpack.c.l.b16 %v347
  %v1630 = vunpack.c.l.b16 %v348
  %v1631 = vunpack.c.l.b16 %v349
  %v1632 = vunpack.c.l.b16 %v350
  %v1633 = vunpack.c.l.b16 %v351
  %v1634 = vunpack.c.l.b16 %v352
  %v1635 = vunpack.c.l.b16 %v353
  %v1636 = vunpack.c.l.b16 %v354
  %v1637 = vunpack.c.l.b16 %v355
  %v1638 = vunpack.c.l.b16 %v356
  %v1639 = vunpack.c.l.b16 %v357
  %v1640 = vunpack.c.l.b16 %v358
  %v1641 = vunpack.c.l.b16 %v359
  %v1642 = vunpack.c.l.b16 %v360
  %v1643 = vunpack.c.l.b16 %v361
  %v1644 = vunpack.c.l.b16 %v362
  %v1645 = vunpack.c.l.b16 %v363
  %v1646 = vunpack.c.l.b16 %v364
  %v1647 = vunpack.c.l.b16 %v365
  %v1648 = vunpack.c.l.b16 %v366
  %v1649 = vunpack.c.l.b16 %v367
  %v1650 = vunpack.c.l.b16 %v368
  %v1651 = vunpack.c.l.b16 %v369
  %v1652 = vunpack.c.l.b16 %v370
  %v1653 = vunpack.c.l.b16 %v371
  %v1654 = vunpack.c.l.b16 %v372
  %v1655 = vunpack.c.l.b16 %v373
  %v1656 = vunpack.c.l.b16 %v374
  %v1657 = vunpack.c.l.b16 %v375
  %v1658 = vunpack.c.l.b16 %v376
  %v1659 = vunpack.c.l.b16 %v377
  %v1660 = vunpack.c.l.b16 %v378
  %v1661 = vunpack.c.l.b16 %v379
  %v1662 = vunpack.c.l.b16 %v380
  %v1663 = vunpack.c.l.b16 %v381
  %v1664 = vunpack.c.l.b16 %v382
  %v1665 = vunpack.c.l.b16 %v383
  %v1666 = vunpack.c.l.b16 %v384
  %v1667 = vunpack.c.l.b16 %v385
  %v1668 = vunpack.c.l.b16 %v386
  %v1669 = vunpack.c.l.b16 %v387
  %v1670 = vunpack.c.l.b16 %v388
  %v1671 = vunpack.c.l.b16 %v389
  %v1672 = vunpack.c.l.b16 %v390
  %v1673 = vunpack.c.l.b16 %v391
  %v1674 = vunpack.c.l.b16 %v392
  %v1675 = vunpack.c.l.b16 %v393
  %v1676 = vunpack.c.l.b16 %v394
  %v1677 = vunpack.c.l.b16 %v395
  %v1678 = vunpack.c.l.b16 %v396
  %v1679 = vunpack.c.l.b16 %v397
  %v1680 = vunpack.c.l.b16 %v398
  %v1681 = vunpack.c.l.b16 %v399
  %v1682 = vunpack.c.l.b16 %v400
  %v1683 = vunpack.c.l.b16 %v401
  %v1684 = vunpack.c.l.b16 %v402
  %v1685 = vunpack.c.l.b16 %v403
  %v1686 = vunpack.c.l.b16 %v404
  %v1687 = vunpack.c.l.b16 %v405
  %v1688 = vunpack.c.l.b16 %v406
  %v1689 = vunpack.c.l.b16 %v407
  %v1690 = vunpack.c.l.b16 %v408
  %v1691 = vunpack.c.l.b16 %v409
  %v1692 = vunpack.c.l.b16 %v410
  %v1693 = vunpack.c.l.b16 %v411
  %v1694 = vunpack.c.l.b16 %v412
  %v1695 = vunpack.c.l.b16 %v413
  %v1696 = vunpack.c.l.b16 %v414
  %v1697 = vunpack.c.l.b16 %v415
  %v1698 = vunpack.c.l.b16 %v416
  %v1699 = vunpack.c.l.b16 %v417
  %v1700 = vunpack.c.l.b16 %v418
  %v1701 = vunpack.c.l.b16 %v419
  %v1702 = vunpack.c.l.b16 %v420
  %v1703 = vunpack.c.l.b16 %v421
  %v1704 = vunpack.c.l.b16 %v422
  %v1705 = vunpack.c.l.b16 %v423
  %v1706 = vunpack.c.l.b16 %v424
  %v1707 = vunpack.c.l.b16 %v425
  %v1708 = vunpack.c.l.b16 %v426
  %v1709 = vunpack.c.l.b16 %v427
  %v1710 = vunpack.c.l.b16 %v428
  %v1711 = vunpack.c.l.b16 %v429
  %v1712 = vunpack.c.l.b16 %v430
  %v1713 = vunpack.c.l.b16 %v431
  %v1714 = vunpack.c.l.b16 %v432
  %v1715 = vunpack.c.l.b16 %v433
  %v1716 = vunpack.c.l.b16 %v434
  %v1717 = vunpack.c.l.b16 %v435
  %v1718 = vunpack.c.l.b16 %v436
  %v1719 = vunpack.c.l.b16 %v437
  %v1720 = vunpack.c.l.b16 %v438
  %v1721 = vunpack.c.l.b16 %v439
  %v1722 = vunpack.c.l.b16 %v440
  %v1723 = vunpack.c.l.b16 %v441
  %v1724 = vunpack.c.l.b16 %v442
  %v1725 = vunpack.c.l.b16 %v443
  %v1726 = vunpack.c.l.b16 %v444
  %v1727 = vunpack.c.l.b16 %v445
  %v1728 = vunpack.c.l.b16 %v446
  %v1729 = vunpack.c.l.b16 %v447
  %v1730 = vunpack.c.l.b16 %v448
  %v1731 = vunpack.c.l.b16 %v449
  %v1732 = vunpack.c.l.b16 %v450
  %v1733 = vunpack.c.l.b16 %v451
  %v1734 = vunpack.c.l.b16 %v452
  %v1735 = vunpack.c.l.b16 %v453
  %v1736 = vunpack.c.l.b16 %v454
  %v1737 = vunpack.c.l.b16 %v455
  %v1738 = vunpack.c.l.b16 %v456
  %v1739 = vunpack.c.l.b16 %v457
  %v1740 = vunpack.c.l.b16 %v458
  %v1741 = vunpack.c.l.b16 %v459
  %v1742 = vunpack.c.l.b16 %v460
  %v1743 = vunpack.c.l.b16 %v461
  %v1744 = vunpack.c.l.b16 %v462
  %v1745 = vunpack.c.l.b16 %v463
  %v1746 = vunpack.c.l.b16 %v464
  %v1747 = vunpack.c.l.b16 %v465
  %v1748 = vunpack.c.l.b16 %v466
  %v1749 = vunpack.c.l.b16 %v467
  %v1750 = vunpack.c.l.b16 %v468
  %v1751 = vunpack.c.l.b16 %v469
  %v1752 = vunpack.c.l.b16 %v470
  %v1753 = vunpack.c.l.b16 %v471
  %v1754 = vunpack.c.l.b16 %v472
  %v1755 = vunpack.c.l.b16 %v473
  %v1756 = vunpack.c.l.b16 %v474
  %v1757 = vunpack.c.l.b16 %v475
  %v1758 = vunpack.c.l.b16 %v476
  %v1759 = vunpack.c.l.b16 %v477
  %v1760 = vunpack.c.l.b16 %v478
  %v1761 = vunpack.c.l.b16 %v479
  %v1762 = vunpack.c.l.b16 %v480
  %v1763 = vunpack.c.l.b16 %v481
  %v1764 = vunpack.c.l.b16 %v482
  %v1765 = vunpack.c.l.b16 %v483
  %v1766 = vunpack.c.l.b16 %v484
  %v1767 = vunpack.c.l.b16 %v485
  %v1768 = vunpack.c.l.b16 %v486
  %v1769 = vunpack.c.l.b16 %v487
  %v1770 = vunpack.c.l.b16 %v488
  %v1771 = vunpack.c.l.b16 %v489
  %v1772 = vunpack.c.l.b16 %v490
  %v1773 = vunpack.c.l.b16 %v491
  %v1774 = vunpack.c.l.b16 %v492
  %v1775 = vunpack.c.l.b16 %v493
  %v1776 = vunpack.c.l.b16 %v494
  %v1777 = vunpack.c.l.b16 %v495
  %v1778 = vunpack.c.l.b16 %v496
  %v1779 = vunpack.c.l.b16 %v497
  %v1780 = vunpack.c.l.b16 %v498
  %v1781 = vunpack.c.l.b16 %v499
  %v1782 = vunpack.c.l.b16 %v500
  %v1783 = vunpack.c.l.b16 %v501
  %v1784 = vunpack.c.l.b16 %v502
  %v1785 = vunpack.c.l.b16 %v503
  %v1786 = vunpack.c.l.b16 %v504
  %v1787 = vunpack.c.l.b16 %v505
  %v1788 = vunpack.c.l.b16 %v506
  %v1789 = vunpack.c.l.b16 %v507
  %v1790 = vunpack.c.l.b16 %v508
  %v1791 = vunpack.c.l.b16 %v509
  %v1792 = vunpack.c.l.b16 %v510
  %v1793 = vunpack.c.l.b16 %v511
  %v1794 = vunpack.c.l.b16 %v512
  %v1795 = vunpack.c.l.b16 %v513
  %v1796 = vunpack.c.l.b16 %v514
  %v1797 = vunpack.c.l.b16 %v515
  %v1798 = vunpack.c.l.b16 %v516
  %v1799 = vunpack.c.l.b16 %v517
  %v1800 = vunpack.c.l.b16 %v518
  %v1801 = vunpack.c.l.b16 %v519
  %v1802 = vunpack.c.l.b16 %v520
  %v1803 = vunpack.c.l.b16 %v521
  %v1804 = vunpack.c.l.b16 %v522
  %v1805 = vunpack.c.l.b16 %v523
  %v1806 = vunpack.c.l.b16 %v524
  %v1807 = vunpack.c.l.b16 %v525
  %v1808 = vunpack.c.l.b16 %v526
  %v1809 = vunpack.c.l.b16 %v527
  %v1810 = vunpack.c.l.b16 %v528
  %v1811 = vunpack.c.l.b16 %v529
  %v1812 = vunpack.c.l.b16 %v530
  %v1813 = vunpack.c.l.b16 %v531
  %v1814 = vunpack.c.l.b16 %v532
  %v1815 = vunpack.c.l.b16 %v533
  %v1816 = vunpack.c.l.b16 %v534
  %v1817 = vunpack.c.l.b16 %v535
  %v1818 = vunpack.c.l.b16 %v536
  %v1819 = vunpack.c.l.b16 %v537
  %v1820 = vunpack.c.l.b16 %v538
  %v1821 = vunpack.c.l.b16 %v539
  %v1822 = vunpack.c.l.b16 %v540
  %v1823 = vunpack.c.l.b16 %v541
  %v1824 = vunpack.c.l.b16 %v542
  %v1825 = vunpack.c.l.b16 %v543
  %v1826 = vunpack.c.l.b16 %v544
  %v1827 = vunpack.c.l.b16 %v545
  %v1828 = vunpack.c.l.b16 %v546
  %v1829 = vunpack.c.l.b16 %v547
  %v1830 = vunpack.c.l.b16 %v548
  %v1831 = vunpack.c.l.b16 %v549
  %v1832 = vunpack.c.l.b16 %v550
  %v1833 = vunpack.c.l.b16 %v551
  %v1834 = vunpack.c.l.b16 %v552
  %v1835 = vunpack.c.l.b16 %v553
  %v1836 = vunpack.c.l.b16 %v554
  %v1837 = vunpack.c.l.b16 %v555
  %v1838 = vunpack.c.l.b16 %v556
  %v1839 = vunpack.c.l.b16 %v557
  %v1840 = vunpack.c.l.b16 %v558
  %v1841 = vunpack.c.l.b16 %v559
  %v1842 = vunpack.c.l.b16 %v560
  %v1843 = vunpack.c.l.b16 %v561
  %v1844 = vunpack.c.l.b16 %v562
  %v1845 = vunpack.c.l.b16 %v563
  %v1846 = vunpack.c.l.b16 %v564
  %v1847 = vunpack.c.l.b16 %v565
  %v1848 = vunpack.c.l.b16 %v566
  %v1849 = vunpack.c.l.b16 %v567
  %v1850 = vunpack.c.l.b16 %v568
  %v1851 = vunpack.c.l.b16 %v569
  %v1852 = vunpack.c.l.b16 %v570
  %v1853 = vunpack.c.l.b16 %v571
  %v1854 = vunpack.c.l.b16 %v572
  %v1855 = vunpack.c.l.b16 %v573
  %v1856 = vunpack.c.l.b16 %v574
  %v1857 = vunpack.c.l.b16 %v575
  %v1858 = vunpack.c.l.b16 %v576
  %v1859 = vunpack.c.l.b16 %v577
  %v1860 = vunpack.c.l.b16 %v578
  %v1861 = vunpack.c.l.b16 %v579
  %v1862 = vunpack.c.l.b16 %v580
  %v1863 = vunpack.c.l.b16 %v581
  %v1864 = vunpack.c.l.b16 %v582
  %v1865 = vunpack.c.l.b16 %v583
  %v1866 = vunpack.c.l.b16 %v584
  %v1867 = vunpack.c.l.b16 %v585
  %v1868 = vunpack.c.l.b16 %v586
  %v1869 = vunpack.c.l.b16 %v587
  %v1870 = vunpack.c.l.b16 %v588
  %v1871 = vunpack.c.l.b16 %v589
  %v1872 = vunpack.c.l.b16 %v590
  %v1873 = vunpack.c.l.b16 %v591
  %v1874 = vunpack.c.l.b16 %v592
  %v1875 = vunpack.c.l.b16 %v593
  %v1876 = vunpack.c.l.b16 %v594
  %v1877 = vunpack.c.l.b16 %v595
  %v1878 = vunpack.c.l.b16 %v596
  %v1879 = vunpack.c.l.b16 %v597
  %v1880 = vunpack.c.l.b16 %v598
  %v1881 = vunpack.c.l.b16 %v599
  %v1882 = vunpack.c.l.b16 %v600
  %v1883 = vunpack.c.l.b16 %v601
  %v1884 = vunpack.c.l.b16 %v602
  %v1885 = vunpack.c.l.b16 %v603
  %v1886 = vunpack.c.l.b16 %v604
  %v1887 = vunpack.c.l.b16 %v605
  %v1888 = vunpack.c.l.b16 %v606
  %v1889 = vunpack.c.l.b16 %v607
  %v1890 = vunpack.c.l.b16 %v608
  %v1891 = vunpack.c.l.b16 %v609
  %v1892 = vunpack.c.l.b16 %v610
  %v1893 = vunpack.c.l.b16 %v611
  %v1894 = vunpack.c.l.b16 %v612
  %v1895 = vunpack.c.l.b16 %v613
  %v1896 = vpack.c.b16 %v1321, %v1320
  %v1897 = vpack.c.b16 %v1323, %v1322
  %v1898 = vpack.c.b16 %v1325, %v1324
  %v1899 = vpack.c.b16 %v1327, %v1326
  %v1900 = vpack.c.b16 %v1329, %v1328
  %v1901 = vpack.c.b16 %v1331, %v1330
  %v1902 = vpack.c.b16 %v1333, %v1332
  %v1903 = vpack.c.b16 %v1335, %v1334
  %v1904 = vpack.c.b16 %v1337, %v1336
  %v1905 = vpack.c.b16 %v1339, %v1338
  %v1906 = vpack.c.b16 %v1341, %v1340
  %v1907 = vpack.c.b16 %v1343, %v1342
  %v1908 = vpack.c.b16 %v1345, %v1344
  %v1909 = vpack.c.b16 %v1347, %v1346
  %v1910 = vpack.c.b16 %v1349, %v1348
  %v1911 = vpack.c.b16 %v1351, %v1350
  %v1912 = vpack.c.b16 %v1353, %v1352
  %v1913 = vpack.c.b16 %v1355, %v1354
  %v1914 = vpack.c.b16 %v1357, %v1356
  %v1915 = vpack.c.b16 %v1359, %v1358
  %v1916 = vpack.c.b16 %v1361, %v1360
  %v1917 = vpack.c.b16 %v1363, %v1362
  %v1918 = vpack.c.b16 %v1365, %v1364
  %v1919 = vpack.c.b16 %v1367, %v1366
  %v1920 = vpack.c.b16 %v1369, %v1368
  %v1921 = vpack.c.b16 %v1371, %v1370
  %v1922 = vpack.c.b16 %v1373, %v1372
  %v1923 = vpack.c.b16 %v1375, %v1374
  %v1924 = vpack.c.b16 %v1377, %v1376
  %v1925 = vpack.c.b16 %v1379, %v1378
  %v1926 = vpack.c.b16 %v1381, %v1380
  %v1927 = vpack.c.b16 %v1383, %v1382
  %v1928 = vpack.c.b16 %v1385, %v1384
  %v1929 = vpack.c.b16 %v1387, %v1386
  %v1930 = vpack.c.b16 %v1389, %v1388
  %v1931 = vpack.c.b16 %v1391, %v1390
  %v1932 = vpack.c.b16 %v1393, %v1392
  %v1933 = vpack.c.b16 %v1395, %v1394
  %v1934 = vpack.c.b16 %v1397, %v1396
  %v1935 = vpack.c.b16 %v1399, %v1398
  %v1936 = vpack.c.b16 %v1401, %v1400
  %v1937 = vpack.c.b16 %v1403, %v1402
  %v1938 = vpack.c.b16 %v1405, %v1404
  %v1939 = vpack.c.b16 %v1407, %v1406
  %v1940 = vpack.c.b16 %v1409, %v1408
  %v1941 = vpack.c.b16 %v1411, %v1410
  %v1942 = vpack.c.b16 %v1413, %v1412
  %v1943 = vpack.c.b16 %v1415, %v1414
  %v1944 = vpack.c.b16 %v1417, %v1416
  %v1945 = vpack.c.b16 %v1419, %v1418
  %v1946 = vpack.c.b16 %v1421, %v1420
  %v1947 = vpack.c.b16 %v1423, %v1422
  %v1948 = vpack.c.b16 %v1425, %v1424
  %v1949 = vpack.c.b16 %v1427, %v1426
  %v1950 = vpack.c.b16 %v1429, %v1428
  %v1951 = vpack.c.b16 %v1431, %v1430
  %v1952 = vpack.c.b16 %v1433, %v1432
  %v1953 = vpack.c.b16 %v1435, %v1434
  %v1954 = vpack.c.b16 %v1437, %v1436
  %v1955 = vpack.c.b16 %v1439, %v1438
  %v1956 = vpack.c.b16 %v1441, %v1440
  %v1957 = vpack.c.b16 %v1443, %v1442
  %v1958 = vpack.c.b16 %v1445, %v1444
  %v1959 = vpack.c.b16 %v1447, %v1446
  %v1960 = vpack.c.b16 %v1449, %v1448
  %v1961 = vpack.c.b16 %v1451, %v1450
  %v1962 = vpack.c.b16 %v1453, %v1452
  %v1963 = vpack.c.b16 %v1455, %v1454
  %v1964 = vpack.c.b16 %v1457, %v1456
  %v1965 = vpack.c.b16 %v1459, %v1458
  %v1966 = vpack.c.b16 %v1461, %v1460
  %v1967 = vpack.c.b16 %v1463, %v1462
  %v1968 = vpack.c.b16 %v1465, %v1464
  %v1969 = vpack.c.b16 %v1467, %v1466
  %v1970 = vpack.c.b16 %v1469, %v1468
  %v1971 = vpack.c.b16 %v1471, %v1470
  %v1972 = vpack.c.b16 %v1473, %v1472
  %v1973 = vpack.c.b16 %v1475, %v1474
  %v1974 = vpack.c.b16 %v1477, %v1476
  %v1975 = vpack.c.b16 %v1479, %v1478
  %v1976 = vpack.c.b16 %v1481, %v1480
  %v1977 = vpack.c.b16 %v1483, %v1482
  %v1978 = vpack.c.b16 %v1485, %v1484
  %v1979 = vpack.c.b16 %v1487, %v1486
  %v1980 = vpack.c.b16 %v1489, %v1488
  %v1981 = vpack.c.b16 %v1491, %v1490
  %v1982 = vpack.c.b16 %v1493, %v1492
  %v1983 = vpack.c.b16 %v1495, %v1494
  %v1984 = vpack.c.b16 %v1497, %v1496
  %v1985 = vpack.c.b16 %v1499, %v1498
  %v1986 = vpack.c.b16 %v1501, %v1500
  %v1987 = vpack.c.b16 %v1503, %v1502
  %v1988 = vpack.c.b16 %v1505, %v1504
  %v1989 = vpack.c.b16 %v1507, %v1506
  %v1990 = vpack.c.b16 %v1509, %v1508
  %v1991 = vpack.c.b16 %v1511, %v1510
  %v1992 = vpack.c.b16 %v1513, %v1512
  %v1993 = vpack.c.b16 %v1515, %v1514
  %v1994 = vpack.c.b16 %v1517, %v1516
  %v1995 = vpack.c.b16 %v1519, %v1518
  %v1996 = vpack.c.b16 %v1521, %v1520
  %v1997 = vpack.c.b16 %v1523, %v1522
  %v1998 = vpack.c.b16 %v1525, %v1524
  %v1999 = vpack.c.b16 %v1527, %v1526
  %v2000 = vpack.c.b16 %v1529, %v1528
  %v2001 = vpack.c.b16 %v1531, %v1530
  %v2002 = vpack.c.b16 %v1533, %v1532
  %v2003 = vpack.c.b16 %v1535, %v1534
  %v2004 = vpack.c.b16 %v1537, %v1536
  %v2005 = vpack.c.b16 %v1539, %v1538
  %v2006 = vpack.c.b16 %v1541, %v1540
  %v2007 = vpack.c.b16 %v1543, %v1542
  %v2008 = vpack.c.b16 %v1545, %v1544
  %v2009 = vpack.c.b16 %v1547, %v1546
  %v2010 = vpack.c.b16 %v1549, %v1548
  %v2011 = vpack.c.b16 %v1551, %v1550
  %v2012 = vpack.c.b16 %v1553, %v1552
  %v2013 = vpack.c.b16 %v1555, %v1554
  %v2014 = vpack.c.b16 %v1557, %v1556
  %v2015 = vpack.c.b16 %v1559, %v1558
  %v2016 = vpack.c.b16 %v1561, %v1560
  %v2017 = vpack.c.b16 %v1563, %v1562
  %v2018 = vpack.c.b16 %v1565, %v1564
  %v2019 = vpack.c.b16 %v1567, %v1566
  %v2020 = vpack.c.b16 %v1569, %v1568
  %v2021 = vpack.c.b16 %v1571, %v1570
  %v2022 = vpack.c.b16 %v1573, %v1572
  %v2023 = vpack.c.b16 %v1575, %v1574
  %v2024 = vpack.c.b16 %v1577, %v1576
  %v2025 = vpack.c.b16 %v1579, %v1578
  %v2026 = vpack.c.b16 %v1581, %v1580
  %v2027 = vpack.c.b16 %v1583, %v1582
  %v2028 = vpack.c.b16 %v1585, %v1584
  %v2029 = vpack.c.b16 %v1587, %v1586
  %v2030 = vpack.c.b16 %v1589, %v1588
  %v2031 = vpack.c.b16 %v1591, %v1590
  %v2032 = vpack.c.b16 %v1593, %v1592
  %v2033 = vpack.c.b16 %v1595, %v1594
  %v2034 = vpack.c.b16 %v1597, %v1596
  %v2035 = vpack.c.b16 %v1599, %v1598
  %v2036 = vpack.c.b16 %v1601, %v1600
  %v2037 = vpack.c.b16 %v1603, %v1602
  %v2038 = vpack.c.b16 %v1605, %v1604
  %v2039 = vpack.c.b16 %v1607, %v1606
  %v2040 = vpack.c.b16 %v1609, %v1608
  %v2041 = vpack.c.b16 %v1611, %v1610
  %v2042 = vpack.c.b16 %v1613, %v1612
  %v2043 = vpack.c.b16 %v1615, %v1614
  %v2044 = vpack.c.b16 %v1617, %v1616
  %v2045 = vpack.c.b16 %v1619, %v1618
  %v2046 = vpack.c.b16 %v1621, %v1620
  %v2047 = vpack.c.b16 %v1623, %v1622
  %v2048 = vpack.c.b16 %v1625, %v1624
  %v2049 = vpack.c.b16 %v1627, %v1626
  %v2050 = vpack.c.b16 %v1629, %v1628
  %v2051 = vpack.c.b16 %v1631, %v1630
  %v2052 = vpack.c.b16 %v1633, %v1632
  %v2053 = vpack.c.b16 %v1635, %v1634
  %v2054 = vpack.c.b16 %v1637, %v1636
  %v2055 = vpack.c.b16 %v1639, %v1638
  %v2056 = vpack.c.b16 %v1641, %v1640
  %v2057 = vpack.c.b16 %v1643, %v1642
  %v2058 = vpack.c.b16 %v1645, %v1644
  %v2059 = vpack.c.b16 %v1647, %v1646
  %v2060 = vpack.c.b16 %v1649, %v1648
  %v2061 = vpack.c.b16 %v1651, %v1650
  %v2062 = vpack.c.b16 %v1653, %v1652
  %v2063 = vpack.c.b16 %v1655, %v1654
  %v2064 = vpack.c.b16 %v1657, %v1656
  %v2065 = vpack.c.b16 %v1659, %v1658
  %v2066 = vpack.c.b16 %v1661, %v1660
  %v2067 = vpack.c.b16 %v1663, %v1662
  %v2068 = vpack.c.b16 %v1665, %v1664
  %v2069 = vpack.c.b16 %v1667, %v1666
  %v2070 = vpack.c.b16 %v1669, %v1668
  %v2071 = vpack.c.b16 %v1671, %v1670
  %v2072 = vpack.c.b16 %v1673, %v1672
  %v2073 = vpack.c.b16 %v1675, %v1674
  %v2074 = vpack.c.b16 %v1677, %v1676
  %v2075 = vpack.c.b16 %v1679, %v1678
  %v2076 = vpack.c.b16 %v1681, %v1680
  %v2077 = vpack.c.b16 %v1683, %v1682
  %v2078 = vpack.c.b16 %v1685, %v1684
  %v2079 = vpack.c.b16 %v1687, %v1686
  %v2080 = vpack.c.b16 %v1689, %v1688
  %v2081 = vpack.c.b16 %v1691, %v1690
  %v2082 = vpack.c.b16 %v1693, %v1692
  %v2083 = vpack.c.b16 %v1695, %v1694
  %v2084 = vpack.c.b16 %v1697, %v1696
  %v2085 = vpack.c.b16 %v1699, %v1698
  %v2086 = vpack.c.b16 %v1701, %v1700
  %v2087 = vpack.c.b16 %v1703, %v1702
  %v2088 = vpack.c.b16 %v1705, %v1704
  %v2089 = vpack.c.b16 %v1707, %v1706
  %v2090 = vpack.c.b16 %v1709, %v1708
  %v2091 = vpack.c.b16 %v1711, %v1710
  %v2092 = vpack.c.b16 %v1713, %v1712
  %v2093 = vpack.c.b16 %v1715, %v1714
  %v2094 = vpack.c.b16 %v1717, %v1716
  %v2095 = vpack.c.b16 %v1719, %v1718
  %v2096 = vpack.c.b16 %v1721, %v1720
  %v2097 = vpack.c.b16 %v1723, %v1722
  %v2098 = vpack.c.b16 %v1725, %v1724
  %v2099 = vpack.c.b16 %v1727, %v1726
  %v2100 = vpack.c.b16 %v1729, %v1728
  %v2101 = vpack.c.b16 %v1731, %v1730
  %v2102 = vpack.c.b16 %v1733, %v1732
  %v2103 = vpack.c.b16 %v1735, %v1734
  %v2104 = vpack.c.b16 %v1737, %v1736
  %v2105 = vpack.c.b16 %v1739, %v1738
  %v2106 = vpack.c.b16 %v1741, %v1740
  %v2107 = vpack.c.b16 %v1743, %v1742
  %v2108 = vpack.c.b16 %v1745, %v1744
  %v2109 = vpack.c.b16 %v1747, %v1746
  %v2110 = vpack.c.b16 %v1749, %v1748
  %v2111 = vpack.c.b16 %v1751, %v1750
  %v2112 = vpack.c.b16 %v1753, %v1752
  %v2113 = vpack.c.b16 %v1755, %v1754
  %v2114 = vpack.c.b16 %v1757, %v1756
  %v2115 = vpack.c.b16 %v1759, %v1758
  %v2116 = vpack.c.b16 %v1761, %v1760
  %v2117 = vpack.c.b16 %v1763, %v1762
  %v2118 = vpack.c.b16 %v1765, %v1764
  %v2119 = vpack.c.b16 %v1767, %v1766
  %v2120 = vpack.c.b16 %v1769, %v1768
  %v2121 = vpack.c.b16 %v1771, %v1770
  %v2122 = vpack.c.b16 %v1773, %v1772
  %v2123 = vpack.c.b16 %v1775, %v1774
  %v2124 = vpack.c.b16 %v1777, %v1776
  %v2125 = vpack.c.b16 %v1779, %v1778
  %v2126 = vpack.c.b16 %v1781, %v1780
  %v2127 = vpack.c.b16 %v1783, %v1782
  %v2128 = vpack.c.b16 %v1785, %v1784
  %v2129 = vpack.c.b16 %v1787, %v1786
  %v2130 = vpack.c.b16 %v1789, %v1788
  %v2131 = vpack.c.b16 %v1791, %v1790
  %v2132 = vpack.c.b16 %v1793, %v1792
  %v2133 = vpack.c.b16 %v1795, %v1794
  %v2134 = vpack.c.b16 %v1797, %v1796
  %v2135 = vpack.c.b16 %v1799, %v1798
  %v2136 = vpack.c.b16 %v1801, %v1800
  %v2137 = vpack.c.b16 %v1803, %v1802
  %v2138 = vpack.c.b16 %v1805, %v1804
  %v2139 = vpack.c.b16 %v1807, %v1806
  %v2140 = vpack.c.b16 %v1809, %v1808
  %v2141 = vpack.c.b16 %v1811, %v1810
  %v2142 = vpack.c.b16 %v1813, %v1812
  %v2143 = vpack.c.b16 %v1815, %v1814
  %v2144 = vpack.c.b16 %v1817, %v1816
  %v2145 = vpack.c.b16 %v1819, %v1818
  %v2146 = vpack.c.b16 %v1821, %v1820
  %v2147 = vpack.c.b16 %v1823, %v1822
  %v2148 = vpack.c.b16 %v1825, %v1824
  %v2149 = vpack.c.b16 %v1827, %v1826
  %v2150 = vpack.c.b16 %v1829, %v1828
  %v2151 = vpack.c.b16 %v1831, %v1830
  %v2152 = vpack.c.b16 %v1833, %v1832
  %v2153 = vpack.c.b16 %v1835, %v1834
  %v2154 = vpack.c.b16 %v1837, %v1836
  %v2155 = vpack.c.b16 %v1839, %v1838
  %v2156 = vpack.c.b16 %v1841, %v1840
  %v2157 = vpack.c.b16 %v1843, %v1842
  %v2158 = vpack.c.b16 %v1845, %v1844
  %v2159 = vpack.c.b16 %v1847, %v1846
  %v2160 = vpack.c.b16 %v1849, %v1848
  %v2161 = vpack.c.b16 %v1851, %v1850
  %v2162 = vpack.c.b16 %v1853, %v1852
  %v2163 = vpack.c.b16 %v1855, %v1854
  %v2164 = vpack.c.b16 %v1857, %v1856
  %v2165 = vpack.c.b16 %v1859, %v1858
  %v2166 = vpack.c.b16 %v1861, %v1860
  %v2167 = vpack.c.b16 %v1863, %v1862
  %v2168 = vpack.c.b16 %v1865, %v1864
  %v2169 = vpack.c.b16 %v1867, %v1866
  %v2170 = vpack.c.b16 %v1869, %v1868
  %v2171 = vpack.c.b16 %v1871, %v1870
  %v2172 = vpack.c.b16 %v1873, %v1872
  %v2173 = vpack.c.b16 %v1875, %v1874
  %v2174 = vpack.c.b16 %v1877, %v1876
  %v2175 = vpack.c.b16 %v1879, %v1878
  %v2176 = vpack.c.b16 %v1881, %v1880
  %v2177 = vpack.c.b16 %v1883, %v1882
  %v2178 = vpack.c.b16 %v1885, %v1884
  %v2179 = vpack.c.b16 %v1887, %v1886
  %v2180 = vpack.c.b16 %v1889, %v1888
  %v2181 = vpack.c.b16 %v1891, %v1890
  %v2182 = vpack.c.b16 %v1893, %v1892
  %v2183 = vpack.c.b16 %v1895, %v1894
  %2472 = vmatpush.bf16.msra.mxu0 %v1903
  %2473 = vmatpush.bf16.msra.mxu0 %v1902
  %2474 = vmatpush.bf16.msra.mxu0 %v1901
  %2475 = vmatpush.bf16.msra.mxu0 %v1900
  %2476 = vmatpush.bf16.msra.mxu0 %v1899
  %2477 = vmatpush.bf16.msra.mxu0 %v1898
  %2478 = vmatpush.bf16.msra.mxu0 %v1897
  %2479 = vmatpush.bf16.msra.mxu0 %v1896
  %2480 = vmatmul.bf16.gmra.mxu0 %v672
  %v2481 = vpop.f32.mrf.mxu0
  %v2482 = vadd.f32 %v616, %v2481
  %v2483 = vpop.f32.mrf.mxu0
  %2484 = vdwg.mxu0
  %2485 = vmatpush.bf16.msra.mxu0 %v1911
  %2486 = vmatpush.bf16.msra.mxu0 %v1910
  %2487 = vmatpush.bf16.msra.mxu0 %v1909
  %2488 = vmatpush.bf16.msra.mxu0 %v1908
  %2489 = vmatpush.bf16.msra.mxu0 %v1907
  %2490 = vmatpush.bf16.msra.mxu0 %v1906
  %2491 = vmatpush.bf16.msra.mxu0 %v1905
  %2492 = vmatpush.bf16.msra.mxu0 %v1904
  %2493 = vmatmul.bf16.gmra.mxu0 %v673
  %v2494 = vpop.f32.mrf.mxu0
  %v2495 = vadd.f32 %v2482, %v2494
  %v2496 = vpop.f32.mrf.mxu0
  %2497 = vdwg.mxu0
  %2498 = vmatpush.bf16.msra.mxu0 %v1919
  %2499 = vmatpush.bf16.msra.mxu0 %v1918
  %2500 = vmatpush.bf16.msra.mxu0 %v1917
  %2501 = vmatpush.bf16.msra.mxu0 %v1916
  %2502 = vmatpush.bf16.msra.mxu0 %v1915
  %2503 = vmatpush.bf16.msra.mxu0 %v1914
  %2504 = vmatpush.bf16.msra.mxu0 %v1913
  %2505 = vmatpush.bf16.msra.mxu0 %v1912
  %2506 = vmatmul.bf16.gmra.mxu0 %v674
  %v2507 = vpop.f32.mrf.mxu0
  %v2508 = vadd.f32 %v2495, %v2507
  %v2509 = vpop.f32.mrf.mxu0
  %2510 = vdwg.mxu0
  %2511 = vmatpush.bf16.msra.mxu0 %v1927
  %2512 = vmatpush.bf16.msra.mxu0 %v1926
  %2513 = vmatpush.bf16.msra.mxu0 %v1925
  %2514 = vmatpush.bf16.msra.mxu0 %v1924
  %2515 = vmatpush.bf16.msra.mxu0 %v1923
  %2516 = vmatpush.bf16.msra.mxu0 %v1922
  %2517 = vmatpush.bf16.msra.mxu0 %v1921
  %2518 = vmatpush.bf16.msra.mxu0 %v1920
  %2519 = vmatmul.bf16.gmra.mxu0 %v675
  %v2520 = vpop.f32.mrf.mxu0
  %v2521 = vadd.f32 %v2508, %v2520
  %v2522 = vpop.f32.mrf.mxu0
  %2523 = vdwg.mxu0
  %2524 = vmatpush.bf16.msra.mxu0 %v1935
  %2525 = vmatpush.bf16.msra.mxu0 %v1934
  %2526 = vmatpush.bf16.msra.mxu0 %v1933
  %2527 = vmatpush.bf16.msra.mxu0 %v1932
  %2528 = vmatpush.bf16.msra.mxu0 %v1931
  %2529 = vmatpush.bf16.msra.mxu0 %v1930
  %2530 = vmatpush.bf16.msra.mxu0 %v1929
  %2531 = vmatpush.bf16.msra.mxu0 %v1928
  %2532 = vmatmul.bf16.gmra.mxu0 %v676
  %v2533 = vpop.f32.mrf.mxu0
  %v2534 = vadd.f32 %v2521, %v2533
  %v2535 = vpop.f32.mrf.mxu0
  %2536 = vdwg.mxu0
  %2537 = vmatpush.bf16.msra.mxu0 %v1943
  %2538 = vmatpush.bf16.msra.mxu0 %v1942
  %2539 = vmatpush.bf16.msra.mxu0 %v1941
  %2540 = vmatpush.bf16.msra.mxu0 %v1940
  %2541 = vmatpush.bf16.msra.mxu0 %v1939
  %2542 = vmatpush.bf16.msra.mxu0 %v1938
  %2543 = vmatpush.bf16.msra.mxu0 %v1937
  %2544 = vmatpush.bf16.msra.mxu0 %v1936
  %2545 = vmatmul.bf16.gmra.mxu0 %v677
  %v2546 = vpop.f32.mrf.mxu0
  %v2547 = vadd.f32 %v2534, %v2546
  %v2548 = vpop.f32.mrf.mxu0
  %2549 = vdwg.mxu0
  %2550 = vmatpush.bf16.msra.mxu0 %v1951
  %2551 = vmatpush.bf16.msra.mxu0 %v1950
  %2552 = vmatpush.bf16.msra.mxu0 %v1949
  %2553 = vmatpush.bf16.msra.mxu0 %v1948
  %2554 = vmatpush.bf16.msra.mxu0 %v1947
  %2555 = vmatpush.bf16.msra.mxu0 %v1946
  %2556 = vmatpush.bf16.msra.mxu0 %v1945
  %2557 = vmatpush.bf16.msra.mxu0 %v1944
  %2558 = vmatmul.bf16.gmra.mxu0 %v678
  %v2559 = vpop.f32.mrf.mxu0
  %v2560 = vadd.f32 %v2547, %v2559
  %v2561 = vpop.f32.mrf.mxu0
  %2562 = vdwg.mxu0
  %2563 = vmatpush.bf16.msra.mxu0 %v1959
  %2564 = vmatpush.bf16.msra.mxu0 %v1958
  %2565 = vmatpush.bf16.msra.mxu0 %v1957
  %2566 = vmatpush.bf16.msra.mxu0 %v1956
  %2567 = vmatpush.bf16.msra.mxu0 %v1955
  %2568 = vmatpush.bf16.msra.mxu0 %v1954
  %2569 = vmatpush.bf16.msra.mxu0 %v1953
  %2570 = vmatpush.bf16.msra.mxu0 %v1952
  %2571 = vmatmul.bf16.gmra.mxu0 %v679
  %v2572 = vpop.f32.mrf.mxu0
  %v2573 = vadd.f32 %v2560, %v2572
  %v2574 = vpop.f32.mrf.mxu0
  %2575 = vdwg.mxu0
  %2576 = vmatpush.bf16.msra.mxu0 %v1967
  %2577 = vmatpush.bf16.msra.mxu0 %v1966
  %2578 = vmatpush.bf16.msra.mxu0 %v1965
  %2579 = vmatpush.bf16.msra.mxu0 %v1964
  %2580 = vmatpush.bf16.msra.mxu0 %v1963
  %2581 = vmatpush.bf16.msra.mxu0 %v1962
  %2582 = vmatpush.bf16.msra.mxu0 %v1961
  %2583 = vmatpush.bf16.msra.mxu0 %v1960
  %2584 = vmatmul.bf16.gmra.mxu0 %v680
  %v2585 = vpop.f32.mrf.mxu0
  %v2586 = vadd.f32 %v2573, %v2585
  %v2587 = vpop.f32.mrf.mxu0
  %2588 = vdwg.mxu0
  %2589 = vmatpush.bf16.msra.mxu0 %v1975
  %2590 = vmatpush.bf16.msra.mxu0 %v1974
  %2591 = vmatpush.bf16.msra.mxu0 %v1973
  %2592 = vmatpush.bf16.msra.mxu0 %v1972
  %2593 = vmatpush.bf16.msra.mxu0 %v1971
  %2594 = vmatpush.bf16.msra.mxu0 %v1970
  %2595 = vmatpush.bf16.msra.mxu0 %v1969
  %2596 = vmatpush.bf16.msra.mxu0 %v1968
  %2597 = vmatmul.bf16.gmra.mxu0 %v681
  %v2598 = vpop.f32.mrf.mxu0
  %v2599 = vadd.f32 %v2586, %v2598
  %v2600 = vpop.f32.mrf.mxu0
  %2601 = vdwg.mxu0
  %2602 = vmatpush.bf16.msra.mxu0 %v1983
  %2603 = vmatpush.bf16.msra.mxu0 %v1982
  %2604 = vmatpush.bf16.msra.mxu0 %v1981
  %2605 = vmatpush.bf16.msra.mxu0 %v1980
  %2606 = vmatpush.bf16.msra.mxu0 %v1979
  %2607 = vmatpush.bf16.msra.mxu0 %v1978
  %2608 = vmatpush.bf16.msra.mxu0 %v1977
  %2609 = vmatpush.bf16.msra.mxu0 %v1976
  %2610 = vmatmul.bf16.gmra.mxu0 %v682
  %v2611 = vpop.f32.mrf.mxu0
  %v2612 = vadd.f32 %v2599, %v2611
  %v2613 = vpop.f32.mrf.mxu0
  %2614 = vdwg.mxu0
  %2615 = vmatpush.bf16.msra.mxu0 %v1991
  %2616 = vmatpush.bf16.msra.mxu0 %v1990
  %2617 = vmatpush.bf16.msra.mxu0 %v1989
  %2618 = vmatpush.bf16.msra.mxu0 %v1988
  %2619 = vmatpush.bf16.msra.mxu0 %v1987
  %2620 = vmatpush.bf16.msra.mxu0 %v1986
  %2621 = vmatpush.bf16.msra.mxu0 %v1985
  %2622 = vmatpush.bf16.msra.mxu0 %v1984
  %2623 = vmatmul.bf16.gmra.mxu0 %v683
  %v2624 = vpop.f32.mrf.mxu0
  %v2625 = vadd.f32 %v2612, %v2624
  %v2626 = vpop.f32.mrf.mxu0
  %2627 = vdwg.mxu0
  %2628 = vmatpush.bf16.msra.mxu0 %v1999
  %2629 = vmatpush.bf16.msra.mxu0 %v1998
  %2630 = vmatpush.bf16.msra.mxu0 %v1997
  %2631 = vmatpush.bf16.msra.mxu0 %v1996
  %2632 = vmatpush.bf16.msra.mxu0 %v1995
  %2633 = vmatpush.bf16.msra.mxu0 %v1994
  %2634 = vmatpush.bf16.msra.mxu0 %v1993
  %2635 = vmatpush.bf16.msra.mxu0 %v1992
  %2636 = vmatmul.bf16.gmra.mxu0 %v684
  %v2637 = vpop.f32.mrf.mxu0
  %v2638 = vadd.f32 %v2625, %v2637
  %v2639 = vpop.f32.mrf.mxu0
  %2640 = vdwg.mxu0
  %2641 = vmatpush.bf16.msra.mxu0 %v2007
  %2642 = vmatpush.bf16.msra.mxu0 %v2006
  %2643 = vmatpush.bf16.msra.mxu0 %v2005
  %2644 = vmatpush.bf16.msra.mxu0 %v2004
  %2645 = vmatpush.bf16.msra.mxu0 %v2003
  %2646 = vmatpush.bf16.msra.mxu0 %v2002
  %2647 = vmatpush.bf16.msra.mxu0 %v2001
  %2648 = vmatpush.bf16.msra.mxu0 %v2000
  %2649 = vmatmul.bf16.gmra.mxu0 %v685
  %v2650 = vpop.f32.mrf.mxu0
  %v2651 = vadd.f32 %v2638, %v2650
  %v2652 = vpop.f32.mrf.mxu0
  %2653 = vdwg.mxu0
  %2654 = vmatpush.bf16.msra.mxu0 %v2015
  %2655 = vmatpush.bf16.msra.mxu0 %v2014
  %2656 = vmatpush.bf16.msra.mxu0 %v2013
  %2657 = vmatpush.bf16.msra.mxu0 %v2012
  %2658 = vmatpush.bf16.msra.mxu0 %v2011
  %2659 = vmatpush.bf16.msra.mxu0 %v2010
  %2660 = vmatpush.bf16.msra.mxu0 %v2009
  %2661 = vmatpush.bf16.msra.mxu0 %v2008
  %2662 = vmatmul.bf16.gmra.mxu0 %v686
  %v2663 = vpop.f32.mrf.mxu0
  %v2664 = vadd.f32 %v2651, %v2663
  %v2665 = vpop.f32.mrf.mxu0
  %2666 = vdwg.mxu0
  %2667 = vmatpush.bf16.msra.mxu0 %v2023
  %2668 = vmatpush.bf16.msra.mxu0 %v2022
  %2669 = vmatpush.bf16.msra.mxu0 %v2021
  %2670 = vmatpush.bf16.msra.mxu0 %v2020
  %2671 = vmatpush.bf16.msra.mxu0 %v2019
  %2672 = vmatpush.bf16.msra.mxu0 %v2018
  %2673 = vmatpush.bf16.msra.mxu0 %v2017
  %2674 = vmatpush.bf16.msra.mxu0 %v2016
  %2675 = vmatmul.bf16.gmra.mxu0 %v687
  %v2676 = vpop.f32.mrf.mxu0
  %v2677 = vadd.f32 %v2664, %v2676
  %v2678 = vpop.f32.mrf.mxu0
  %2679 = vdwg.mxu0
  %2680 = vmatpush.bf16.msra.mxu0 %v2031
  %2681 = vmatpush.bf16.msra.mxu0 %v2030
  %2682 = vmatpush.bf16.msra.mxu0 %v2029
  %2683 = vmatpush.bf16.msra.mxu0 %v2028
  %2684 = vmatpush.bf16.msra.mxu0 %v2027
  %2685 = vmatpush.bf16.msra.mxu0 %v2026
  %2686 = vmatpush.bf16.msra.mxu0 %v2025
  %2687 = vmatpush.bf16.msra.mxu0 %v2024
  %2688 = vmatmul.bf16.gmra.mxu0 %v688
  %v2689 = vpop.f32.mrf.mxu0
  %v2690 = vadd.f32 %v2677, %v2689
  %v2691 = vpop.f32.mrf.mxu0
  %2692 = vdwg.mxu0
  %2693 = vmatpush.bf16.msra.mxu0 %v2039
  %2694 = vmatpush.bf16.msra.mxu0 %v2038
  %2695 = vmatpush.bf16.msra.mxu0 %v2037
  %2696 = vmatpush.bf16.msra.mxu0 %v2036
  %2697 = vmatpush.bf16.msra.mxu0 %v2035
  %2698 = vmatpush.bf16.msra.mxu0 %v2034
  %2699 = vmatpush.bf16.msra.mxu0 %v2033
  %2700 = vmatpush.bf16.msra.mxu0 %v2032
  %2701 = vmatmul.bf16.gmra.mxu0 %v689
  %v2702 = vpop.f32.mrf.mxu0
  %v2703 = vadd.f32 %v2690, %v2702
  %v2704 = vpop.f32.mrf.mxu0
  %2705 = vdwg.mxu0
  %2706 = vmatpush.bf16.msra.mxu0 %v2047
  %2707 = vmatpush.bf16.msra.mxu0 %v2046
  %2708 = vmatpush.bf16.msra.mxu0 %v2045
  %2709 = vmatpush.bf16.msra.mxu0 %v2044
  %2710 = vmatpush.bf16.msra.mxu0 %v2043
  %2711 = vmatpush.bf16.msra.mxu0 %v2042
  %2712 = vmatpush.bf16.msra.mxu0 %v2041
  %2713 = vmatpush.bf16.msra.mxu0 %v2040
  %2714 = vmatmul.bf16.gmra.mxu0 %v690
  %v2715 = vpop.f32.mrf.mxu0
  %v2716 = vadd.f32 %v2703, %v2715
  %v2717 = vpop.f32.mrf.mxu0
  %2718 = vdwg.mxu0
  %2719 = vmatpush.bf16.msra.mxu0 %v2055
  %2720 = vmatpush.bf16.msra.mxu0 %v2054
  %2721 = vmatpush.bf16.msra.mxu0 %v2053
  %2722 = vmatpush.bf16.msra.mxu0 %v2052
  %2723 = vmatpush.bf16.msra.mxu0 %v2051
  %2724 = vmatpush.bf16.msra.mxu0 %v2050
  %2725 = vmatpush.bf16.msra.mxu0 %v2049
  %2726 = vmatpush.bf16.msra.mxu0 %v2048
  %2727 = vmatmul.bf16.gmra.mxu0 %v691
  %v2728 = vpop.f32.mrf.mxu0
  %v2729 = vadd.f32 %v2716, %v2728
  %v2730 = vpop.f32.mrf.mxu0
  %2731 = vdwg.mxu0
  %2732 = vmatpush.bf16.msra.mxu0 %v2063
  %2733 = vmatpush.bf16.msra.mxu0 %v2062
  %2734 = vmatpush.bf16.msra.mxu0 %v2061
  %2735 = vmatpush.bf16.msra.mxu0 %v2060
  %2736 = vmatpush.bf16.msra.mxu0 %v2059
  %2737 = vmatpush.bf16.msra.mxu0 %v2058
  %2738 = vmatpush.bf16.msra.mxu0 %v2057
  %2739 = vmatpush.bf16.msra.mxu0 %v2056
  %2740 = vmatmul.bf16.gmra.mxu0 %v692
  %v2741 = vpop.f32.mrf.mxu0
  %v2742 = vadd.f32 %v2729, %v2741
  %v2743 = vpop.f32.mrf.mxu0
  %2744 = vdwg.mxu0
  %2745 = vmatpush.bf16.msra.mxu0 %v2071
  %2746 = vmatpush.bf16.msra.mxu0 %v2070
  %2747 = vmatpush.bf16.msra.mxu0 %v2069
  %2748 = vmatpush.bf16.msra.mxu0 %v2068
  %2749 = vmatpush.bf16.msra.mxu0 %v2067
  %2750 = vmatpush.bf16.msra.mxu0 %v2066
  %2751 = vmatpush.bf16.msra.mxu0 %v2065
  %2752 = vmatpush.bf16.msra.mxu0 %v2064
  %2753 = vmatmul.bf16.gmra.mxu0 %v693
  %v2754 = vpop.f32.mrf.mxu0
  %v2755 = vadd.f32 %v2742, %v2754
  %v2756 = vpop.f32.mrf.mxu0
  %2757 = vdwg.mxu0
  %2758 = vmatpush.bf16.msra.mxu0 %v2079
  %2759 = vmatpush.bf16.msra.mxu0 %v2078
  %2760 = vmatpush.bf16.msra.mxu0 %v2077
  %2761 = vmatpush.bf16.msra.mxu0 %v2076
  %2762 = vmatpush.bf16.msra.mxu0 %v2075
  %2763 = vmatpush.bf16.msra.mxu0 %v2074
  %2764 = vmatpush.bf16.msra.mxu0 %v2073
  %2765 = vmatpush.bf16.msra.mxu0 %v2072
  %2766 = vmatmul.bf16.gmra.mxu0 %v694
  %v2767 = vpop.f32.mrf.mxu0
  %v2768 = vadd.f32 %v2755, %v2767
  %v2769 = vpop.f32.mrf.mxu0
  %2770 = vdwg.mxu0
  %2771 = vmatpush.bf16.msra.mxu0 %v2087
  %2772 = vmatpush.bf16.msra.mxu0 %v2086
  %2773 = vmatpush.bf16.msra.mxu0 %v2085
  %2774 = vmatpush.bf16.msra.mxu0 %v2084
  %2775 = vmatpush.bf16.msra.mxu0 %v2083
  %2776 = vmatpush.bf16.msra.mxu0 %v2082
  %2777 = vmatpush.bf16.msra.mxu0 %v2081
  %2778 = vmatpush.bf16.msra.mxu0 %v2080
  %2779 = vmatmul.bf16.gmra.mxu0 %v695
  %v2780 = vpop.f32.mrf.mxu0
  %v2781 = vadd.f32 %v2768, %v2780
  %v2782 = vpop.f32.mrf.mxu0
  %2783 = vdwg.mxu0
  %2784 = vmatpush.bf16.msra.mxu0 %v2095
  %2785 = vmatpush.bf16.msra.mxu0 %v2094
  %2786 = vmatpush.bf16.msra.mxu0 %v2093
  %2787 = vmatpush.bf16.msra.mxu0 %v2092
  %2788 = vmatpush.bf16.msra.mxu0 %v2091
  %2789 = vmatpush.bf16.msra.mxu0 %v2090
  %2790 = vmatpush.bf16.msra.mxu0 %v2089
  %2791 = vmatpush.bf16.msra.mxu0 %v2088
  %2792 = vmatmul.bf16.gmra.mxu0 %v696
  %v2793 = vpop.f32.mrf.mxu0
  %v2794 = vadd.f32 %v2781, %v2793
  %v2795 = vpop.f32.mrf.mxu0
  %2796 = vdwg.mxu0
  %2797 = vmatpush.bf16.msra.mxu0 %v2103
  %2798 = vmatpush.bf16.msra.mxu0 %v2102
  %2799 = vmatpush.bf16.msra.mxu0 %v2101
  %2800 = vmatpush.bf16.msra.mxu0 %v2100
  %2801 = vmatpush.bf16.msra.mxu0 %v2099
  %2802 = vmatpush.bf16.msra.mxu0 %v2098
  %2803 = vmatpush.bf16.msra.mxu0 %v2097
  %2804 = vmatpush.bf16.msra.mxu0 %v2096
  %2805 = vmatmul.bf16.gmra.mxu0 %v697
  %v2806 = vpop.f32.mrf.mxu0
  %v2807 = vadd.f32 %v2794, %v2806
  %v2808 = vpop.f32.mrf.mxu0
  %2809 = vdwg.mxu0
  %2810 = vmatpush.bf16.msra.mxu0 %v2111
  %2811 = vmatpush.bf16.msra.mxu0 %v2110
  %2812 = vmatpush.bf16.msra.mxu0 %v2109
  %2813 = vmatpush.bf16.msra.mxu0 %v2108
  %2814 = vmatpush.bf16.msra.mxu0 %v2107
  %2815 = vmatpush.bf16.msra.mxu0 %v2106
  %2816 = vmatpush.bf16.msra.mxu0 %v2105
  %2817 = vmatpush.bf16.msra.mxu0 %v2104
  %2818 = vmatmul.bf16.gmra.mxu0 %v698
  %v2819 = vpop.f32.mrf.mxu0
  %v2820 = vadd.f32 %v2807, %v2819
  %v2821 = vpop.f32.mrf.mxu0
  %2822 = vdwg.mxu0
  %2823 = vmatpush.bf16.msra.mxu0 %v2119
  %2824 = vmatpush.bf16.msra.mxu0 %v2118
  %2825 = vmatpush.bf16.msra.mxu0 %v2117
  %2826 = vmatpush.bf16.msra.mxu0 %v2116
  %2827 = vmatpush.bf16.msra.mxu0 %v2115
  %2828 = vmatpush.bf16.msra.mxu0 %v2114
  %2829 = vmatpush.bf16.msra.mxu0 %v2113
  %2830 = vmatpush.bf16.msra.mxu0 %v2112
  %2831 = vmatmul.bf16.gmra.mxu0 %v699
  %v2832 = vpop.f32.mrf.mxu0
  %v2833 = vadd.f32 %v2820, %v2832
  %v2834 = vpop.f32.mrf.mxu0
  %2835 = vdwg.mxu0
  %2836 = vmatpush.bf16.msra.mxu0 %v2127
  %2837 = vmatpush.bf16.msra.mxu0 %v2126
  %2838 = vmatpush.bf16.msra.mxu0 %v2125
  %2839 = vmatpush.bf16.msra.mxu0 %v2124
  %2840 = vmatpush.bf16.msra.mxu0 %v2123
  %2841 = vmatpush.bf16.msra.mxu0 %v2122
  %2842 = vmatpush.bf16.msra.mxu0 %v2121
  %2843 = vmatpush.bf16.msra.mxu0 %v2120
  %2844 = vmatmul.bf16.gmra.mxu0 %v700
  %v2845 = vpop.f32.mrf.mxu0
  %v2846 = vadd.f32 %v2833, %v2845
  %v2847 = vpop.f32.mrf.mxu0
  %2848 = vdwg.mxu0
  %2849 = vmatpush.bf16.msra.mxu0 %v2135
  %2850 = vmatpush.bf16.msra.mxu0 %v2134
  %2851 = vmatpush.bf16.msra.mxu0 %v2133
  %2852 = vmatpush.bf16.msra.mxu0 %v2132
  %2853 = vmatpush.bf16.msra.mxu0 %v2131
  %2854 = vmatpush.bf16.msra.mxu0 %v2130
  %2855 = vmatpush.bf16.msra.mxu0 %v2129
  %2856 = vmatpush.bf16.msra.mxu0 %v2128
  %2857 = vmatmul.bf16.gmra.mxu0 %v701
  %v2858 = vpop.f32.mrf.mxu0
  %v2859 = vadd.f32 %v2846, %v2858
  %v2860 = vpop.f32.mrf.mxu0
  %2861 = vdwg.mxu0
  %2862 = vmatpush.bf16.msra.mxu0 %v2143
  %2863 = vmatpush.bf16.msra.mxu0 %v2142
  %2864 = vmatpush.bf16.msra.mxu0 %v2141
  %2865 = vmatpush.bf16.msra.mxu0 %v2140
  %2866 = vmatpush.bf16.msra.mxu0 %v2139
  %2867 = vmatpush.bf16.msra.mxu0 %v2138
  %2868 = vmatpush.bf16.msra.mxu0 %v2137
  %2869 = vmatpush.bf16.msra.mxu0 %v2136
  %2870 = vmatmul.bf16.gmra.mxu0 %v702
  %v2871 = vpop.f32.mrf.mxu0
  %v2872 = vadd.f32 %v2859, %v2871
  %v2873 = vpop.f32.mrf.mxu0
  %2874 = vdwg.mxu0
  %2875 = vmatpush.bf16.msra.mxu0 %v2151
  %2876 = vmatpush.bf16.msra.mxu0 %v2150
  %2877 = vmatpush.bf16.msra.mxu0 %v2149
  %2878 = vmatpush.bf16.msra.mxu0 %v2148
  %2879 = vmatpush.bf16.msra.mxu0 %v2147
  %2880 = vmatpush.bf16.msra.mxu0 %v2146
  %2881 = vmatpush.bf16.msra.mxu0 %v2145
  %2882 = vmatpush.bf16.msra.mxu0 %v2144
  %2883 = vmatmul.bf16.gmra.mxu0 %v703
  %v2884 = vpop.f32.mrf.mxu0
  %v2885 = vadd.f32 %v2872, %v2884
  %v2886 = vpop.f32.mrf.mxu0
  %2887 = vdwg.mxu0
  %2888 = vmatpush.bf16.msra.mxu0 %v2159
  %2889 = vmatpush.bf16.msra.mxu0 %v2158
  %2890 = vmatpush.bf16.msra.mxu0 %v2157
  %2891 = vmatpush.bf16.msra.mxu0 %v2156
  %2892 = vmatpush.bf16.msra.mxu0 %v2155
  %2893 = vmatpush.bf16.msra.mxu0 %v2154
  %2894 = vmatpush.bf16.msra.mxu0 %v2153
  %2895 = vmatpush.bf16.msra.mxu0 %v2152
  %2896 = vmatmul.bf16.gmra.mxu0 %v704
  %v2897 = vpop.f32.mrf.mxu0
  %v2898 = vadd.f32 %v2885, %v2897
  %v2899 = vpop.f32.mrf.mxu0
  %2900 = vdwg.mxu0
  %2901 = vmatpush.bf16.msra.mxu0 %v2167
  %2902 = vmatpush.bf16.msra.mxu0 %v2166
  %2903 = vmatpush.bf16.msra.mxu0 %v2165
  %2904 = vmatpush.bf16.msra.mxu0 %v2164
  %2905 = vmatpush.bf16.msra.mxu0 %v2163
  %2906 = vmatpush.bf16.msra.mxu0 %v2162
  %2907 = vmatpush.bf16.msra.mxu0 %v2161
  %2908 = vmatpush.bf16.msra.mxu0 %v2160
  %2909 = vmatmul.bf16.gmra.mxu0 %v705
  %v2910 = vpop.f32.mrf.mxu0
  %v2911 = vadd.f32 %v2898, %v2910
  %v2912 = vpop.f32.mrf.mxu0
  %2913 = vdwg.mxu0
  %2914 = vmatpush.bf16.msra.mxu0 %v2175
  %2915 = vmatpush.bf16.msra.mxu0 %v2174
  %2916 = vmatpush.bf16.msra.mxu0 %v2173
  %2917 = vmatpush.bf16.msra.mxu0 %v2172
  %2918 = vmatpush.bf16.msra.mxu0 %v2171
  %2919 = vmatpush.bf16.msra.mxu0 %v2170
  %2920 = vmatpush.bf16.msra.mxu0 %v2169
  %2921 = vmatpush.bf16.msra.mxu0 %v2168
  %2922 = vmatmul.bf16.gmra.mxu0 %v706
  %v2923 = vpop.f32.mrf.mxu0
  %v2924 = vadd.f32 %v2911, %v2923
  %v2925 = vpop.f32.mrf.mxu0
  %2926 = vdwg.mxu0
  %2927 = vmatpush.bf16.msra.mxu0 %v2183
  %2928 = vmatpush.bf16.msra.mxu0 %v2182
  %2929 = vmatpush.bf16.msra.mxu0 %v2181
  %2930 = vmatpush.bf16.msra.mxu0 %v2180
  %2931 = vmatpush.bf16.msra.mxu0 %v2179
  %2932 = vmatpush.bf16.msra.mxu0 %v2178
  %2933 = vmatpush.bf16.msra.mxu0 %v2177
  %2934 = vmatpush.bf16.msra.mxu0 %v2176
  %2935 = vmatmul.bf16.gmra.mxu0 %v707
  %v2936 = vpop.f32.mrf.mxu0
  %v2937 = vadd.f32 %v2924, %v2936
  %v2938 = vpop.f32.mrf.mxu0
  %2939 = vdwg.mxu0
  %v2940 = vmax.f32 %v2937, 0.0
  %v2941 = vld [vmem:[%s3] sm:$0xff]
  %v2942 = vld [vmem:[%s3 + $0x8] sm:$0xff]
  %v2943 = vld [vmem:[%s3 + $0x10] sm:$0xff]
  %v2944 = vld [vmem:[%s3 + $0x18] sm:$0xff]
  %v2945 = vld [vmem:[%s4] sm:$0x1]
  %v2947 = vperm.slane %v2945, 0
  %vm2949 = vcmask 261120
  %v2951 = vsel %vm2949, %v2940, 0
  %2953 = vmatpush.msra.mxu0 0.0
  %2954 = vmatpush.msra.mxu0 0.0
  %2955 = vmatpush.msra.mxu0 0.0
  %2956 = vmatpush.msra.mxu0 0.0
  %2957 = vmatpush.msra.mxu0 0.0
  %2958 = vmatpush.msra.mxu0 0.0
  %2959 = vmatpush.msra.mxu0 0.0
  %2960 = vmatpush.msra.mxu0 0.0
  %2961 = vmatpush.msra.mxu0 0.0
  %2962 = vmatpush.msra.mxu0 0.0
  %2963 = vmatpush.msra.mxu0 0.0
  %2964 = vmatpush.msra.mxu0 0.0
  %2965 = vmatpush.msra.mxu0 %v2944
  %2966 = vmatpush.msra.mxu0 %v2943
  %2967 = vmatpush.msra.mxu0 %v2942
  %2968 = vmatpush.msra.mxu0 %v2941
  %2969 = vmatmul.f32.gmra.mxu0 %v2951
  %v2970 = vpop.f32.mrf.mxu0
  %v2971 = vadd.f32 %v2947, %v2970
  %2972 = vdwg.mxu0
  %v2973 = vxor.u32 %v2971, 2147483648
  %v2974 = vmul.f32 %v2973, 1.442695
  %v2975 = vpow.pop %v2974
  %v2976 = vadd.f32 %v2975, 1.0
  %v2977 = vrcp.pop %v2976
  %v2978 = vmul.f32 %v2976, %v2977
  %v2979 = vsub.f32 1.0, %v2978
  %v2980 = vmul.f32 %v2977, %v2979
  %v2981 = vadd.f32 %v2977, %v2980
  %vm2982 = vweird.f32 %v2976
  %vm2983 = vweird.f32 %v2977
  %vm2984 = vmor %vm2982, %vm2983
  %v2985 = vsel %vm2984, %v2977, %v2981
  %v2986 = vand.u32 2147483647, %v2976
  %vm2987 = vcmp.eq.f32.partialorder %v2986, 8.507059e+37
  %v2988 = vand.u32 %v2976, 2147483648
  %v2989 = vor.u32 1.1754944e-38, %v2988
  %v2990 = vsel %vm2987, %v2989, %v2985
  %v2991 = vmul.f32 1.0, %v2990
  %vm2992 = vcmask 15360
  %2993 = vst.msk [vmem:[%s5] sm:$0xff] %vm2992, %v2991
  // Predicated region
  $region22: #{infix_classifier.3} parent=0 // pred_check
    _
  $region23: #{infix_classifier.3} parent=0 // pred_check_branch
    %2995 = sbr.rel (0) target = $region25
  $region24: #{infix_classifier.3} parent=0 // pred_region
    _
  $region25: #{infix_classifier.3} parent=0 // pred_fallthru
    _
  // Predicated region
  $region26: #{infix_classifier.3} parent=0 // pred_check
    _
  $region27: #{infix_classifier.3} parent=0 // pred_check_branch
    %2997 = sbr.rel (0) target = $region29
  $region28: #{infix_classifier.3} parent=0 // pred_region
    _
  $region29: #{infix_classifier.3} parent=0 // pred_fallthru
    _

</llo_original>
